<compile_context>
chip_gen: v5e
topology: v5e:2x2
jax: 0.10.0
libtpu: 0.0.40
codegen_flags: <defaults>
</compile_context>

<pallas_src>
import functools
import math

import jax
import jax.numpy as jnp
from jax.experimental import pallas as pl
from jax.experimental.pallas import tpu as pltpu

_LANE = 128     # TPU vreg lane width
_SUBLANE = 8    # TPU vreg sublane count (f32)


def _pad_up(n, m):
    return ((n + m - 1) // m) * m


def _make_fused_gru_kernel(n_layers, BP, T, HP):
    """All layers + full time recurrence in a single grid step.

    Args layout: (x_ref, [w_ih, w_hh, b_i, b_h] * n_layers, out_ref)
      x_ref   : (T*BP, DP)    time-major, batch- and lane-padded input
      w_ih    : (D_in, 3*HP)  gate g occupies lanes [g*HP, (g+1)*HP)
      w_hh    : (HP, 3*HP)
      b_i     : (1, 3*HP)     pre-folded input-side bias
      b_h     : (1, HP)       b_hn only (applied inside the r-scaling)
      out_ref : (T*BP, HP)    lane-dense padded output (last layer's h)
    """

    def kernel(*args):
        x_ref = args[0]
        out_ref = args[1 + 4 * n_layers]
        w_ih_refs = [args[1 + 4 * l] for l in range(n_layers)]
        w_hh_refs = [args[2 + 4 * l] for l in range(n_layers)]
        b_i_refs = [args[3 + 4 * l] for l in range(n_layers)]
        b_h_refs = [args[4 + 4 * l] for l in range(n_layers)]

        # Hoisted out of the recurrence: recurrent weights loaded once per
        # layer, b_hn / b_i broadcasts materialized once per layer.
        w_hh = [w_hh_refs[l][...] for l in range(n_layers)]
        b_hn = [jnp.broadcast_to(b_h_refs[l][...], (BP, HP))
                for l in range(n_layers)]
        b_i_b = [None] + [jnp.broadcast_to(b_i_refs[l][...], (BP, 3 * HP))
                          for l in range(1, n_layers)]

        # Layer-0 input projection for ALL timesteps: one tall, tile-aligned
        # matmul, entirely off the serial recurrence path.
        gi0_all = (
            jnp.dot(x_ref[...], w_ih_refs[0][...],
                    preferred_element_type=jnp.float32)
            + b_i_refs[0][...]
        )  # (T*BP, 3*HP)

        def gru_cell(gi, gh, h_prev, b_hn_l):
            # Gate slices are at multiples of HP=128 -> lane-tile aligned.
            r = jax.nn.sigmoid(gi[:, :HP] + gh[:, :HP])
            z = jax.nn.sigmoid(gi[:, HP:2 * HP] + gh[:, HP:2 * HP])
            n = jnp.tanh(gi[:, 2 * HP:] + r * (gh[:, 2 * HP:] + b_hn_l))
            return n + z * (h_prev - n)            # == (1-z)*n + z*h

        h = [jnp.zeros((BP, HP), jnp.float32) for _ in range(n_layers)]

        # Wavefront schedule: diagonal s runs timestep t = s - l of layer l.
        # Dependent chain = T + n_layers - 1 cells; cells within a diagonal
        # are mutually independent (different layers), so their matmuls and
        # EUP work can overlap.  T is small -> statically unrolled.
        for s in range(T + n_layers - 1):
            prev = list(h)  # snapshot of all layer states from diagonal s-1
            for l in range(n_layers):
                t = s - l
                if 0 <= t < T:
                    if l == 0:
                        # (8, 3*HP) sublane-aligned slice of the hoisted proj.
                        gi = gi0_all[t * BP:(t + 1) * BP, :]
                    else:
                        # Input = previous layer's hidden at the same timestep
                        # (computed at diagonal s-1).
                        gi = (jnp.dot(prev[l - 1], w_ih_refs[l][...],
                                      preferred_element_type=jnp.float32)
                              + b_i_b[l])
                    gh = jnp.dot(prev[l], w_hh[l],
                                 preferred_element_type=jnp.float32)
                    h[l] = gru_cell(gi, gh, prev[l], b_hn[l])
                    if l == n_layers - 1:
                        # Full (8,128) unmasked store into the lane-dense
                        # padded output.
                        out_ref[t * BP:(t + 1) * BP, :] = h[l]

    return kernel


def pack_gru_params(params, in_dim, hid_dim, lane=_LANE):
    """Pack raw PyTorch-layout GRU params into padded, pre-folded kernel form.

    Done once, off the timed path.  Weights stay f32 here; for production
    sizes cast to bf16 (f32 accumulation) to halve VMEM/DMA on v6e/v7x.
    """
    H = hid_dim
    HP = _pad_up(H, lane)
    DP = _pad_up(in_dim, lane)
    packed = []
    for layer, (w_ih, w_hh, b_ih, b_hh) in enumerate(params):
        d_in = in_dim if layer == 0 else hid_dim
        d_in_pad = DP if layer == 0 else HP  # layer>0 input arrives lane-padded

        w_ih_g = w_ih.reshape(3, H, d_in).astype(jnp.float32)
        w_hh_g = w_hh.reshape(3, H, H).astype(jnp.float32)

        w_ih_p = jnp.zeros((3, HP, d_in_pad), jnp.float32).at[:, :H, :d_in].set(w_ih_g)
        w_hh_p = jnp.zeros((3, HP, HP), jnp.float32).at[:, :H, :H].set(w_hh_g)

        # -> (D_in, 3*HP), (HP, 3*HP); gate g occupies lane block [g*HP,(g+1)*HP)
        w_ih_t = jnp.transpose(w_ih_p, (2, 0, 1)).reshape(d_in_pad, 3 * HP)
        w_hh_t = jnp.transpose(w_hh_p, (2, 0, 1)).reshape(HP, 3 * HP)

        # Pre-folded biases: r/z get b_ih+b_hh on the input projection, b_in
        # rides on the input projection; b_hn stays separate (scaled by r).
        b_i = jnp.zeros((3, HP), jnp.float32)
        b_i = b_i.at[0, :H].set(b_ih[0:H] + b_hh[0:H])
        b_i = b_i.at[1, :H].set(b_ih[H:2 * H] + b_hh[H:2 * H])
        b_i = b_i.at[2, :H].set(b_ih[2 * H:3 * H])
        b_i = b_i.reshape(1, 3 * HP)
        b_h = jnp.zeros((1, HP), jnp.float32).at[0, :H].set(b_hh[2 * H:3 * H])

        packed.append((w_ih_t, w_hh_t, b_i, b_h))
    return packed, HP, DP


@functools.partial(jax.jit, static_argnames=("hid_dim",))
def rnn_decoder_forward(packed_params, x, hid_dim):
    """x: (B, T, in_dim) batch-first (PyTorch convention). Returns (B, T, hid_dim)."""
    B, T, D = x.shape
    n_layers = len(packed_params)
    HP = packed_params[0][1].shape[0]   # padded hidden (w_hh rows)
    DP = packed_params[0][0].shape[0]   # padded in_dim (layer-0 w_ih rows)
    BP = _pad_up(B, _SUBLANE)           # sublane-padded batch

    # One-time layout op: time-major, zero-padded to (T*BP, DP) so every
    # in-kernel row slice / store is (8,128)-tile aligned.
    x_tm = jnp.transpose(x, (1, 0, 2)).astype(jnp.float32)          # (T, B, D)
    x_tm = jnp.pad(x_tm, ((0, 0), (0, BP - B), (0, DP - D)))        # zero pad
    x_tm = x_tm.reshape(T * BP, DP)

    flat = [x_tm]
    in_specs = [pl.BlockSpec((T * BP, DP), lambda i: (0, 0))]
    for layer_p in packed_params:
        for arr in layer_p:
            flat.append(arr)
            in_specs.append(pl.BlockSpec(arr.shape, lambda i: (0, 0)))

    # TODO(synk): inter-layer dropout (training-only) omitted; inference semantics.
    out2d = pl.pallas_call(
        _make_fused_gru_kernel(n_layers, BP, T, HP),
        out_shape=jax.ShapeDtypeStruct((T * BP, HP), jnp.float32),  # lane-dense
        grid_spec=pltpu.PrefetchScalarGridSpec(
            num_scalar_prefetch=0,
            grid=(1,),  # single grid step: wavefront over layers/time in-kernel
            in_specs=in_specs,
            out_specs=pl.BlockSpec((T * BP, HP), lambda i: (0, 0)),
        ),
        compiler_params=pltpu.CompilerParams(dimension_semantics=("arbitrary",)),
    )(*flat)

    # Un-pad on the JAX side (batch rows and hidden lanes).
    out = out2d.reshape(T, BP, HP)[:, :B, :hid_dim]
    return jnp.transpose(out, (1, 0, 2)).astype(x.dtype)


def init_rnn_decoder_params(key, in_dim, hid_dim, n_layers):
    """Deterministic init matching PyTorch GRU shapes: U(-1/sqrt(H), 1/sqrt(H))."""
    params = []
    k = 1.0 / math.sqrt(hid_dim)
    for layer in range(n_layers):
        layer_in = in_dim if layer == 0 else hid_dim
        key, k1, k2, k3, k4 = jax.random.split(key, 5)
        w_ih = jax.random.uniform(k1, (3 * hid_dim, layer_in), jnp.float32, -k, k)
        w_hh = jax.random.uniform(k2, (3 * hid_dim, hid_dim), jnp.float32, -k, k)
        b_ih = jax.random.uniform(k3, (3 * hid_dim,), jnp.float32, -k, k)
        b_hh = jax.random.uniform(k4, (3 * hid_dim,), jnp.float32, -k, k)
        params.append((w_ih, w_hh, b_ih, b_hh))
    return params


def rnn_decoder_reference(params, x):
    """Pure-JAX lax.scan reference for correctness checking."""
    h = jnp.transpose(x, (1, 0, 2))
    for (w_ih, w_hh, b_ih, b_hh) in params:
        H = w_hh.shape[1]
        B = h.shape[1]

        def step(h_prev, x_t, w_ih=w_ih, w_hh=w_hh, b_ih=b_ih, b_hh=b_hh, H=H):
            gi = x_t @ w_ih.T + b_ih
            gh = h_prev @ w_hh.T + b_hh
            r = jax.nn.sigmoid(gi[:, :H] + gh[:, :H])
            z = jax.nn.sigmoid(gi[:, H:2 * H] + gh[:, H:2 * H])
            n = jnp.tanh(gi[:, 2 * H:] + r * gh[:, 2 * H:])
            h_new = (1.0 - z) * n + z * h_prev
            return h_new, h_new

        _, outs = jax.lax.scan(step, jnp.zeros((B, H), h.dtype), h)
        h = outs
    return jnp.transpose(h, (1, 0, 2))


if __name__ == "__main__":
    # RNNDecoder(in_dim=16, hid_dim=32, n_layers=2, dropout=0.2)
    in_dim, hid_dim, n_layers = 16, 32, 2
    batch, seq = 2, 8

    key = jax.random.PRNGKey(0)
    key, pkey, xkey = jax.random.split(key, 3)
    params = init_rnn_decoder_params(pkey, in_dim, hid_dim, n_layers)
    x = jax.random.normal(xkey, (batch, seq, in_dim), jnp.float32)

    packed, hid_pad, in_pad = pack_gru_params(params, in_dim, hid_dim)

    out = rnn_decoder_forward(packed, x, hid_dim=hid_dim)
    out = jax.block_until_ready(out)

    ref = rnn_decoder_reference(params, x)
    assert out.shape == (batch, seq, hid_dim)
    assert jnp.allclose(out, ref, atol=1e-5, rtol=1e-5), "mismatch vs reference"
    print("KERNEL_OK")
</pallas_src>

<mosaic_0001>
module attributes {stable_mosaic.version = 11 : i64} {
  func.func @kernel(%arg0: i32, %arg1: memref<64x128xf32, #tpu.memory_space<vmem>>, %arg2: memref<128x384xf32, #tpu.memory_space<vmem>>, %arg3: memref<128x384xf32, #tpu.memory_space<vmem>>, %arg4: memref<1x384xf32, #tpu.memory_space<vmem>>, %arg5: memref<1x128xf32, #tpu.memory_space<vmem>>, %arg6: memref<128x384xf32, #tpu.memory_space<vmem>>, %arg7: memref<128x384xf32, #tpu.memory_space<vmem>>, %arg8: memref<1x384xf32, #tpu.memory_space<vmem>>, %arg9: memref<1x128xf32, #tpu.memory_space<vmem>>, %arg10: memref<64x128xf32, #tpu.memory_space<vmem>>) attributes {dimension_semantics = [#tpu.dimension_semantics<arbitrary>], iteration_bounds = array<i64: 1>, scalar_prefetch = 0 : i64, scratch_operands = 0 : i64, tpu.core_type = #tpu.core_type<tc>, window_params = [{pipeline_mode = #tpu.pipeline_mode<synchronous>, transform_indices = @transform_0, window_bounds = array<i64: 64, 128>}, {pipeline_mode = #tpu.pipeline_mode<synchronous>, transform_indices = @transform_1, window_bounds = array<i64: 128, 384>}, {pipeline_mode = #tpu.pipeline_mode<synchronous>, transform_indices = @transform_2, window_bounds = array<i64: 128, 384>}, {pipeline_mode = #tpu.pipeline_mode<synchronous>, transform_indices = @transform_3, window_bounds = array<i64: 1, 384>}, {pipeline_mode = #tpu.pipeline_mode<synchronous>, transform_indices = @transform_4, window_bounds = array<i64: 1, 128>}, {pipeline_mode = #tpu.pipeline_mode<synchronous>, transform_indices = @transform_5, window_bounds = array<i64: 128, 384>}, {pipeline_mode = #tpu.pipeline_mode<synchronous>, transform_indices = @transform_6, window_bounds = array<i64: 128, 384>}, {pipeline_mode = #tpu.pipeline_mode<synchronous>, transform_indices = @transform_7, window_bounds = array<i64: 1, 384>}, {pipeline_mode = #tpu.pipeline_mode<synchronous>, transform_indices = @transform_8, window_bounds = array<i64: 1, 128>}, {pipeline_mode = #tpu.pipeline_mode<synchronous>, transform_indices = @transform_9, window_bounds = array<i64: 64, 128>}]} {
    %c0 = arith.constant 0 : index
    %c0_0 = arith.constant 0 : index
    %0 = vector.load %arg3[%c0, %c0_0] : memref<128x384xf32, #tpu.memory_space<vmem>>, vector<128x384xf32>
    %c0_1 = arith.constant 0 : index
    %c0_2 = arith.constant 0 : index
    %1 = vector.load %arg7[%c0_1, %c0_2] : memref<128x384xf32, #tpu.memory_space<vmem>>, vector<128x384xf32>
    %c0_3 = arith.constant 0 : index
    %c0_4 = arith.constant 0 : index
    %2 = vector.load %arg5[%c0_3, %c0_4] : memref<1x128xf32, #tpu.memory_space<vmem>>, vector<1x128xf32>
    %3 = vector.shape_cast %2 : vector<1x128xf32> to vector<1x128xf32>
    %4 = vector.broadcast %3 : vector<1x128xf32> to vector<8x128xf32>
    %c0_5 = arith.constant 0 : index
    %c0_6 = arith.constant 0 : index
    %5 = vector.load %arg9[%c0_5, %c0_6] : memref<1x128xf32, #tpu.memory_space<vmem>>, vector<1x128xf32>
    %6 = vector.shape_cast %5 : vector<1x128xf32> to vector<1x128xf32>
    %7 = vector.broadcast %6 : vector<1x128xf32> to vector<8x128xf32>
    %c0_7 = arith.constant 0 : index
    %c0_8 = arith.constant 0 : index
    %8 = vector.load %arg8[%c0_7, %c0_8] : memref<1x384xf32, #tpu.memory_space<vmem>>, vector<1x384xf32>
    %9 = vector.shape_cast %8 : vector<1x384xf32> to vector<1x384xf32>
    %10 = vector.broadcast %9 : vector<1x384xf32> to vector<8x384xf32>
    %c0_9 = arith.constant 0 : index
    %c0_10 = arith.constant 0 : index
    %11 = vector.load %arg1[%c0_9, %c0_10] : memref<64x128xf32, #tpu.memory_space<vmem>>, vector<64x128xf32>
    %c0_11 = arith.constant 0 : index
    %c0_12 = arith.constant 0 : index
    %12 = vector.load %arg2[%c0_11, %c0_12] : memref<128x384xf32, #tpu.memory_space<vmem>>, vector<128x384xf32>
    %cst = arith.constant dense<0.000000e+00> : vector<64x384xf32>
    %13 = tpu.matmul %11, %12, %cst {dimension_numbers = #tpu.dot_dimension_numbers<[1], [0], [0], [1], [0, 0, 1, 1], [], []>} : vector<64x128xf32>, vector<128x384xf32>, vector<64x384xf32> -> vector<64x384xf32>
    %c0_13 = arith.constant 0 : index
    %c0_14 = arith.constant 0 : index
    %14 = vector.load %arg4[%c0_13, %c0_14] : memref<1x384xf32, #tpu.memory_space<vmem>>, vector<1x384xf32>
    %15 = vector.broadcast %14 : vector<1x384xf32> to vector<64x384xf32>
    %16 = arith.addf %13, %15 : vector<64x384xf32>
    %cst_15 = arith.constant 0.000000e+00 : f32
    %17 = vector.broadcast %cst_15 : f32 to vector<8x128xf32>
    %cst_16 = arith.constant 0.000000e+00 : f32
    %18 = vector.broadcast %cst_16 : f32 to vector<8x128xf32>
    %19 = vector.extract_strided_slice %16 {offsets = [0, 0], sizes = [8, 384], strides = [1, 1]} : vector<64x384xf32> to vector<8x384xf32>
    %cst_17 = arith.constant dense<0.000000e+00> : vector<8x384xf32>
    %20 = tpu.matmul %17, %0, %cst_17 {dimension_numbers = #tpu.dot_dimension_numbers<[1], [0], [0], [1], [0, 0, 1, 1], [], []>} : vector<8x128xf32>, vector<128x384xf32>, vector<8x384xf32> -> vector<8x384xf32>
    %21 = vector.extract_strided_slice %19 {offsets = [0, 0], sizes = [8, 128], strides = [1, 1]} : vector<8x384xf32> to vector<8x128xf32>
    %22 = vector.extract_strided_slice %20 {offsets = [0, 0], sizes = [8, 128], strides = [1, 1]} : vector<8x384xf32> to vector<8x128xf32>
    %23 = arith.addf %21, %22 : vector<8x128xf32>
    %24 = arith.negf %23 : vector<8x128xf32>
    %25 = math.exp %24 : vector<8x128xf32>
    %cst_18 = arith.constant 1.000000e+00 : f32
    %26 = vector.broadcast %cst_18 : f32 to vector<8x128xf32>
    %27 = arith.addf %26, %25 : vector<8x128xf32>
    %28 = arith.divf %26, %27 : vector<8x128xf32>
    %29 = vector.extract_strided_slice %19 {offsets = [0, 128], sizes = [8, 128], strides = [1, 1]} : vector<8x384xf32> to vector<8x128xf32>
    %30 = vector.extract_strided_slice %20 {offsets = [0, 128], sizes = [8, 128], strides = [1, 1]} : vector<8x384xf32> to vector<8x128xf32>
    %31 = arith.addf %29, %30 : vector<8x128xf32>
    %32 = arith.negf %31 : vector<8x128xf32>
    %33 = math.exp %32 : vector<8x128xf32>
    %cst_19 = arith.constant 1.000000e+00 : f32
    %34 = vector.broadcast %cst_19 : f32 to vector<8x128xf32>
    %35 = arith.addf %34, %33 : vector<8x128xf32>
    %36 = arith.divf %34, %35 : vector<8x128xf32>
    %37 = vector.extract_strided_slice %19 {offsets = [0, 256], sizes = [8, 128], strides = [1, 1]} : vector<8x384xf32> to vector<8x128xf32>
    %38 = vector.extract_strided_slice %20 {offsets = [0, 256], sizes = [8, 128], strides = [1, 1]} : vector<8x384xf32> to vector<8x128xf32>
    %39 = arith.addf %38, %4 : vector<8x128xf32>
    %40 = arith.mulf %28, %39 : vector<8x128xf32>
    %41 = arith.addf %37, %40 : vector<8x128xf32>
    %42 = math.tanh %41 : vector<8x128xf32>
    %43 = arith.subf %17, %42 : vector<8x128xf32>
    %44 = arith.mulf %36, %43 : vector<8x128xf32>
    %45 = arith.addf %42, %44 : vector<8x128xf32>
    %46 = vector.extract_strided_slice %16 {offsets = [8, 0], sizes = [8, 384], strides = [1, 1]} : vector<64x384xf32> to vector<8x384xf32>
    %cst_20 = arith.constant dense<0.000000e+00> : vector<8x384xf32>
    %47 = tpu.matmul %45, %0, %cst_20 {dimension_numbers = #tpu.dot_dimension_numbers<[1], [0], [0], [1], [0, 0, 1, 1], [], []>} : vector<8x128xf32>, vector<128x384xf32>, vector<8x384xf32> -> vector<8x384xf32>
    %48 = vector.extract_strided_slice %46 {offsets = [0, 0], sizes = [8, 128], strides = [1, 1]} : vector<8x384xf32> to vector<8x128xf32>
    %49 = vector.extract_strided_slice %47 {offsets = [0, 0], sizes = [8, 128], strides = [1, 1]} : vector<8x384xf32> to vector<8x128xf32>
    %50 = arith.addf %48, %49 : vector<8x128xf32>
    %51 = arith.negf %50 : vector<8x128xf32>
    %52 = math.exp %51 : vector<8x128xf32>
    %cst_21 = arith.constant 1.000000e+00 : f32
    %53 = vector.broadcast %cst_21 : f32 to vector<8x128xf32>
    %54 = arith.addf %53, %52 : vector<8x128xf32>
    %55 = arith.divf %53, %54 : vector<8x128xf32>
    %56 = vector.extract_strided_slice %46 {offsets = [0, 128], sizes = [8, 128], strides = [1, 1]} : vector<8x384xf32> to vector<8x128xf32>
    %57 = vector.extract_strided_slice %47 {offsets = [0, 128], sizes = [8, 128], strides = [1, 1]} : vector<8x384xf32> to vector<8x128xf32>
    %58 = arith.addf %56, %57 : vector<8x128xf32>
    %59 = arith.negf %58 : vector<8x128xf32>
    %60 = math.exp %59 : vector<8x128xf32>
    %cst_22 = arith.constant 1.000000e+00 : f32
    %61 = vector.broadcast %cst_22 : f32 to vector<8x128xf32>
    %62 = arith.addf %61, %60 : vector<8x128xf32>
    %63 = arith.divf %61, %62 : vector<8x128xf32>
    %64 = vector.extract_strided_slice %46 {offsets = [0, 256], sizes = [8, 128], strides = [1, 1]} : vector<8x384xf32> to vector<8x128xf32>
    %65 = vector.extract_strided_slice %47 {offsets = [0, 256], sizes = [8, 128], strides = [1, 1]} : vector<8x384xf32> to vector<8x128xf32>
    %66 = arith.addf %65, %4 : vector<8x128xf32>
    %67 = arith.mulf %55, %66 : vector<8x128xf32>
    %68 = arith.addf %64, %67 : vector<8x128xf32>
    %69 = math.tanh %68 : vector<8x128xf32>
    %70 = arith.subf %45, %69 : vector<8x128xf32>
    %71 = arith.mulf %63, %70 : vector<8x128xf32>
    %72 = arith.addf %69, %71 : vector<8x128xf32>
    %c0_23 = arith.constant 0 : index
    %c0_24 = arith.constant 0 : index
    %73 = vector.load %arg6[%c0_23, %c0_24] : memref<128x384xf32, #tpu.memory_space<vmem>>, vector<128x384xf32>
    %cst_25 = arith.constant dense<0.000000e+00> : vector<8x384xf32>
    %74 = tpu.matmul %45, %73, %cst_25 {dimension_numbers = #tpu.dot_dimension_numbers<[1], [0], [0], [1], [0, 0, 1, 1], [], []>} : vector<8x128xf32>, vector<128x384xf32>, vector<8x384xf32> -> vector<8x384xf32>
    %75 = arith.addf %74, %10 : vector<8x384xf32>
    %cst_26 = arith.constant dense<0.000000e+00> : vector<8x384xf32>
    %76 = tpu.matmul %18, %1, %cst_26 {dimension_numbers = #tpu.dot_dimension_numbers<[1], [0], [0], [1], [0, 0, 1, 1], [], []>} : vector<8x128xf32>, vector<128x384xf32>, vector<8x384xf32> -> vector<8x384xf32>
    %77 = vector.extract_strided_slice %75 {offsets = [0, 0], sizes = [8, 128], strides = [1, 1]} : vector<8x384xf32> to vector<8x128xf32>
    %78 = vector.extract_strided_slice %76 {offsets = [0, 0], sizes = [8, 128], strides = [1, 1]} : vector<8x384xf32> to vector<8x128xf32>
    %79 = arith.addf %77, %78 : vector<8x128xf32>
    %80 = arith.negf %79 : vector<8x128xf32>
    %81 = math.exp %80 : vector<8x128xf32>
    %cst_27 = arith.constant 1.000000e+00 : f32
    %82 = vector.broadcast %cst_27 : f32 to vector<8x128xf32>
    %83 = arith.addf %82, %81 : vector<8x128xf32>
    %84 = arith.divf %82, %83 : vector<8x128xf32>
    %85 = vector.extract_strided_slice %75 {offsets = [0, 128], sizes = [8, 128], strides = [1, 1]} : vector<8x384xf32> to vector<8x128xf32>
    %86 = vector.extract_strided_slice %76 {offsets = [0, 128], sizes = [8, 128], strides = [1, 1]} : vector<8x384xf32> to vector<8x128xf32>
    %87 = arith.addf %85, %86 : vector<8x128xf32>
    %88 = arith.negf %87 : vector<8x128xf32>
    %89 = math.exp %88 : vector<8x128xf32>
    %cst_28 = arith.constant 1.000000e+00 : f32
    %90 = vector.broadcast %cst_28 : f32 to vector<8x128xf32>
    %91 = arith.addf %90, %89 : vector<8x128xf32>
    %92 = arith.divf %90, %91 : vector<8x128xf32>
    %93 = vector.extract_strided_slice %75 {offsets = [0, 256], sizes = [8, 128], strides = [1, 1]} : vector<8x384xf32> to vector<8x128xf32>
    %94 = vector.extract_strided_slice %76 {offsets = [0, 256], sizes = [8, 128], strides = [1, 1]} : vector<8x384xf32> to vector<8x128xf32>
    %95 = arith.addf %94, %7 : vector<8x128xf32>
    %96 = arith.mulf %84, %95 : vector<8x128xf32>
    %97 = arith.addf %93, %96 : vector<8x128xf32>
    %98 = math.tanh %97 : vector<8x128xf32>
    %99 = arith.subf %18, %98 : vector<8x128xf32>
    %100 = arith.mulf %92, %99 : vector<8x128xf32>
    %101 = arith.addf %98, %100 : vector<8x128xf32>
    %c0_29 = arith.constant 0 : index
    %c0_30 = arith.constant 0 : index
    %102 = vector.load %arg10[%c0_29, %c0_30] : memref<64x128xf32, #tpu.memory_space<vmem>>, vector<8x128xf32>
    tpu.vector_store %arg10[%c0_29, %c0_30], %101 {strides = array<i32>} : memref<64x128xf32, #tpu.memory_space<vmem>>, vector<8x128xf32>,
    %103 = vector.extract_strided_slice %16 {offsets = [16, 0], sizes = [8, 384], strides = [1, 1]} : vector<64x384xf32> to vector<8x384xf32>
    %cst_31 = arith.constant dense<0.000000e+00> : vector<8x384xf32>
    %104 = tpu.matmul %72, %0, %cst_31 {dimension_numbers = #tpu.dot_dimension_numbers<[1], [0], [0], [1], [0, 0, 1, 1], [], []>} : vector<8x128xf32>, vector<128x384xf32>, vector<8x384xf32> -> vector<8x384xf32>
    %105 = vector.extract_strided_slice %103 {offsets = [0, 0], sizes = [8, 128], strides = [1, 1]} : vector<8x384xf32> to vector<8x128xf32>
    %106 = vector.extract_strided_slice %104 {offsets = [0, 0], sizes = [8, 128], strides = [1, 1]} : vector<8x384xf32> to vector<8x128xf32>
    %107 = arith.addf %105, %106 : vector<8x128xf32>
    %108 = arith.negf %107 : vector<8x128xf32>
    %109 = math.exp %108 : vector<8x128xf32>
    %cst_32 = arith.constant 1.000000e+00 : f32
    %110 = vector.broadcast %cst_32 : f32 to vector<8x128xf32>
    %111 = arith.addf %110, %109 : vector<8x128xf32>
    %112 = arith.divf %110, %111 : vector<8x128xf32>
    %113 = vector.extract_strided_slice %103 {offsets = [0, 128], sizes = [8, 128], strides = [1, 1]} : vector<8x384xf32> to vector<8x128xf32>
    %114 = vector.extract_strided_slice %104 {offsets = [0, 128], sizes = [8, 128], strides = [1, 1]} : vector<8x384xf32> to vector<8x128xf32>
    %115 = arith.addf %113, %114 : vector<8x128xf32>
    %116 = arith.negf %115 : vector<8x128xf32>
    %117 = math.exp %116 : vector<8x128xf32>
    %cst_33 = arith.constant 1.000000e+00 : f32
    %118 = vector.broadcast %cst_33 : f32 to vector<8x128xf32>
    %119 = arith.addf %118, %117 : vector<8x128xf32>
    %120 = arith.divf %118, %119 : vector<8x128xf32>
    %121 = vector.extract_strided_slice %103 {offsets = [0, 256], sizes = [8, 128], strides = [1, 1]} : vector<8x384xf32> to vector<8x128xf32>
    %122 = vector.extract_strided_slice %104 {offsets = [0, 256], sizes = [8, 128], strides = [1, 1]} : vector<8x384xf32> to vector<8x128xf32>
    %123 = arith.addf %122, %4 : vector<8x128xf32>
    %124 = arith.mulf %112, %123 : vector<8x128xf32>
    %125 = arith.addf %121, %124 : vector<8x128xf32>
    %126 = math.tanh %125 : vector<8x128xf32>
    %127 = arith.subf %72, %126 : vector<8x128xf32>
    %128 = arith.mulf %120, %127 : vector<8x128xf32>
    %129 = arith.addf %126, %128 : vector<8x128xf32>
    %c0_34 = arith.constant 0 : index
    %c0_35 = arith.constant 0 : index
    %130 = vector.load %arg6[%c0_34, %c0_35] : memref<128x384xf32, #tpu.memory_space<vmem>>, vector<128x384xf32>
    %cst_36 = arith.constant dense<0.000000e+00> : vector<8x384xf32>
    %131 = tpu.matmul %72, %130, %cst_36 {dimension_numbers = #tpu.dot_dimension_numbers<[1], [0], [0], [1], [0, 0, 1, 1], [], []>} : vector<8x128xf32>, vector<128x384xf32>, vector<8x384xf32> -> vector<8x384xf32>
    %132 = arith.addf %131, %10 : vector<8x384xf32>
    %cst_37 = arith.constant dense<0.000000e+00> : vector<8x384xf32>
    %133 = tpu.matmul %101, %1, %cst_37 {dimension_numbers = #tpu.dot_dimension_numbers<[1], [0], [0], [1], [0, 0, 1, 1], [], []>} : vector<8x128xf32>, vector<128x384xf32>, vector<8x384xf32> -> vector<8x384xf32>
    %134 = vector.extract_strided_slice %132 {offsets = [0, 0], sizes = [8, 128], strides = [1, 1]} : vector<8x384xf32> to vector<8x128xf32>
    %135 = vector.extract_strided_slice %133 {offsets = [0, 0], sizes = [8, 128], strides = [1, 1]} : vector<8x384xf32> to vector<8x128xf32>
    %136 = arith.addf %134, %135 : vector<8x128xf32>
    %137 = arith.negf %136 : vector<8x128xf32>
    %138 = math.exp %137 : vector<8x128xf32>
    %cst_38 = arith.constant 1.000000e+00 : f32
    %139 = vector.broadcast %cst_38 : f32 to vector<8x128xf32>
    %140 = arith.addf %139, %138 : vector<8x128xf32>
    %141 = arith.divf %139, %140 : vector<8x128xf32>
    %142 = vector.extract_strided_slice %132 {offsets = [0, 128], sizes = [8, 128], strides = [1, 1]} : vector<8x384xf32> to vector<8x128xf32>
    %143 = vector.extract_strided_slice %133 {offsets = [0, 128], sizes = [8, 128], strides = [1, 1]} : vector<8x384xf32> to vector<8x128xf32>
    %144 = arith.addf %142, %143 : vector<8x128xf32>
    %145 = arith.negf %144 : vector<8x128xf32>
    %146 = math.exp %145 : vector<8x128xf32>
    %cst_39 = arith.constant 1.000000e+00 : f32
    %147 = vector.broadcast %cst_39 : f32 to vector<8x128xf32>
    %148 = arith.addf %147, %146 : vector<8x128xf32>
    %149 = arith.divf %147, %148 : vector<8x128xf32>
    %150 = vector.extract_strided_slice %132 {offsets = [0, 256], sizes = [8, 128], strides = [1, 1]} : vector<8x384xf32> to vector<8x128xf32>
    %151 = vector.extract_strided_slice %133 {offsets = [0, 256], sizes = [8, 128], strides = [1, 1]} : vector<8x384xf32> to vector<8x128xf32>
    %152 = arith.addf %151, %7 : vector<8x128xf32>
    %153 = arith.mulf %141, %152 : vector<8x128xf32>
    %154 = arith.addf %150, %153 : vector<8x128xf32>
    %155 = math.tanh %154 : vector<8x128xf32>
    %156 = arith.subf %101, %155 : vector<8x128xf32>
    %157 = arith.mulf %149, %156 : vector<8x128xf32>
    %158 = arith.addf %155, %157 : vector<8x128xf32>
    %c8 = arith.constant 8 : index
    %c0_40 = arith.constant 0 : index
    %159 = vector.load %arg10[%c8, %c0_40] : memref<64x128xf32, #tpu.memory_space<vmem>>, vector<8x128xf32>
    tpu.vector_store %arg10[%c8, %c0_40], %158 {strides = array<i32>} : memref<64x128xf32, #tpu.memory_space<vmem>>, vector<8x128xf32>,
    %160 = vector.extract_strided_slice %16 {offsets = [24, 0], sizes = [8, 384], strides = [1, 1]} : vector<64x384xf32> to vector<8x384xf32>
    %cst_41 = arith.constant dense<0.000000e+00> : vector<8x384xf32>
    %161 = tpu.matmul %129, %0, %cst_41 {dimension_numbers = #tpu.dot_dimension_numbers<[1], [0], [0], [1], [0, 0, 1, 1], [], []>} : vector<8x128xf32>, vector<128x384xf32>, vector<8x384xf32> -> vector<8x384xf32>
    %162 = vector.extract_strided_slice %160 {offsets = [0, 0], sizes = [8, 128], strides = [1, 1]} : vector<8x384xf32> to vector<8x128xf32>
    %163 = vector.extract_strided_slice %161 {offsets = [0, 0], sizes = [8, 128], strides = [1, 1]} : vector<8x384xf32> to vector<8x128xf32>
    %164 = arith.addf %162, %163 : vector<8x128xf32>
    %165 = arith.negf %164 : vector<8x128xf32>
    %166 = math.exp %165 : vector<8x128xf32>
    %cst_42 = arith.constant 1.000000e+00 : f32
    %167 = vector.broadcast %cst_42 : f32 to vector<8x128xf32>
    %168 = arith.addf %167, %166 : vector<8x128xf32>
    %169 = arith.divf %167, %168 : vector<8x128xf32>
    %170 = vector.extract_strided_slice %160 {offsets = [0, 128], sizes = [8, 128], strides = [1, 1]} : vector<8x384xf32> to vector<8x128xf32>
    %171 = vector.extract_strided_slice %161 {offsets = [0, 128], sizes = [8, 128], strides = [1, 1]} : vector<8x384xf32> to vector<8x128xf32>
    %172 = arith.addf %170, %171 : vector<8x128xf32>
    %173 = arith.negf %172 : vector<8x128xf32>
    %174 = math.exp %173 : vector<8x128xf32>
    %cst_43 = arith.constant 1.000000e+00 : f32
    %175 = vector.broadcast %cst_43 : f32 to vector<8x128xf32>
    %176 = arith.addf %175, %174 : vector<8x128xf32>
    %177 = arith.divf %175, %176 : vector<8x128xf32>
    %178 = vector.extract_strided_slice %160 {offsets = [0, 256], sizes = [8, 128], strides = [1, 1]} : vector<8x384xf32> to vector<8x128xf32>
    %179 = vector.extract_strided_slice %161 {offsets = [0, 256], sizes = [8, 128], strides = [1, 1]} : vector<8x384xf32> to vector<8x128xf32>
    %180 = arith.addf %179, %4 : vector<8x128xf32>
    %181 = arith.mulf %169, %180 : vector<8x128xf32>
    %182 = arith.addf %178, %181 : vector<8x128xf32>
    %183 = math.tanh %182 : vector<8x128xf32>
    %184 = arith.subf %129, %183 : vector<8x128xf32>
    %185 = arith.mulf %177, %184 : vector<8x128xf32>
    %186 = arith.addf %183, %185 : vector<8x128xf32>
    %c0_44 = arith.constant 0 : index
    %c0_45 = arith.constant 0 : index
    %187 = vector.load %arg6[%c0_44, %c0_45] : memref<128x384xf32, #tpu.memory_space<vmem>>, vector<128x384xf32>
    %cst_46 = arith.constant dense<0.000000e+00> : vector<8x384xf32>
    %188 = tpu.matmul %129, %187, %cst_46 {dimension_numbers = #tpu.dot_dimension_numbers<[1], [0], [0], [1], [0, 0, 1, 1], [], []>} : vector<8x128xf32>, vector<128x384xf32>, vector<8x384xf32> -> vector<8x384xf32>
    %189 = arith.addf %188, %10 : vector<8x384xf32>
    %cst_47 = arith.constant dense<0.000000e+00> : vector<8x384xf32>
    %190 = tpu.matmul %158, %1, %cst_47 {dimension_numbers = #tpu.dot_dimension_numbers<[1], [0], [0], [1], [0, 0, 1, 1], [], []>} : vector<8x128xf32>, vector<128x384xf32>, vector<8x384xf32> -> vector<8x384xf32>
    %191 = vector.extract_strided_slice %189 {offsets = [0, 0], sizes = [8, 128], strides = [1, 1]} : vector<8x384xf32> to vector<8x128xf32>
    %192 = vector.extract_strided_slice %190 {offsets = [0, 0], sizes = [8, 128], strides = [1, 1]} : vector<8x384xf32> to vector<8x128xf32>
    %193 = arith.addf %191, %192 : vector<8x128xf32>
    %194 = arith.negf %193 : vector<8x128xf32>
    %195 = math.exp %194 : vector<8x128xf32>
    %cst_48 = arith.constant 1.000000e+00 : f32
    %196 = vector.broadcast %cst_48 : f32 to vector<8x128xf32>
    %197 = arith.addf %196, %195 : vector<8x128xf32>
    %198 = arith.divf %196, %197 : vector<8x128xf32>
    %199 = vector.extract_strided_slice %189 {offsets = [0, 128], sizes = [8, 128], strides = [1, 1]} : vector<8x384xf32> to vector<8x128xf32>
    %200 = vector.extract_strided_slice %190 {offsets = [0, 128], sizes = [8, 128], strides = [1, 1]} : vector<8x384xf32> to vector<8x128xf32>
    %201 = arith.addf %199, %200 : vector<8x128xf32>
    %202 = arith.negf %201 : vector<8x128xf32>
    %203 = math.exp %202 : vector<8x128xf32>
    %cst_49 = arith.constant 1.000000e+00 : f32
    %204 = vector.broadcast %cst_49 : f32 to vector<8x128xf32>
    %205 = arith.addf %204, %203 : vector<8x128xf32>
    %206 = arith.divf %204, %205 : vector<8x128xf32>
    %207 = vector.extract_strided_slice %189 {offsets = [0, 256], sizes = [8, 128], strides = [1, 1]} : vector<8x384xf32> to vector<8x128xf32>
    %208 = vector.extract_strided_slice %190 {offsets = [0, 256], sizes = [8, 128], strides = [1, 1]} : vector<8x384xf32> to vector<8x128xf32>
    %209 = arith.addf %208, %7 : vector<8x128xf32>
    %210 = arith.mulf %198, %209 : vector<8x128xf32>
    %211 = arith.addf %207, %210 : vector<8x128xf32>
    %212 = math.tanh %211 : vector<8x128xf32>
    %213 = arith.subf %158, %212 : vector<8x128xf32>
    %214 = arith.mulf %206, %213 : vector<8x128xf32>
    %215 = arith.addf %212, %214 : vector<8x128xf32>
    %c16 = arith.constant 16 : index
    %c0_50 = arith.constant 0 : index
    %216 = vector.load %arg10[%c16, %c0_50] : memref<64x128xf32, #tpu.memory_space<vmem>>, vector<8x128xf32>
    tpu.vector_store %arg10[%c16, %c0_50], %215 {strides = array<i32>} : memref<64x128xf32, #tpu.memory_space<vmem>>, vector<8x128xf32>,
    %217 = vector.extract_strided_slice %16 {offsets = [32, 0], sizes = [8, 384], strides = [1, 1]} : vector<64x384xf32> to vector<8x384xf32>
    %cst_51 = arith.constant dense<0.000000e+00> : vector<8x384xf32>
    %218 = tpu.matmul %186, %0, %cst_51 {dimension_numbers = #tpu.dot_dimension_numbers<[1], [0], [0], [1], [0, 0, 1, 1], [], []>} : vector<8x128xf32>, vector<128x384xf32>, vector<8x384xf32> -> vector<8x384xf32>
    %219 = vector.extract_strided_slice %217 {offsets = [0, 0], sizes = [8, 128], strides = [1, 1]} : vector<8x384xf32> to vector<8x128xf32>
    %220 = vector.extract_strided_slice %218 {offsets = [0, 0], sizes = [8, 128], strides = [1, 1]} : vector<8x384xf32> to vector<8x128xf32>
    %221 = arith.addf %219, %220 : vector<8x128xf32>
    %222 = arith.negf %221 : vector<8x128xf32>
    %223 = math.exp %222 : vector<8x128xf32>
    %cst_52 = arith.constant 1.000000e+00 : f32
    %224 = vector.broadcast %cst_52 : f32 to vector<8x128xf32>
    %225 = arith.addf %224, %223 : vector<8x128xf32>
    %226 = arith.divf %224, %225 : vector<8x128xf32>
    %227 = vector.extract_strided_slice %217 {offsets = [0, 128], sizes = [8, 128], strides = [1, 1]} : vector<8x384xf32> to vector<8x128xf32>
    %228 = vector.extract_strided_slice %218 {offsets = [0, 128], sizes = [8, 128], strides = [1, 1]} : vector<8x384xf32> to vector<8x128xf32>
    %229 = arith.addf %227, %228 : vector<8x128xf32>
    %230 = arith.negf %229 : vector<8x128xf32>
    %231 = math.exp %230 : vector<8x128xf32>
    %cst_53 = arith.constant 1.000000e+00 : f32
    %232 = vector.broadcast %cst_53 : f32 to vector<8x128xf32>
    %233 = arith.addf %232, %231 : vector<8x128xf32>
    %234 = arith.divf %232, %233 : vector<8x128xf32>
    %235 = vector.extract_strided_slice %217 {offsets = [0, 256], sizes = [8, 128], strides = [1, 1]} : vector<8x384xf32> to vector<8x128xf32>
    %236 = vector.extract_strided_slice %218 {offsets = [0, 256], sizes = [8, 128], strides = [1, 1]} : vector<8x384xf32> to vector<8x128xf32>
    %237 = arith.addf %236, %4 : vector<8x128xf32>
    %238 = arith.mulf %226, %237 : vector<8x128xf32>
    %239 = arith.addf %235, %238 : vector<8x128xf32>
    %240 = math.tanh %239 : vector<8x128xf32>
    %241 = arith.subf %186, %240 : vector<8x128xf32>
    %242 = arith.mulf %234, %241 : vector<8x128xf32>
    %243 = arith.addf %240, %242 : vector<8x128xf32>
    %c0_54 = arith.constant 0 : index
    %c0_55 = arith.constant 0 : index
    %244 = vector.load %arg6[%c0_54, %c0_55] : memref<128x384xf32, #tpu.memory_space<vmem>>, vector<128x384xf32>
    %cst_56 = arith.constant dense<0.000000e+00> : vector<8x384xf32>
    %245 = tpu.matmul %186, %244, %cst_56 {dimension_numbers = #tpu.dot_dimension_numbers<[1], [0], [0], [1], [0, 0, 1, 1], [], []>} : vector<8x128xf32>, vector<128x384xf32>, vector<8x384xf32> -> vector<8x384xf32>
    %246 = arith.addf %245, %10 : vector<8x384xf32>
    %cst_57 = arith.constant dense<0.000000e+00> : vector<8x384xf32>
    %247 = tpu.matmul %215, %1, %cst_57 {dimension_numbers = #tpu.dot_dimension_numbers<[1], [0], [0], [1], [0, 0, 1, 1], [], []>} : vector<8x128xf32>, vector<128x384xf32>, vector<8x384xf32> -> vector<8x384xf32>
    %248 = vector.extract_strided_slice %246 {offsets = [0, 0], sizes = [8, 128], strides = [1, 1]} : vector<8x384xf32> to vector<8x128xf32>
    %249 = vector.extract_strided_slice %247 {offsets = [0, 0], sizes = [8, 128], strides = [1, 1]} : vector<8x384xf32> to vector<8x128xf32>
    %250 = arith.addf %248, %249 : vector<8x128xf32>
    %251 = arith.negf %250 : vector<8x128xf32>
    %252 = math.exp %251 : vector<8x128xf32>
    %cst_58 = arith.constant 1.000000e+00 : f32
    %253 = vector.broadcast %cst_58 : f32 to vector<8x128xf32>
    %254 = arith.addf %253, %252 : vector<8x128xf32>
    %255 = arith.divf %253, %254 : vector<8x128xf32>
    %256 = vector.extract_strided_slice %246 {offsets = [0, 128], sizes = [8, 128], strides = [1, 1]} : vector<8x384xf32> to vector<8x128xf32>
    %257 = vector.extract_strided_slice %247 {offsets = [0, 128], sizes = [8, 128], strides = [1, 1]} : vector<8x384xf32> to vector<8x128xf32>
    %258 = arith.addf %256, %257 : vector<8x128xf32>
    %259 = arith.negf %258 : vector<8x128xf32>
    %260 = math.exp %259 : vector<8x128xf32>
    %cst_59 = arith.constant 1.000000e+00 : f32
    %261 = vector.broadcast %cst_59 : f32 to vector<8x128xf32>
    %262 = arith.addf %261, %260 : vector<8x128xf32>
    %263 = arith.divf %261, %262 : vector<8x128xf32>
    %264 = vector.extract_strided_slice %246 {offsets = [0, 256], sizes = [8, 128], strides = [1, 1]} : vector<8x384xf32> to vector<8x128xf32>
    %265 = vector.extract_strided_slice %247 {offsets = [0, 256], sizes = [8, 128], strides = [1, 1]} : vector<8x384xf32> to vector<8x128xf32>
    %266 = arith.addf %265, %7 : vector<8x128xf32>
    %267 = arith.mulf %255, %266 : vector<8x128xf32>
    %268 = arith.addf %264, %267 : vector<8x128xf32>
    %269 = math.tanh %268 : vector<8x128xf32>
    %270 = arith.subf %215, %269 : vector<8x128xf32>
    %271 = arith.mulf %263, %270 : vector<8x128xf32>
    %272 = arith.addf %269, %271 : vector<8x128xf32>
    %c24 = arith.constant 24 : index
    %c0_60 = arith.constant 0 : index
    %273 = vector.load %arg10[%c24, %c0_60] : memref<64x128xf32, #tpu.memory_space<vmem>>, vector<8x128xf32>
    tpu.vector_store %arg10[%c24, %c0_60], %272 {strides = array<i32>} : memref<64x128xf32, #tpu.memory_space<vmem>>, vector<8x128xf32>,
    %274 = vector.extract_strided_slice %16 {offsets = [40, 0], sizes = [8, 384], strides = [1, 1]} : vector<64x384xf32> to vector<8x384xf32>
    %cst_61 = arith.constant dense<0.000000e+00> : vector<8x384xf32>
    %275 = tpu.matmul %243, %0, %cst_61 {dimension_numbers = #tpu.dot_dimension_numbers<[1], [0], [0], [1], [0, 0, 1, 1], [], []>} : vector<8x128xf32>, vector<128x384xf32>, vector<8x384xf32> -> vector<8x384xf32>
    %276 = vector.extract_strided_slice %274 {offsets = [0, 0], sizes = [8, 128], strides = [1, 1]} : vector<8x384xf32> to vector<8x128xf32>
    %277 = vector.extract_strided_slice %275 {offsets = [0, 0], sizes = [8, 128], strides = [1, 1]} : vector<8x384xf32> to vector<8x128xf32>
    %278 = arith.addf %276, %277 : vector<8x128xf32>
    %279 = arith.negf %278 : vector<8x128xf32>
    %280 = math.exp %279 : vector<8x128xf32>
    %cst_62 = arith.constant 1.000000e+00 : f32
    %281 = vector.broadcast %cst_62 : f32 to vector<8x128xf32>
    %282 = arith.addf %281, %280 : vector<8x128xf32>
    %283 = arith.divf %281, %282 : vector<8x128xf32>
    %284 = vector.extract_strided_slice %274 {offsets = [0, 128], sizes = [8, 128], strides = [1, 1]} : vector<8x384xf32> to vector<8x128xf32>
    %285 = vector.extract_strided_slice %275 {offsets = [0, 128], sizes = [8, 128], strides = [1, 1]} : vector<8x384xf32> to vector<8x128xf32>
    %286 = arith.addf %284, %285 : vector<8x128xf32>
    %287 = arith.negf %286 : vector<8x128xf32>
    %288 = math.exp %287 : vector<8x128xf32>
    %cst_63 = arith.constant 1.000000e+00 : f32
    %289 = vector.broadcast %cst_63 : f32 to vector<8x128xf32>
    %290 = arith.addf %289, %288 : vector<8x128xf32>
    %291 = arith.divf %289, %290 : vector<8x128xf32>
    %292 = vector.extract_strided_slice %274 {offsets = [0, 256], sizes = [8, 128], strides = [1, 1]} : vector<8x384xf32> to vector<8x128xf32>
    %293 = vector.extract_strided_slice %275 {offsets = [0, 256], sizes = [8, 128], strides = [1, 1]} : vector<8x384xf32> to vector<8x128xf32>
    %294 = arith.addf %293, %4 : vector<8x128xf32>
    %295 = arith.mulf %283, %294 : vector<8x128xf32>
    %296 = arith.addf %292, %295 : vector<8x128xf32>
    %297 = math.tanh %296 : vector<8x128xf32>
    %298 = arith.subf %243, %297 : vector<8x128xf32>
    %299 = arith.mulf %291, %298 : vector<8x128xf32>
    %300 = arith.addf %297, %299 : vector<8x128xf32>
    %c0_64 = arith.constant 0 : index
    %c0_65 = arith.constant 0 : index
    %301 = vector.load %arg6[%c0_64, %c0_65] : memref<128x384xf32, #tpu.memory_space<vmem>>, vector<128x384xf32>
    %cst_66 = arith.constant dense<0.000000e+00> : vector<8x384xf32>
    %302 = tpu.matmul %243, %301, %cst_66 {dimension_numbers = #tpu.dot_dimension_numbers<[1], [0], [0], [1], [0, 0, 1, 1], [], []>} : vector<8x128xf32>, vector<128x384xf32>, vector<8x384xf32> -> vector<8x384xf32>
    %303 = arith.addf %302, %10 : vector<8x384xf32>
    %cst_67 = arith.constant dense<0.000000e+00> : vector<8x384xf32>
    %304 = tpu.matmul %272, %1, %cst_67 {dimension_numbers = #tpu.dot_dimension_numbers<[1], [0], [0], [1], [0, 0, 1, 1], [], []>} : vector<8x128xf32>, vector<128x384xf32>, vector<8x384xf32> -> vector<8x384xf32>
    %305 = vector.extract_strided_slice %303 {offsets = [0, 0], sizes = [8, 128], strides = [1, 1]} : vector<8x384xf32> to vector<8x128xf32>
    %306 = vector.extract_strided_slice %304 {offsets = [0, 0], sizes = [8, 128], strides = [1, 1]} : vector<8x384xf32> to vector<8x128xf32>
    %307 = arith.addf %305, %306 : vector<8x128xf32>
    %308 = arith.negf %307 : vector<8x128xf32>
    %309 = math.exp %308 : vector<8x128xf32>
    %cst_68 = arith.constant 1.000000e+00 : f32
    %310 = vector.broadcast %cst_68 : f32 to vector<8x128xf32>
    %311 = arith.addf %310, %309 : vector<8x128xf32>
    %312 = arith.divf %310, %311 : vector<8x128xf32>
    %313 = vector.extract_strided_slice %303 {offsets = [0, 128], sizes = [8, 128], strides = [1, 1]} : vector<8x384xf32> to vector<8x128xf32>
    %314 = vector.extract_strided_slice %304 {offsets = [0, 128], sizes = [8, 128], strides = [1, 1]} : vector<8x384xf32> to vector<8x128xf32>
    %315 = arith.addf %313, %314 : vector<8x128xf32>
    %316 = arith.negf %315 : vector<8x128xf32>
    %317 = math.exp %316 : vector<8x128xf32>
    %cst_69 = arith.constant 1.000000e+00 : f32
    %318 = vector.broadcast %cst_69 : f32 to vector<8x128xf32>
    %319 = arith.addf %318, %317 : vector<8x128xf32>
    %320 = arith.divf %318, %319 : vector<8x128xf32>
    %321 = vector.extract_strided_slice %303 {offsets = [0, 256], sizes = [8, 128], strides = [1, 1]} : vector<8x384xf32> to vector<8x128xf32>
    %322 = vector.extract_strided_slice %304 {offsets = [0, 256], sizes = [8, 128], strides = [1, 1]} : vector<8x384xf32> to vector<8x128xf32>
    %323 = arith.addf %322, %7 : vector<8x128xf32>
    %324 = arith.mulf %312, %323 : vector<8x128xf32>
    %325 = arith.addf %321, %324 : vector<8x128xf32>
    %326 = math.tanh %325 : vector<8x128xf32>
    %327 = arith.subf %272, %326 : vector<8x128xf32>
    %328 = arith.mulf %320, %327 : vector<8x128xf32>
    %329 = arith.addf %326, %328 : vector<8x128xf32>
    %c32 = arith.constant 32 : index
    %c0_70 = arith.constant 0 : index
    %330 = vector.load %arg10[%c32, %c0_70] : memref<64x128xf32, #tpu.memory_space<vmem>>, vector<8x128xf32>
    tpu.vector_store %arg10[%c32, %c0_70], %329 {strides = array<i32>} : memref<64x128xf32, #tpu.memory_space<vmem>>, vector<8x128xf32>,
    %331 = vector.extract_strided_slice %16 {offsets = [48, 0], sizes = [8, 384], strides = [1, 1]} : vector<64x384xf32> to vector<8x384xf32>
    %cst_71 = arith.constant dense<0.000000e+00> : vector<8x384xf32>
    %332 = tpu.matmul %300, %0, %cst_71 {dimension_numbers = #tpu.dot_dimension_numbers<[1], [0], [0], [1], [0, 0, 1, 1], [], []>} : vector<8x128xf32>, vector<128x384xf32>, vector<8x384xf32> -> vector<8x384xf32>
    %333 = vector.extract_strided_slice %331 {offsets = [0, 0], sizes = [8, 128], strides = [1, 1]} : vector<8x384xf32> to vector<8x128xf32>
    %334 = vector.extract_strided_slice %332 {offsets = [0, 0], sizes = [8, 128], strides = [1, 1]} : vector<8x384xf32> to vector<8x128xf32>
    %335 = arith.addf %333, %334 : vector<8x128xf32>
    %336 = arith.negf %335 : vector<8x128xf32>
    %337 = math.exp %336 : vector<8x128xf32>
    %cst_72 = arith.constant 1.000000e+00 : f32
    %338 = vector.broadcast %cst_72 : f32 to vector<8x128xf32>
    %339 = arith.addf %338, %337 : vector<8x128xf32>
    %340 = arith.divf %338, %339 : vector<8x128xf32>
    %341 = vector.extract_strided_slice %331 {offsets = [0, 128], sizes = [8, 128], strides = [1, 1]} : vector<8x384xf32> to vector<8x128xf32>
    %342 = vector.extract_strided_slice %332 {offsets = [0, 128], sizes = [8, 128], strides = [1, 1]} : vector<8x384xf32> to vector<8x128xf32>
    %343 = arith.addf %341, %342 : vector<8x128xf32>
    %344 = arith.negf %343 : vector<8x128xf32>
    %345 = math.exp %344 : vector<8x128xf32>
    %cst_73 = arith.constant 1.000000e+00 : f32
    %346 = vector.broadcast %cst_73 : f32 to vector<8x128xf32>
    %347 = arith.addf %346, %345 : vector<8x128xf32>
    %348 = arith.divf %346, %347 : vector<8x128xf32>
    %349 = vector.extract_strided_slice %331 {offsets = [0, 256], sizes = [8, 128], strides = [1, 1]} : vector<8x384xf32> to vector<8x128xf32>
    %350 = vector.extract_strided_slice %332 {offsets = [0, 256], sizes = [8, 128], strides = [1, 1]} : vector<8x384xf32> to vector<8x128xf32>
    %351 = arith.addf %350, %4 : vector<8x128xf32>
    %352 = arith.mulf %340, %351 : vector<8x128xf32>
    %353 = arith.addf %349, %352 : vector<8x128xf32>
    %354 = math.tanh %353 : vector<8x128xf32>
    %355 = arith.subf %300, %354 : vector<8x128xf32>
    %356 = arith.mulf %348, %355 : vector<8x128xf32>
    %357 = arith.addf %354, %356 : vector<8x128xf32>
    %c0_74 = arith.constant 0 : index
    %c0_75 = arith.constant 0 : index
    %358 = vector.load %arg6[%c0_74, %c0_75] : memref<128x384xf32, #tpu.memory_space<vmem>>, vector<128x384xf32>
    %cst_76 = arith.constant dense<0.000000e+00> : vector<8x384xf32>
    %359 = tpu.matmul %300, %358, %cst_76 {dimension_numbers = #tpu.dot_dimension_numbers<[1], [0], [0], [1], [0, 0, 1, 1], [], []>} : vector<8x128xf32>, vector<128x384xf32>, vector<8x384xf32> -> vector<8x384xf32>
    %360 = arith.addf %359, %10 : vector<8x384xf32>
    %cst_77 = arith.constant dense<0.000000e+00> : vector<8x384xf32>
    %361 = tpu.matmul %329, %1, %cst_77 {dimension_numbers = #tpu.dot_dimension_numbers<[1], [0], [0], [1], [0, 0, 1, 1], [], []>} : vector<8x128xf32>, vector<128x384xf32>, vector<8x384xf32> -> vector<8x384xf32>
    %362 = vector.extract_strided_slice %360 {offsets = [0, 0], sizes = [8, 128], strides = [1, 1]} : vector<8x384xf32> to vector<8x128xf32>
    %363 = vector.extract_strided_slice %361 {offsets = [0, 0], sizes = [8, 128], strides = [1, 1]} : vector<8x384xf32> to vector<8x128xf32>
    %364 = arith.addf %362, %363 : vector<8x128xf32>
    %365 = arith.negf %364 : vector<8x128xf32>
    %366 = math.exp %365 : vector<8x128xf32>
    %cst_78 = arith.constant 1.000000e+00 : f32
    %367 = vector.broadcast %cst_78 : f32 to vector<8x128xf32>
    %368 = arith.addf %367, %366 : vector<8x128xf32>
    %369 = arith.divf %367, %368 : vector<8x128xf32>
    %370 = vector.extract_strided_slice %360 {offsets = [0, 128], sizes = [8, 128], strides = [1, 1]} : vector<8x384xf32> to vector<8x128xf32>
    %371 = vector.extract_strided_slice %361 {offsets = [0, 128], sizes = [8, 128], strides = [1, 1]} : vector<8x384xf32> to vector<8x128xf32>
    %372 = arith.addf %370, %371 : vector<8x128xf32>
    %373 = arith.negf %372 : vector<8x128xf32>
    %374 = math.exp %373 : vector<8x128xf32>
    %cst_79 = arith.constant 1.000000e+00 : f32
    %375 = vector.broadcast %cst_79 : f32 to vector<8x128xf32>
    %376 = arith.addf %375, %374 : vector<8x128xf32>
    %377 = arith.divf %375, %376 : vector<8x128xf32>
    %378 = vector.extract_strided_slice %360 {offsets = [0, 256], sizes = [8, 128], strides = [1, 1]} : vector<8x384xf32> to vector<8x128xf32>
    %379 = vector.extract_strided_slice %361 {offsets = [0, 256], sizes = [8, 128], strides = [1, 1]} : vector<8x384xf32> to vector<8x128xf32>
    %380 = arith.addf %379, %7 : vector<8x128xf32>
    %381 = arith.mulf %369, %380 : vector<8x128xf32>
    %382 = arith.addf %378, %381 : vector<8x128xf32>
    %383 = math.tanh %382 : vector<8x128xf32>
    %384 = arith.subf %329, %383 : vector<8x128xf32>
    %385 = arith.mulf %377, %384 : vector<8x128xf32>
    %386 = arith.addf %383, %385 : vector<8x128xf32>
    %c40 = arith.constant 40 : index
    %c0_80 = arith.constant 0 : index
    %387 = vector.load %arg10[%c40, %c0_80] : memref<64x128xf32, #tpu.memory_space<vmem>>, vector<8x128xf32>
    tpu.vector_store %arg10[%c40, %c0_80], %386 {strides = array<i32>} : memref<64x128xf32, #tpu.memory_space<vmem>>, vector<8x128xf32>,
    %388 = vector.extract_strided_slice %16 {offsets = [56, 0], sizes = [8, 384], strides = [1, 1]} : vector<64x384xf32> to vector<8x384xf32>
    %cst_81 = arith.constant dense<0.000000e+00> : vector<8x384xf32>
    %389 = tpu.matmul %357, %0, %cst_81 {dimension_numbers = #tpu.dot_dimension_numbers<[1], [0], [0], [1], [0, 0, 1, 1], [], []>} : vector<8x128xf32>, vector<128x384xf32>, vector<8x384xf32> -> vector<8x384xf32>
    %390 = vector.extract_strided_slice %388 {offsets = [0, 0], sizes = [8, 128], strides = [1, 1]} : vector<8x384xf32> to vector<8x128xf32>
    %391 = vector.extract_strided_slice %389 {offsets = [0, 0], sizes = [8, 128], strides = [1, 1]} : vector<8x384xf32> to vector<8x128xf32>
    %392 = arith.addf %390, %391 : vector<8x128xf32>
    %393 = arith.negf %392 : vector<8x128xf32>
    %394 = math.exp %393 : vector<8x128xf32>
    %cst_82 = arith.constant 1.000000e+00 : f32
    %395 = vector.broadcast %cst_82 : f32 to vector<8x128xf32>
    %396 = arith.addf %395, %394 : vector<8x128xf32>
    %397 = arith.divf %395, %396 : vector<8x128xf32>
    %398 = vector.extract_strided_slice %388 {offsets = [0, 128], sizes = [8, 128], strides = [1, 1]} : vector<8x384xf32> to vector<8x128xf32>
    %399 = vector.extract_strided_slice %389 {offsets = [0, 128], sizes = [8, 128], strides = [1, 1]} : vector<8x384xf32> to vector<8x128xf32>
    %400 = arith.addf %398, %399 : vector<8x128xf32>
    %401 = arith.negf %400 : vector<8x128xf32>
    %402 = math.exp %401 : vector<8x128xf32>
    %cst_83 = arith.constant 1.000000e+00 : f32
    %403 = vector.broadcast %cst_83 : f32 to vector<8x128xf32>
    %404 = arith.addf %403, %402 : vector<8x128xf32>
    %405 = arith.divf %403, %404 : vector<8x128xf32>
    %406 = vector.extract_strided_slice %388 {offsets = [0, 256], sizes = [8, 128], strides = [1, 1]} : vector<8x384xf32> to vector<8x128xf32>
    %407 = vector.extract_strided_slice %389 {offsets = [0, 256], sizes = [8, 128], strides = [1, 1]} : vector<8x384xf32> to vector<8x128xf32>
    %408 = arith.addf %407, %4 : vector<8x128xf32>
    %409 = arith.mulf %397, %408 : vector<8x128xf32>
    %410 = arith.addf %406, %409 : vector<8x128xf32>
    %411 = math.tanh %410 : vector<8x128xf32>
    %412 = arith.subf %357, %411 : vector<8x128xf32>
    %413 = arith.mulf %405, %412 : vector<8x128xf32>
    %414 = arith.addf %411, %413 : vector<8x128xf32>
    %c0_84 = arith.constant 0 : index
    %c0_85 = arith.constant 0 : index
    %415 = vector.load %arg6[%c0_84, %c0_85] : memref<128x384xf32, #tpu.memory_space<vmem>>, vector<128x384xf32>
    %cst_86 = arith.constant dense<0.000000e+00> : vector<8x384xf32>
    %416 = tpu.matmul %357, %415, %cst_86 {dimension_numbers = #tpu.dot_dimension_numbers<[1], [0], [0], [1], [0, 0, 1, 1], [], []>} : vector<8x128xf32>, vector<128x384xf32>, vector<8x384xf32> -> vector<8x384xf32>
    %417 = arith.addf %416, %10 : vector<8x384xf32>
    %cst_87 = arith.constant dense<0.000000e+00> : vector<8x384xf32>
    %418 = tpu.matmul %386, %1, %cst_87 {dimension_numbers = #tpu.dot_dimension_numbers<[1], [0], [0], [1], [0, 0, 1, 1], [], []>} : vector<8x128xf32>, vector<128x384xf32>, vector<8x384xf32> -> vector<8x384xf32>
    %419 = vector.extract_strided_slice %417 {offsets = [0, 0], sizes = [8, 128], strides = [1, 1]} : vector<8x384xf32> to vector<8x128xf32>
    %420 = vector.extract_strided_slice %418 {offsets = [0, 0], sizes = [8, 128], strides = [1, 1]} : vector<8x384xf32> to vector<8x128xf32>
    %421 = arith.addf %419, %420 : vector<8x128xf32>
    %422 = arith.negf %421 : vector<8x128xf32>
    %423 = math.exp %422 : vector<8x128xf32>
    %cst_88 = arith.constant 1.000000e+00 : f32
    %424 = vector.broadcast %cst_88 : f32 to vector<8x128xf32>
    %425 = arith.addf %424, %423 : vector<8x128xf32>
    %426 = arith.divf %424, %425 : vector<8x128xf32>
    %427 = vector.extract_strided_slice %417 {offsets = [0, 128], sizes = [8, 128], strides = [1, 1]} : vector<8x384xf32> to vector<8x128xf32>
    %428 = vector.extract_strided_slice %418 {offsets = [0, 128], sizes = [8, 128], strides = [1, 1]} : vector<8x384xf32> to vector<8x128xf32>
    %429 = arith.addf %427, %428 : vector<8x128xf32>
    %430 = arith.negf %429 : vector<8x128xf32>
    %431 = math.exp %430 : vector<8x128xf32>
    %cst_89 = arith.constant 1.000000e+00 : f32
    %432 = vector.broadcast %cst_89 : f32 to vector<8x128xf32>
    %433 = arith.addf %432, %431 : vector<8x128xf32>
    %434 = arith.divf %432, %433 : vector<8x128xf32>
    %435 = vector.extract_strided_slice %417 {offsets = [0, 256], sizes = [8, 128], strides = [1, 1]} : vector<8x384xf32> to vector<8x128xf32>
    %436 = vector.extract_strided_slice %418 {offsets = [0, 256], sizes = [8, 128], strides = [1, 1]} : vector<8x384xf32> to vector<8x128xf32>
    %437 = arith.addf %436, %7 : vector<8x128xf32>
    %438 = arith.mulf %426, %437 : vector<8x128xf32>
    %439 = arith.addf %435, %438 : vector<8x128xf32>
    %440 = math.tanh %439 : vector<8x128xf32>
    %441 = arith.subf %386, %440 : vector<8x128xf32>
    %442 = arith.mulf %434, %441 : vector<8x128xf32>
    %443 = arith.addf %440, %442 : vector<8x128xf32>
    %c48 = arith.constant 48 : index
    %c0_90 = arith.constant 0 : index
    %444 = vector.load %arg10[%c48, %c0_90] : memref<64x128xf32, #tpu.memory_space<vmem>>, vector<8x128xf32>
    tpu.vector_store %arg10[%c48, %c0_90], %443 {strides = array<i32>} : memref<64x128xf32, #tpu.memory_space<vmem>>, vector<8x128xf32>,
    %c0_91 = arith.constant 0 : index
    %c0_92 = arith.constant 0 : index
    %445 = vector.load %arg6[%c0_91, %c0_92] : memref<128x384xf32, #tpu.memory_space<vmem>>, vector<128x384xf32>
    %cst_93 = arith.constant dense<0.000000e+00> : vector<8x384xf32>
    %446 = tpu.matmul %414, %445, %cst_93 {dimension_numbers = #tpu.dot_dimension_numbers<[1], [0], [0], [1], [0, 0, 1, 1], [], []>} : vector<8x128xf32>, vector<128x384xf32>, vector<8x384xf32> -> vector<8x384xf32>
    %447 = arith.addf %446, %10 : vector<8x384xf32>
    %cst_94 = arith.constant dense<0.000000e+00> : vector<8x384xf32>
    %448 = tpu.matmul %443, %1, %cst_94 {dimension_numbers = #tpu.dot_dimension_numbers<[1], [0], [0], [1], [0, 0, 1, 1], [], []>} : vector<8x128xf32>, vector<128x384xf32>, vector<8x384xf32> -> vector<8x384xf32>
    %449 = vector.extract_strided_slice %447 {offsets = [0, 0], sizes = [8, 128], strides = [1, 1]} : vector<8x384xf32> to vector<8x128xf32>
    %450 = vector.extract_strided_slice %448 {offsets = [0, 0], sizes = [8, 128], strides = [1, 1]} : vector<8x384xf32> to vector<8x128xf32>
    %451 = arith.addf %449, %450 : vector<8x128xf32>
    %452 = arith.negf %451 : vector<8x128xf32>
    %453 = math.exp %452 : vector<8x128xf32>
    %cst_95 = arith.constant 1.000000e+00 : f32
    %454 = vector.broadcast %cst_95 : f32 to vector<8x128xf32>
    %455 = arith.addf %454, %453 : vector<8x128xf32>
    %456 = arith.divf %454, %455 : vector<8x128xf32>
    %457 = vector.extract_strided_slice %447 {offsets = [0, 128], sizes = [8, 128], strides = [1, 1]} : vector<8x384xf32> to vector<8x128xf32>
    %458 = vector.extract_strided_slice %448 {offsets = [0, 128], sizes = [8, 128], strides = [1, 1]} : vector<8x384xf32> to vector<8x128xf32>
    %459 = arith.addf %457, %458 : vector<8x128xf32>
    %460 = arith.negf %459 : vector<8x128xf32>
    %461 = math.exp %460 : vector<8x128xf32>
    %cst_96 = arith.constant 1.000000e+00 : f32
    %462 = vector.broadcast %cst_96 : f32 to vector<8x128xf32>
    %463 = arith.addf %462, %461 : vector<8x128xf32>
    %464 = arith.divf %462, %463 : vector<8x128xf32>
    %465 = vector.extract_strided_slice %447 {offsets = [0, 256], sizes = [8, 128], strides = [1, 1]} : vector<8x384xf32> to vector<8x128xf32>
    %466 = vector.extract_strided_slice %448 {offsets = [0, 256], sizes = [8, 128], strides = [1, 1]} : vector<8x384xf32> to vector<8x128xf32>
    %467 = arith.addf %466, %7 : vector<8x128xf32>
    %468 = arith.mulf %456, %467 : vector<8x128xf32>
    %469 = arith.addf %465, %468 : vector<8x128xf32>
    %470 = math.tanh %469 : vector<8x128xf32>
    %471 = arith.subf %443, %470 : vector<8x128xf32>
    %472 = arith.mulf %464, %471 : vector<8x128xf32>
    %473 = arith.addf %470, %472 : vector<8x128xf32>
    %c56 = arith.constant 56 : index
    %c0_97 = arith.constant 0 : index
    %474 = vector.load %arg10[%c56, %c0_97] : memref<64x128xf32, #tpu.memory_space<vmem>>, vector<8x128xf32>
    tpu.vector_store %arg10[%c56, %c0_97], %473 {strides = array<i32>} : memref<64x128xf32, #tpu.memory_space<vmem>>, vector<8x128xf32>,
    return
  }
  func.func @transform_0(%arg0: i32) -> (i32, i32) {
    %c0_i32 = arith.constant 0 : i32
    %c0_i32_0 = arith.constant 0 : i32
    %c0_i32_1 = arith.constant 0 : i32
    return %c0_i32, %c0_i32_0 : i32, i32
  }
  func.func @transform_1(%arg0: i32) -> (i32, i32) {
    %c0_i32 = arith.constant 0 : i32
    %c0_i32_0 = arith.constant 0 : i32
    %c0_i32_1 = arith.constant 0 : i32
    return %c0_i32, %c0_i32_0 : i32, i32
  }
  func.func @transform_2(%arg0: i32) -> (i32, i32) {
    %c0_i32 = arith.constant 0 : i32
    %c0_i32_0 = arith.constant 0 : i32
    %c0_i32_1 = arith.constant 0 : i32
    return %c0_i32, %c0_i32_0 : i32, i32
  }
  func.func @transform_3(%arg0: i32) -> (i32, i32) {
    %c0_i32 = arith.constant 0 : i32
    %c0_i32_0 = arith.constant 0 : i32
    %c0_i32_1 = arith.constant 0 : i32
    return %c0_i32, %c0_i32_0 : i32, i32
  }
  func.func @transform_4(%arg0: i32) -> (i32, i32) {
    %c0_i32 = arith.constant 0 : i32
    %c0_i32_0 = arith.constant 0 : i32
    %c0_i32_1 = arith.constant 0 : i32
    return %c0_i32, %c0_i32_0 : i32, i32
  }
  func.func @transform_5(%arg0: i32) -> (i32, i32) {
    %c0_i32 = arith.constant 0 : i32
    %c0_i32_0 = arith.constant 0 : i32
    %c0_i32_1 = arith.constant 0 : i32
    return %c0_i32, %c0_i32_0 : i32, i32
  }
  func.func @transform_6(%arg0: i32) -> (i32, i32) {
    %c0_i32 = arith.constant 0 : i32
    %c0_i32_0 = arith.constant 0 : i32
    %c0_i32_1 = arith.constant 0 : i32
    return %c0_i32, %c0_i32_0 : i32, i32
  }
  func.func @transform_7(%arg0: i32) -> (i32, i32) {
    %c0_i32 = arith.constant 0 : i32
    %c0_i32_0 = arith.constant 0 : i32
    %c0_i32_1 = arith.constant 0 : i32
    return %c0_i32, %c0_i32_0 : i32, i32
  }
  func.func @transform_8(%arg0: i32) -> (i32, i32) {
    %c0_i32 = arith.constant 0 : i32
    %c0_i32_0 = arith.constant 0 : i32
    %c0_i32_1 = arith.constant 0 : i32
    return %c0_i32, %c0_i32_0 : i32, i32
  }
  func.func @transform_9(%arg0: i32) -> (i32, i32) {
    %c0_i32 = arith.constant 0 : i32
    %c0_i32_0 = arith.constant 0 : i32
    %c0_i32_1 = arith.constant 0 : i32
    return %c0_i32, %c0_i32_0 : i32, i32
  }
}

</mosaic_0001>

<llo_original>
// kernel: rnn_decoder_forward.1
$region0: #{rnn_decoder_forward.1}
  #allocation0 [shape = 'u32[]', space=smem, size = 0x4, offset = 0x4, fixed_abs, tag = 'smem constant byte address 0x4 - core index']
  #allocation1 [shape = 'u32[72,128]{1,0:T(1,128)}', space=vmem, size = 0x9000, scoped, tag = 'internal scratch']
  %s0 = inlined_call_operand.vmem [shape: f32[64,128], index: 0, kind: input, shape index: {}]
  %s1 = inlined_call_operand.hbm [shape: f32[128,384], index: 1, kind: input, shape index: {}]
  %s2 = inlined_call_operand.hbm [shape: f32[128,384], index: 2, kind: input, shape index: {}]
  %s3 = inlined_call_operand.vmem [shape: f32[1,384], index: 3, kind: input, shape index: {}]
  %s4 = inlined_call_operand.vmem [shape: f32[1,128], index: 4, kind: input, shape index: {}]
  %s5 = inlined_call_operand.hbm [shape: f32[128,384], index: 5, kind: input, shape index: {}]
  %s6 = inlined_call_operand.hbm [shape: f32[128,384], index: 6, kind: input, shape index: {}]
  %s7 = inlined_call_operand.vmem [shape: f32[1,384], index: 7, kind: input, shape index: {}]
  %s8 = inlined_call_operand.vmem [shape: f32[1,128], index: 8, kind: input, shape index: {}]
  %s9 = inlined_call_operand.vmem [shape: f32[64,128], index: 9, kind: output, shape index: {}]
  %s10 = sld [smem:[#allocation0]]
  $region62: #{rnn_decoder_forward.1} parent=0
    _
  %s12 = ssub.s32 1, %s10
  %s13 = scalar_select 0, %s12, %s10
  $region1: #{rnn_decoder_forward.1} parent=0
    #allocation2 [shape = 'u8[196608]{0}', space=vmem, size = 0x30000, scoped, tag = 'input window, operand 1, single buffered']
    #allocation3 [shape = 's32[1]{0}', space=sflag, size = 0x4, scoped, tag = 'scoped memory for rnn_decoder_forward.1']
    #allocation4 [shape = 'u8[196608]{0}', space=vmem, size = 0x30000, scoped, tag = 'input window, operand 2, single buffered']
    #allocation5 [shape = 's32[1]{0}', space=sflag, size = 0x4, scoped, tag = 'scoped memory for rnn_decoder_forward.1']
    #allocation6 [shape = 'u8[196608]{0}', space=vmem, size = 0x30000, scoped, tag = 'input window, operand 5, single buffered']
    #allocation7 [shape = 'u8[196608]{0}', space=vmem, size = 0x30000, scoped, tag = 'input window, operand 6, single buffered']
    #allocation8 [shape = 's32[1]{0}', space=sflag, size = 0x4, scoped, tag = 'scoped memory for rnn_decoder_forward.1']
    %14 = vsyncpa [#allocation3], 0
    %15 = vsyncpa [#allocation5], 0
    %16 = vsyncpa [#allocation8], 0
    // Predicated region
    $region2: #{rnn_decoder_forward.1} parent=1 // pred_check
      _
    $region3: #{rnn_decoder_forward.1} parent=1 // pred_check_branch
      %18 = sbr.rel (0) target = $region5
    $region4: #{rnn_decoder_forward.1} parent=1 // pred_region
      _
    $region5: #{rnn_decoder_forward.1} parent=1 // pred_fallthru
      _
    // Predicated region
    $region6: #{rnn_decoder_forward.1} parent=1 // pred_check
      _
    $region7: #{rnn_decoder_forward.1} parent=1 // pred_check_branch
      %20 = sbr.rel (0) target = $region9
    $region8: #{rnn_decoder_forward.1} parent=1 // pred_region
      %22 = vsyncadd [#allocation3], 0
      %s23 = sshll.u32 %s1, 4
      %s24 = int_to_ptr.hbm [resolvable:$true] %s23
      %s25 = sshll.u32 [#allocation2], 4
      %s26 = int_to_ptr.vmem [resolvable:$true] %s25
      %31 = dma.hbm_to_vmem [thread:$0]  %s24, 6144, %s26, [#allocation3], 384, 384, 24
    $region9: #{rnn_decoder_forward.1} parent=1 // pred_fallthru
      _
    // Predicated region
    $region10: #{rnn_decoder_forward.1} parent=1 // pred_check
      _
    $region11: #{rnn_decoder_forward.1} parent=1 // pred_check_branch
      %33 = sbr.rel (0) target = $region13
    $region12: #{rnn_decoder_forward.1} parent=1 // pred_region
      %35 = vsyncadd [#allocation5], 0
      %s36 = sshll.u32 %s2, 4
      %s37 = int_to_ptr.hbm [resolvable:$true] %s36
      %s38 = sshll.u32 [#allocation4], 4
      %s39 = int_to_ptr.vmem [resolvable:$true] %s38
      %44 = dma.hbm_to_vmem [thread:$0]  %s37, 6144, %s39, [#allocation5], 384, 384, 24
    $region13: #{rnn_decoder_forward.1} parent=1 // pred_fallthru
      _
    // Predicated region
    $region14: #{rnn_decoder_forward.1} parent=1 // pred_check
      _
    $region15: #{rnn_decoder_forward.1} parent=1 // pred_check_branch
      %46 = sbr.rel (0) target = $region17
    $region16: #{rnn_decoder_forward.1} parent=1 // pred_region
      _
    $region17: #{rnn_decoder_forward.1} parent=1 // pred_fallthru
      _
    // Predicated region
    $region18: #{rnn_decoder_forward.1} parent=1 // pred_check
      _
    $region19: #{rnn_decoder_forward.1} parent=1 // pred_check_branch
      %48 = sbr.rel (0) target = $region21
    $region20: #{rnn_decoder_forward.1} parent=1 // pred_region
      _
    $region21: #{rnn_decoder_forward.1} parent=1 // pred_fallthru
      _
    // Predicated region
    $region22: #{rnn_decoder_forward.1} parent=1 // pred_check
      _
    $region23: #{rnn_decoder_forward.1} parent=1 // pred_check_branch
      %50 = sbr.rel (0) target = $region25
    $region24: #{rnn_decoder_forward.1} parent=1 // pred_region
      %52 = vsyncadd [#allocation5], 0
      %s53 = sshll.u32 %s5, 4
      %s54 = int_to_ptr.hbm [resolvable:$true] %s53
      %s55 = sshll.u32 [#allocation6], 4
      %s56 = int_to_ptr.vmem [resolvable:$true] %s55
      %61 = dma.hbm_to_vmem [thread:$0]  %s54, 6144, %s56, [#allocation5], 384, 384, 24
    $region25: #{rnn_decoder_forward.1} parent=1 // pred_fallthru
      _
    // Predicated region
    $region26: #{rnn_decoder_forward.1} parent=1 // pred_check
      _
    $region27: #{rnn_decoder_forward.1} parent=1 // pred_check_branch
      %63 = sbr.rel (0) target = $region29
    $region28: #{rnn_decoder_forward.1} parent=1 // pred_region
      %65 = vsyncadd [#allocation8], 0
      %s66 = sshll.u32 %s6, 4
      %s67 = int_to_ptr.hbm [resolvable:$true] %s66
      %s68 = sshll.u32 [#allocation7], 4
      %s69 = int_to_ptr.vmem [resolvable:$true] %s68
      %74 = dma.hbm_to_vmem [thread:$0]  %s67, 6144, %s69, [#allocation8], 384, 384, 24
    $region29: #{rnn_decoder_forward.1} parent=1 // pred_fallthru
      _
    // Predicated region
    $region30: #{rnn_decoder_forward.1} parent=1 // pred_check
      _
    $region31: #{rnn_decoder_forward.1} parent=1 // pred_check_branch
      %76 = sbr.rel (0) target = $region33
    $region32: #{rnn_decoder_forward.1} parent=1 // pred_region
      _
    $region33: #{rnn_decoder_forward.1} parent=1 // pred_fallthru
      _
    // Predicated region
    $region34: #{rnn_decoder_forward.1} parent=1 // pred_check
      _
    $region35: #{rnn_decoder_forward.1} parent=1 // pred_check_branch
      %78 = sbr.rel (0) target = $region37
    $region36: #{rnn_decoder_forward.1} parent=1 // pred_region
      _
    $region37: #{rnn_decoder_forward.1} parent=1 // pred_fallthru
      _
    // Predicated region
    $region38: #{rnn_decoder_forward.1} parent=1 // pred_check
      _
    $region39: #{rnn_decoder_forward.1} parent=1 // pred_check_branch
      %80 = sbr.rel (0) target = $region41
    $region40: #{rnn_decoder_forward.1} parent=1 // pred_region
      %82 = dma.done [#allocation3], 6144
    $region41: #{rnn_decoder_forward.1} parent=1 // pred_fallthru
      _
    // Predicated region
    $region42: #{rnn_decoder_forward.1} parent=1 // pred_check
      _
    $region43: #{rnn_decoder_forward.1} parent=1 // pred_check_branch
      %84 = sbr.rel (0) target = $region45
    $region44: #{rnn_decoder_forward.1} parent=1 // pred_region
      %86 = dma.done [#allocation5], 6144
    $region45: #{rnn_decoder_forward.1} parent=1 // pred_fallthru
      _
    // Predicated region
    $region46: #{rnn_decoder_forward.1} parent=1 // pred_check
      _
    $region47: #{rnn_decoder_forward.1} parent=1 // pred_check_branch
      %88 = sbr.rel (0) target = $region49
    $region48: #{rnn_decoder_forward.1} parent=1 // pred_region
      %90 = dma.done [#allocation5], 6144
    $region49: #{rnn_decoder_forward.1} parent=1 // pred_fallthru
      _
    // Predicated region
    $region50: #{rnn_decoder_forward.1} parent=1 // pred_check
      _
    $region51: #{rnn_decoder_forward.1} parent=1 // pred_check_branch
      %92 = sbr.rel (0) target = $region53
    $region52: #{rnn_decoder_forward.1} parent=1 // pred_region
      %94 = dma.done [#allocation8], 6144
    $region53: #{rnn_decoder_forward.1} parent=1 // pred_fallthru
      _
    %v95 = vld [vmem:[#allocation4] sm:$0xff]
    %v96 = vld [vmem:[#allocation4 + $0x8] sm:$0xff]
    %v97 = vld [vmem:[#allocation4 + $0x10] sm:$0xff]
    %v98 = vld [vmem:[#allocation4 + $0x18] sm:$0xff]
    %v99 = vld [vmem:[#allocation4 + $0x20] sm:$0xff]
    %v100 = vld [vmem:[#allocation4 + $0x28] sm:$0xff]
    %v101 = vld [vmem:[#allocation4 + $0x30] sm:$0xff]
    %v102 = vld [vmem:[#allocation4 + $0x38] sm:$0xff]
    %v103 = vld [vmem:[#allocation4 + $0x40] sm:$0xff]
    %v104 = vld [vmem:[#allocation4 + $0x48] sm:$0xff]
    %v105 = vld [vmem:[#allocation4 + $0x50] sm:$0xff]
    %v106 = vld [vmem:[#allocation4 + $0x58] sm:$0xff]
    %v107 = vld [vmem:[#allocation4 + $0x60] sm:$0xff]
    %v108 = vld [vmem:[#allocation4 + $0x68] sm:$0xff]
    %v109 = vld [vmem:[#allocation4 + $0x70] sm:$0xff]
    %v110 = vld [vmem:[#allocation4 + $0x78] sm:$0xff]
    %v111 = vld [vmem:[#allocation4 + $0x80] sm:$0xff]
    %v112 = vld [vmem:[#allocation4 + $0x88] sm:$0xff]
    %v113 = vld [vmem:[#allocation4 + $0x90] sm:$0xff]
    %v114 = vld [vmem:[#allocation4 + $0x98] sm:$0xff]
    %v115 = vld [vmem:[#allocation4 + $0xa0] sm:$0xff]
    %v116 = vld [vmem:[#allocation4 + $0xa8] sm:$0xff]
    %v117 = vld [vmem:[#allocation4 + $0xb0] sm:$0xff]
    %v118 = vld [vmem:[#allocation4 + $0xb8] sm:$0xff]
    %v119 = vld [vmem:[#allocation4 + $0xc0] sm:$0xff]
    %v120 = vld [vmem:[#allocation4 + $0xc8] sm:$0xff]
    %v121 = vld [vmem:[#allocation4 + $0xd0] sm:$0xff]
    %v122 = vld [vmem:[#allocation4 + $0xd8] sm:$0xff]
    %v123 = vld [vmem:[#allocation4 + $0xe0] sm:$0xff]
    %v124 = vld [vmem:[#allocation4 + $0xe8] sm:$0xff]
    %v125 = vld [vmem:[#allocation4 + $0xf0] sm:$0xff]
    %v126 = vld [vmem:[#allocation4 + $0xf8] sm:$0xff]
    %v127 = vld [vmem:[#allocation4 + $0x100] sm:$0xff]
    %v128 = vld [vmem:[#allocation4 + $0x108] sm:$0xff]
    %v129 = vld [vmem:[#allocation4 + $0x110] sm:$0xff]
    %v130 = vld [vmem:[#allocation4 + $0x118] sm:$0xff]
    %v131 = vld [vmem:[#allocation4 + $0x120] sm:$0xff]
    %v132 = vld [vmem:[#allocation4 + $0x128] sm:$0xff]
    %v133 = vld [vmem:[#allocation4 + $0x130] sm:$0xff]
    %v134 = vld [vmem:[#allocation4 + $0x138] sm:$0xff]
    %v135 = vld [vmem:[#allocation4 + $0x140] sm:$0xff]
    %v136 = vld [vmem:[#allocation4 + $0x148] sm:$0xff]
    %v137 = vld [vmem:[#allocation4 + $0x150] sm:$0xff]
    %v138 = vld [vmem:[#allocation4 + $0x158] sm:$0xff]
    %v139 = vld [vmem:[#allocation4 + $0x160] sm:$0xff]
    %v140 = vld [vmem:[#allocation4 + $0x168] sm:$0xff]
    %v141 = vld [vmem:[#allocation4 + $0x170] sm:$0xff]
    %v142 = vld [vmem:[#allocation4 + $0x178] sm:$0xff]
    %v143 = vld [vmem:[#allocation7] sm:$0xff]
    %v144 = vld [vmem:[#allocation7 + $0x8] sm:$0xff]
    %v145 = vld [vmem:[#allocation7 + $0x10] sm:$0xff]
    %v146 = vld [vmem:[#allocation7 + $0x18] sm:$0xff]
    %v147 = vld [vmem:[#allocation7 + $0x20] sm:$0xff]
    %v148 = vld [vmem:[#allocation7 + $0x28] sm:$0xff]
    %v149 = vld [vmem:[#allocation7 + $0x30] sm:$0xff]
    %v150 = vld [vmem:[#allocation7 + $0x38] sm:$0xff]
    %v151 = vld [vmem:[#allocation7 + $0x40] sm:$0xff]
    %v152 = vld [vmem:[#allocation7 + $0x48] sm:$0xff]
    %v153 = vld [vmem:[#allocation7 + $0x50] sm:$0xff]
    %v154 = vld [vmem:[#allocation7 + $0x58] sm:$0xff]
    %v155 = vld [vmem:[#allocation7 + $0x60] sm:$0xff]
    %v156 = vld [vmem:[#allocation7 + $0x68] sm:$0xff]
    %v157 = vld [vmem:[#allocation7 + $0x70] sm:$0xff]
    %v158 = vld [vmem:[#allocation7 + $0x78] sm:$0xff]
    %v159 = vld [vmem:[#allocation7 + $0x80] sm:$0xff]
    %v160 = vld [vmem:[#allocation7 + $0x88] sm:$0xff]
    %v161 = vld [vmem:[#allocation7 + $0x90] sm:$0xff]
    %v162 = vld [vmem:[#allocation7 + $0x98] sm:$0xff]
    %v163 = vld [vmem:[#allocation7 + $0xa0] sm:$0xff]
    %v164 = vld [vmem:[#allocation7 + $0xa8] sm:$0xff]
    %v165 = vld [vmem:[#allocation7 + $0xb0] sm:$0xff]
    %v166 = vld [vmem:[#allocation7 + $0xb8] sm:$0xff]
    %v167 = vld [vmem:[#allocation7 + $0xc0] sm:$0xff]
    %v168 = vld [vmem:[#allocation7 + $0xc8] sm:$0xff]
    %v169 = vld [vmem:[#allocation7 + $0xd0] sm:$0xff]
    %v170 = vld [vmem:[#allocation7 + $0xd8] sm:$0xff]
    %v171 = vld [vmem:[#allocation7 + $0xe0] sm:$0xff]
    %v172 = vld [vmem:[#allocation7 + $0xe8] sm:$0xff]
    %v173 = vld [vmem:[#allocation7 + $0xf0] sm:$0xff]
    %v174 = vld [vmem:[#allocation7 + $0xf8] sm:$0xff]
    %v175 = vld [vmem:[#allocation7 + $0x100] sm:$0xff]
    %v176 = vld [vmem:[#allocation7 + $0x108] sm:$0xff]
    %v177 = vld [vmem:[#allocation7 + $0x110] sm:$0xff]
    %v178 = vld [vmem:[#allocation7 + $0x118] sm:$0xff]
    %v179 = vld [vmem:[#allocation7 + $0x120] sm:$0xff]
    %v180 = vld [vmem:[#allocation7 + $0x128] sm:$0xff]
    %v181 = vld [vmem:[#allocation7 + $0x130] sm:$0xff]
    %v182 = vld [vmem:[#allocation7 + $0x138] sm:$0xff]
    %v183 = vld [vmem:[#allocation7 + $0x140] sm:$0xff]
    %v184 = vld [vmem:[#allocation7 + $0x148] sm:$0xff]
    %v185 = vld [vmem:[#allocation7 + $0x150] sm:$0xff]
    %v186 = vld [vmem:[#allocation7 + $0x158] sm:$0xff]
    %v187 = vld [vmem:[#allocation7 + $0x160] sm:$0xff]
    %v188 = vld [vmem:[#allocation7 + $0x168] sm:$0xff]
    %v189 = vld [vmem:[#allocation7 + $0x170] sm:$0xff]
    %v190 = vld [vmem:[#allocation7 + $0x178] sm:$0xff]
    %v191 = vld [vmem:[%s4] sm:$0x1]
    %v193 = vperm.slane %v191, 0
    %v195 = vld [vmem:[%s8] sm:$0x1]
    %v197 = vperm.slane %v195, 0
    %v199 = vld [vmem:[%s7] sm:$0x7]
    %v201 = vperm.slane %v199, 0
    %v202 = vperm.slane %v199, 1
    %v203 = vperm.slane %v199, 2
    %v207 = vld [vmem:[%s0] sm:$0xff]
    %v208 = vld [vmem:[%s0 + $0x8] sm:$0xff]
    %v209 = vld [vmem:[%s0 + $0x10] sm:$0xff]
    %v210 = vld [vmem:[%s0 + $0x18] sm:$0xff]
    %v211 = vld [vmem:[%s0 + $0x20] sm:$0xff]
    %v212 = vld [vmem:[%s0 + $0x28] sm:$0xff]
    %v213 = vld [vmem:[%s0 + $0x30] sm:$0xff]
    %v214 = vld [vmem:[%s0 + $0x38] sm:$0xff]
    %v215 = vld [vmem:[#allocation2] sm:$0xff]
    %v216 = vld [vmem:[#allocation2 + $0x8] sm:$0xff]
    %v217 = vld [vmem:[#allocation2 + $0x10] sm:$0xff]
    %v218 = vld [vmem:[#allocation2 + $0x18] sm:$0xff]
    %v219 = vld [vmem:[#allocation2 + $0x20] sm:$0xff]
    %v220 = vld [vmem:[#allocation2 + $0x28] sm:$0xff]
    %v221 = vld [vmem:[#allocation2 + $0x30] sm:$0xff]
    %v222 = vld [vmem:[#allocation2 + $0x38] sm:$0xff]
    %v223 = vld [vmem:[#allocation2 + $0x40] sm:$0xff]
    %v224 = vld [vmem:[#allocation2 + $0x48] sm:$0xff]
    %v225 = vld [vmem:[#allocation2 + $0x50] sm:$0xff]
    %v226 = vld [vmem:[#allocation2 + $0x58] sm:$0xff]
    %v227 = vld [vmem:[#allocation2 + $0x60] sm:$0xff]
    %v228 = vld [vmem:[#allocation2 + $0x68] sm:$0xff]
    %v229 = vld [vmem:[#allocation2 + $0x70] sm:$0xff]
    %v230 = vld [vmem:[#allocation2 + $0x78] sm:$0xff]
    %v231 = vld [vmem:[#allocation2 + $0x80] sm:$0xff]
    %v232 = vld [vmem:[#allocation2 + $0x88] sm:$0xff]
    %v233 = vld [vmem:[#allocation2 + $0x90] sm:$0xff]
    %v234 = vld [vmem:[#allocation2 + $0x98] sm:$0xff]
    %v235 = vld [vmem:[#allocation2 + $0xa0] sm:$0xff]
    %v236 = vld [vmem:[#allocation2 + $0xa8] sm:$0xff]
    %v237 = vld [vmem:[#allocation2 + $0xb0] sm:$0xff]
    %v238 = vld [vmem:[#allocation2 + $0xb8] sm:$0xff]
    %v239 = vld [vmem:[#allocation2 + $0xc0] sm:$0xff]
    %v240 = vld [vmem:[#allocation2 + $0xc8] sm:$0xff]
    %v241 = vld [vmem:[#allocation2 + $0xd0] sm:$0xff]
    %v242 = vld [vmem:[#allocation2 + $0xd8] sm:$0xff]
    %v243 = vld [vmem:[#allocation2 + $0xe0] sm:$0xff]
    %v244 = vld [vmem:[#allocation2 + $0xe8] sm:$0xff]
    %v245 = vld [vmem:[#allocation2 + $0xf0] sm:$0xff]
    %v246 = vld [vmem:[#allocation2 + $0xf8] sm:$0xff]
    %v247 = vld [vmem:[#allocation2 + $0x100] sm:$0xff]
    %v248 = vld [vmem:[#allocation2 + $0x108] sm:$0xff]
    %v249 = vld [vmem:[#allocation2 + $0x110] sm:$0xff]
    %v250 = vld [vmem:[#allocation2 + $0x118] sm:$0xff]
    %v251 = vld [vmem:[#allocation2 + $0x120] sm:$0xff]
    %v252 = vld [vmem:[#allocation2 + $0x128] sm:$0xff]
    %v253 = vld [vmem:[#allocation2 + $0x130] sm:$0xff]
    %v254 = vld [vmem:[#allocation2 + $0x138] sm:$0xff]
    %v255 = vld [vmem:[#allocation2 + $0x140] sm:$0xff]
    %v256 = vld [vmem:[#allocation2 + $0x148] sm:$0xff]
    %v257 = vld [vmem:[#allocation2 + $0x150] sm:$0xff]
    %v258 = vld [vmem:[#allocation2 + $0x158] sm:$0xff]
    %v259 = vld [vmem:[#allocation2 + $0x160] sm:$0xff]
    %v260 = vld [vmem:[#allocation2 + $0x168] sm:$0xff]
    %v261 = vld [vmem:[#allocation2 + $0x170] sm:$0xff]
    %v262 = vld [vmem:[#allocation2 + $0x178] sm:$0xff]
    %v263 = vld [vmem:[%s3] sm:$0x7]
    %v265 = vperm.slane %v263, 0
    %v266 = vperm.slane %v263, 1
    %v267 = vperm.slane %v263, 2
    %271 = vmatpush.msra.mxu0 %v260
    %272 = vmatpush.msra.mxu0 %v257
    %273 = vmatpush.msra.mxu0 %v254
    %274 = vmatpush.msra.mxu0 %v251
    %275 = vmatpush.msra.mxu0 %v248
    %276 = vmatpush.msra.mxu0 %v245
    %277 = vmatpush.msra.mxu0 %v242
    %278 = vmatpush.msra.mxu0 %v239
    %279 = vmatpush.msra.mxu0 %v236
    %280 = vmatpush.msra.mxu0 %v233
    %281 = vmatpush.msra.mxu0 %v230
    %282 = vmatpush.msra.mxu0 %v227
    %283 = vmatpush.msra.mxu0 %v224
    %284 = vmatpush.msra.mxu0 %v221
    %285 = vmatpush.msra.mxu0 %v218
    %286 = vmatpush.msra.mxu0 %v215
    %287 = vmatmul.f32.gmra.mxu0 %v207
    %v288 = vpop.f32.mrf.mxu0
    %v289 = vadd.f32 %v265, %v288
    %290 = vmatmul.f32.gmra.mxu0 %v208
    %v291 = vpop.f32.mrf.mxu0
    %v292 = vadd.f32 %v265, %v291
    %293 = vmatmul.f32.gmra.mxu0 %v209
    %v294 = vpop.f32.mrf.mxu0
    %v295 = vadd.f32 %v265, %v294
    %296 = vmatmul.f32.gmra.mxu0 %v210
    %v297 = vpop.f32.mrf.mxu0
    %v298 = vadd.f32 %v265, %v297
    %299 = vmatmul.f32.gmra.mxu0 %v211
    %v300 = vpop.f32.mrf.mxu0
    %v301 = vadd.f32 %v265, %v300
    %302 = vmatmul.f32.gmra.mxu0 %v212
    %v303 = vpop.f32.mrf.mxu0
    %v304 = vadd.f32 %v265, %v303
    %305 = vmatmul.f32.gmra.mxu0 %v213
    %v306 = vpop.f32.mrf.mxu0
    %v307 = vadd.f32 %v265, %v306
    %308 = vmatmul.f32.gmra.mxu0 %v214
    %v309 = vpop.f32.mrf.mxu0
    %v310 = vadd.f32 %v265, %v309
    %311 = vdwg.mxu0
    %312 = vmatpush.msra.mxu0 %v261
    %313 = vmatpush.msra.mxu0 %v258
    %314 = vmatpush.msra.mxu0 %v255
    %315 = vmatpush.msra.mxu0 %v252
    %316 = vmatpush.msra.mxu0 %v249
    %317 = vmatpush.msra.mxu0 %v246
    %318 = vmatpush.msra.mxu0 %v243
    %319 = vmatpush.msra.mxu0 %v240
    %320 = vmatpush.msra.mxu0 %v237
    %321 = vmatpush.msra.mxu0 %v234
    %322 = vmatpush.msra.mxu0 %v231
    %323 = vmatpush.msra.mxu0 %v228
    %324 = vmatpush.msra.mxu0 %v225
    %325 = vmatpush.msra.mxu0 %v222
    %326 = vmatpush.msra.mxu0 %v219
    %327 = vmatpush.msra.mxu0 %v216
    %328 = vmatmul.f32.gmra.mxu0 %v207
    %v329 = vpop.f32.mrf.mxu0
    %v330 = vadd.f32 %v266, %v329
    %331 = vmatmul.f32.gmra.mxu0 %v208
    %v332 = vpop.f32.mrf.mxu0
    %v333 = vadd.f32 %v266, %v332
    %334 = vmatmul.f32.gmra.mxu0 %v209
    %v335 = vpop.f32.mrf.mxu0
    %v336 = vadd.f32 %v266, %v335
    %337 = vmatmul.f32.gmra.mxu0 %v210
    %v338 = vpop.f32.mrf.mxu0
    %v339 = vadd.f32 %v266, %v338
    %340 = vmatmul.f32.gmra.mxu0 %v211
    %v341 = vpop.f32.mrf.mxu0
    %v342 = vadd.f32 %v266, %v341
    %343 = vmatmul.f32.gmra.mxu0 %v212
    %v344 = vpop.f32.mrf.mxu0
    %v345 = vadd.f32 %v266, %v344
    %346 = vmatmul.f32.gmra.mxu0 %v213
    %v347 = vpop.f32.mrf.mxu0
    %v348 = vadd.f32 %v266, %v347
    %349 = vmatmul.f32.gmra.mxu0 %v214
    %v350 = vpop.f32.mrf.mxu0
    %v351 = vadd.f32 %v266, %v350
    %352 = vdwg.mxu0
    %353 = vmatpush.msra.mxu0 %v262
    %354 = vmatpush.msra.mxu0 %v259
    %355 = vmatpush.msra.mxu0 %v256
    %356 = vmatpush.msra.mxu0 %v253
    %357 = vmatpush.msra.mxu0 %v250
    %358 = vmatpush.msra.mxu0 %v247
    %359 = vmatpush.msra.mxu0 %v244
    %360 = vmatpush.msra.mxu0 %v241
    %361 = vmatpush.msra.mxu0 %v238
    %362 = vmatpush.msra.mxu0 %v235
    %363 = vmatpush.msra.mxu0 %v232
    %364 = vmatpush.msra.mxu0 %v229
    %365 = vmatpush.msra.mxu0 %v226
    %366 = vmatpush.msra.mxu0 %v223
    %367 = vmatpush.msra.mxu0 %v220
    %368 = vmatpush.msra.mxu0 %v217
    %369 = vmatmul.f32.gmra.mxu0 %v207
    %v370 = vpop.f32.mrf.mxu0
    %v371 = vadd.f32 %v267, %v370
    %372 = vmatmul.f32.gmra.mxu0 %v208
    %v373 = vpop.f32.mrf.mxu0
    %v374 = vadd.f32 %v267, %v373
    %375 = vmatmul.f32.gmra.mxu0 %v209
    %v376 = vpop.f32.mrf.mxu0
    %v377 = vadd.f32 %v267, %v376
    %378 = vmatmul.f32.gmra.mxu0 %v210
    %v379 = vpop.f32.mrf.mxu0
    %v380 = vadd.f32 %v267, %v379
    %381 = vmatmul.f32.gmra.mxu0 %v211
    %v382 = vpop.f32.mrf.mxu0
    %v383 = vadd.f32 %v267, %v382
    %384 = vmatmul.f32.gmra.mxu0 %v212
    %v385 = vpop.f32.mrf.mxu0
    %v386 = vadd.f32 %v267, %v385
    %387 = vmatmul.f32.gmra.mxu0 %v213
    %v388 = vpop.f32.mrf.mxu0
    %v389 = vadd.f32 %v267, %v388
    %390 = vmatmul.f32.gmra.mxu0 %v214
    %v391 = vpop.f32.mrf.mxu0
    %v392 = vadd.f32 %v267, %v391
    %393 = vdwg.mxu0
    %394 = vmatpush.msra.mxu0 %v140
    %395 = vmatpush.msra.mxu0 %v137
    %396 = vmatpush.msra.mxu0 %v134
    %397 = vmatpush.msra.mxu0 %v131
    %398 = vmatpush.msra.mxu0 %v128
    %399 = vmatpush.msra.mxu0 %v125
    %400 = vmatpush.msra.mxu0 %v122
    %401 = vmatpush.msra.mxu0 %v119
    %402 = vmatpush.msra.mxu0 %v116
    %403 = vmatpush.msra.mxu0 %v113
    %404 = vmatpush.msra.mxu0 %v110
    %405 = vmatpush.msra.mxu0 %v107
    %406 = vmatpush.msra.mxu0 %v104
    %407 = vmatpush.msra.mxu0 %v101
    %408 = vmatpush.msra.mxu0 %v98
    %409 = vmatpush.msra.mxu0 %v95
    %410 = vmatmul.f32.gmra.mxu0 0.0
    %v411 = vpop.f32.mrf.mxu0
    %v412 = vadd.f32 0.0, %v411
    %413 = vdwg.mxu0
    %414 = vmatpush.msra.mxu0 %v141
    %415 = vmatpush.msra.mxu0 %v138
    %416 = vmatpush.msra.mxu0 %v135
    %417 = vmatpush.msra.mxu0 %v132
    %418 = vmatpush.msra.mxu0 %v129
    %419 = vmatpush.msra.mxu0 %v126
    %420 = vmatpush.msra.mxu0 %v123
    %421 = vmatpush.msra.mxu0 %v120
    %422 = vmatpush.msra.mxu0 %v117
    %423 = vmatpush.msra.mxu0 %v114
    %424 = vmatpush.msra.mxu0 %v111
    %425 = vmatpush.msra.mxu0 %v108
    %426 = vmatpush.msra.mxu0 %v105
    %427 = vmatpush.msra.mxu0 %v102
    %428 = vmatpush.msra.mxu0 %v99
    %429 = vmatpush.msra.mxu0 %v96
    %430 = vmatmul.f32.gmra.mxu0 0.0
    %v431 = vpop.f32.mrf.mxu0
    %v432 = vadd.f32 0.0, %v431
    %433 = vdwg.mxu0
    %434 = vmatpush.msra.mxu0 %v142
    %435 = vmatpush.msra.mxu0 %v139
    %436 = vmatpush.msra.mxu0 %v136
    %437 = vmatpush.msra.mxu0 %v133
    %438 = vmatpush.msra.mxu0 %v130
    %439 = vmatpush.msra.mxu0 %v127
    %440 = vmatpush.msra.mxu0 %v124
    %441 = vmatpush.msra.mxu0 %v121
    %442 = vmatpush.msra.mxu0 %v118
    %443 = vmatpush.msra.mxu0 %v115
    %444 = vmatpush.msra.mxu0 %v112
    %445 = vmatpush.msra.mxu0 %v109
    %446 = vmatpush.msra.mxu0 %v106
    %447 = vmatpush.msra.mxu0 %v103
    %448 = vmatpush.msra.mxu0 %v100
    %449 = vmatpush.msra.mxu0 %v97
    %450 = vmatmul.f32.gmra.mxu0 0.0
    %v451 = vpop.f32.mrf.mxu0
    %v452 = vadd.f32 0.0, %v451
    %453 = vdwg.mxu0
    %v454 = vadd.f32 %v289, %v412
    %v455 = vxor.u32 %v454, 2147483648
    %v456 = vmul.f32 %v455, 1.442695
    %v457 = vpow.pop %v456
    %v458 = vadd.f32 %v457, 1.0
    %v459 = vrcp.pop %v458
    %v460 = vmul.f32 %v458, %v459
    %v461 = vsub.f32 1.0, %v460
    %v462 = vmul.f32 %v459, %v461
    %v463 = vadd.f32 %v459, %v462
    %vm464 = vweird.f32 %v458
    %vm465 = vweird.f32 %v459
    %vm466 = vmor %vm464, %vm465
    %v467 = vsel %vm466, %v459, %v463
    %v468 = vand.u32 2147483647, %v458
    %vm469 = vcmp.eq.f32.partialorder %v468, 8.507059e+37
    %v470 = vand.u32 %v458, 2147483648
    %v471 = vor.u32 1.1754944e-38, %v470
    %v472 = vsel %vm469, %v471, %v467
    %v473 = vmul.f32 1.0, %v472
    %v474 = vadd.f32 %v330, %v432
    %v475 = vxor.u32 %v474, 2147483648
    %v476 = vmul.f32 %v475, 1.442695
    %v477 = vpow.pop %v476
    %v478 = vadd.f32 %v477, 1.0
    %v479 = vrcp.pop %v478
    %v480 = vmul.f32 %v478, %v479
    %v481 = vsub.f32 1.0, %v480
    %v482 = vmul.f32 %v479, %v481
    %v483 = vadd.f32 %v479, %v482
    %vm484 = vweird.f32 %v478
    %vm485 = vweird.f32 %v479
    %vm486 = vmor %vm484, %vm485
    %v487 = vsel %vm486, %v479, %v483
    %v488 = vand.u32 2147483647, %v478
    %vm489 = vcmp.eq.f32.partialorder %v488, 8.507059e+37
    %v490 = vand.u32 %v478, 2147483648
    %v491 = vor.u32 1.1754944e-38, %v490
    %v492 = vsel %vm489, %v491, %v487
    %v493 = vmul.f32 1.0, %v492
    %v494 = vadd.f32 %v452, %v193
    %v495 = vmul.f32 %v473, %v494
    %v496 = vadd.f32 %v371, %v495
    %v497 = vtanh.pop %v496
    %v498 = vsub.f32 0.0, %v497
    %v499 = vmul.f32 %v493, %v498
    %v500 = vadd.f32 %v497, %v499
    %501 = vmatpush.msra.mxu0 %v140
    %502 = vmatpush.msra.mxu0 %v137
    %503 = vmatpush.msra.mxu0 %v134
    %504 = vmatpush.msra.mxu0 %v131
    %505 = vmatpush.msra.mxu0 %v128
    %506 = vmatpush.msra.mxu0 %v125
    %507 = vmatpush.msra.mxu0 %v122
    %508 = vmatpush.msra.mxu0 %v119
    %509 = vmatpush.msra.mxu0 %v116
    %510 = vmatpush.msra.mxu0 %v113
    %511 = vmatpush.msra.mxu0 %v110
    %512 = vmatpush.msra.mxu0 %v107
    %513 = vmatpush.msra.mxu0 %v104
    %514 = vmatpush.msra.mxu0 %v101
    %515 = vmatpush.msra.mxu0 %v98
    %516 = vmatpush.msra.mxu0 %v95
    %517 = vmatmul.f32.gmra.mxu0 %v500
    %v518 = vpop.f32.mrf.mxu0
    %v519 = vadd.f32 0.0, %v518
    %520 = vdwg.mxu0
    %521 = vmatpush.msra.mxu0 %v141
    %522 = vmatpush.msra.mxu0 %v138
    %523 = vmatpush.msra.mxu0 %v135
    %524 = vmatpush.msra.mxu0 %v132
    %525 = vmatpush.msra.mxu0 %v129
    %526 = vmatpush.msra.mxu0 %v126
    %527 = vmatpush.msra.mxu0 %v123
    %528 = vmatpush.msra.mxu0 %v120
    %529 = vmatpush.msra.mxu0 %v117
    %530 = vmatpush.msra.mxu0 %v114
    %531 = vmatpush.msra.mxu0 %v111
    %532 = vmatpush.msra.mxu0 %v108
    %533 = vmatpush.msra.mxu0 %v105
    %534 = vmatpush.msra.mxu0 %v102
    %535 = vmatpush.msra.mxu0 %v99
    %536 = vmatpush.msra.mxu0 %v96
    %537 = vmatmul.f32.gmra.mxu0 %v500
    %v538 = vpop.f32.mrf.mxu0
    %v539 = vadd.f32 0.0, %v538
    %540 = vdwg.mxu0
    %541 = vmatpush.msra.mxu0 %v142
    %542 = vmatpush.msra.mxu0 %v139
    %543 = vmatpush.msra.mxu0 %v136
    %544 = vmatpush.msra.mxu0 %v133
    %545 = vmatpush.msra.mxu0 %v130
    %546 = vmatpush.msra.mxu0 %v127
    %547 = vmatpush.msra.mxu0 %v124
    %548 = vmatpush.msra.mxu0 %v121
    %549 = vmatpush.msra.mxu0 %v118
    %550 = vmatpush.msra.mxu0 %v115
    %551 = vmatpush.msra.mxu0 %v112
    %552 = vmatpush.msra.mxu0 %v109
    %553 = vmatpush.msra.mxu0 %v106
    %554 = vmatpush.msra.mxu0 %v103
    %555 = vmatpush.msra.mxu0 %v100
    %556 = vmatpush.msra.mxu0 %v97
    %557 = vmatmul.f32.gmra.mxu0 %v500
    %v558 = vpop.f32.mrf.mxu0
    %v559 = vadd.f32 0.0, %v558
    %560 = vdwg.mxu0
    %v561 = vadd.f32 %v292, %v519
    %v562 = vxor.u32 %v561, 2147483648
    %v563 = vmul.f32 %v562, 1.442695
    %v564 = vpow.pop %v563
    %v565 = vadd.f32 %v564, 1.0
    %v566 = vrcp.pop %v565
    %v567 = vmul.f32 %v565, %v566
    %v568 = vsub.f32 1.0, %v567
    %v569 = vmul.f32 %v566, %v568
    %v570 = vadd.f32 %v566, %v569
    %vm571 = vweird.f32 %v565
    %vm572 = vweird.f32 %v566
    %vm573 = vmor %vm571, %vm572
    %v574 = vsel %vm573, %v566, %v570
    %v575 = vand.u32 2147483647, %v565
    %vm576 = vcmp.eq.f32.partialorder %v575, 8.507059e+37
    %v577 = vand.u32 %v565, 2147483648
    %v578 = vor.u32 1.1754944e-38, %v577
    %v579 = vsel %vm576, %v578, %v574
    %v580 = vmul.f32 1.0, %v579
    %v581 = vadd.f32 %v333, %v539
    %v582 = vxor.u32 %v581, 2147483648
    %v583 = vmul.f32 %v582, 1.442695
    %v584 = vpow.pop %v583
    %v585 = vadd.f32 %v584, 1.0
    %v586 = vrcp.pop %v585
    %v587 = vmul.f32 %v585, %v586
    %v588 = vsub.f32 1.0, %v587
    %v589 = vmul.f32 %v586, %v588
    %v590 = vadd.f32 %v586, %v589
    %vm591 = vweird.f32 %v585
    %vm592 = vweird.f32 %v586
    %vm593 = vmor %vm591, %vm592
    %v594 = vsel %vm593, %v586, %v590
    %v595 = vand.u32 2147483647, %v585
    %vm596 = vcmp.eq.f32.partialorder %v595, 8.507059e+37
    %v597 = vand.u32 %v585, 2147483648
    %v598 = vor.u32 1.1754944e-38, %v597
    %v599 = vsel %vm596, %v598, %v594
    %v600 = vmul.f32 1.0, %v599
    %v601 = vadd.f32 %v559, %v193
    %v602 = vmul.f32 %v580, %v601
    %v603 = vadd.f32 %v374, %v602
    %v604 = vtanh.pop %v603
    %v605 = vsub.f32 %v500, %v604
    %v606 = vmul.f32 %v600, %v605
    %v607 = vadd.f32 %v604, %v606
    %v608 = vld [vmem:[#allocation6] sm:$0xff]
    %v609 = vld [vmem:[#allocation6 + $0x8] sm:$0xff]
    %v610 = vld [vmem:[#allocation6 + $0x10] sm:$0xff]
    %v611 = vld [vmem:[#allocation6 + $0x18] sm:$0xff]
    %v612 = vld [vmem:[#allocation6 + $0x20] sm:$0xff]
    %v613 = vld [vmem:[#allocation6 + $0x28] sm:$0xff]
    %v614 = vld [vmem:[#allocation6 + $0x30] sm:$0xff]
    %v615 = vld [vmem:[#allocation6 + $0x38] sm:$0xff]
    %v616 = vld [vmem:[#allocation6 + $0x40] sm:$0xff]
    %v617 = vld [vmem:[#allocation6 + $0x48] sm:$0xff]
    %v618 = vld [vmem:[#allocation6 + $0x50] sm:$0xff]
    %v619 = vld [vmem:[#allocation6 + $0x58] sm:$0xff]
    %v620 = vld [vmem:[#allocation6 + $0x60] sm:$0xff]
    %v621 = vld [vmem:[#allocation6 + $0x68] sm:$0xff]
    %v622 = vld [vmem:[#allocation6 + $0x70] sm:$0xff]
    %v623 = vld [vmem:[#allocation6 + $0x78] sm:$0xff]
    %v624 = vld [vmem:[#allocation6 + $0x80] sm:$0xff]
    %v625 = vld [vmem:[#allocation6 + $0x88] sm:$0xff]
    %v626 = vld [vmem:[#allocation6 + $0x90] sm:$0xff]
    %v627 = vld [vmem:[#allocation6 + $0x98] sm:$0xff]
    %v628 = vld [vmem:[#allocation6 + $0xa0] sm:$0xff]
    %v629 = vld [vmem:[#allocation6 + $0xa8] sm:$0xff]
    %v630 = vld [vmem:[#allocation6 + $0xb0] sm:$0xff]
    %v631 = vld [vmem:[#allocation6 + $0xb8] sm:$0xff]
    %v632 = vld [vmem:[#allocation6 + $0xc0] sm:$0xff]
    %v633 = vld [vmem:[#allocation6 + $0xc8] sm:$0xff]
    %v634 = vld [vmem:[#allocation6 + $0xd0] sm:$0xff]
    %v635 = vld [vmem:[#allocation6 + $0xd8] sm:$0xff]
    %v636 = vld [vmem:[#allocation6 + $0xe0] sm:$0xff]
    %v637 = vld [vmem:[#allocation6 + $0xe8] sm:$0xff]
    %v638 = vld [vmem:[#allocation6 + $0xf0] sm:$0xff]
    %v639 = vld [vmem:[#allocation6 + $0xf8] sm:$0xff]
    %v640 = vld [vmem:[#allocation6 + $0x100] sm:$0xff]
    %v641 = vld [vmem:[#allocation6 + $0x108] sm:$0xff]
    %v642 = vld [vmem:[#allocation6 + $0x110] sm:$0xff]
    %v643 = vld [vmem:[#allocation6 + $0x118] sm:$0xff]
    %v644 = vld [vmem:[#allocation6 + $0x120] sm:$0xff]
    %v645 = vld [vmem:[#allocation6 + $0x128] sm:$0xff]
    %v646 = vld [vmem:[#allocation6 + $0x130] sm:$0xff]
    %v647 = vld [vmem:[#allocation6 + $0x138] sm:$0xff]
    %v648 = vld [vmem:[#allocation6 + $0x140] sm:$0xff]
    %v649 = vld [vmem:[#allocation6 + $0x148] sm:$0xff]
    %v650 = vld [vmem:[#allocation6 + $0x150] sm:$0xff]
    %v651 = vld [vmem:[#allocation6 + $0x158] sm:$0xff]
    %v652 = vld [vmem:[#allocation6 + $0x160] sm:$0xff]
    %v653 = vld [vmem:[#allocation6 + $0x168] sm:$0xff]
    %v654 = vld [vmem:[#allocation6 + $0x170] sm:$0xff]
    %v655 = vld [vmem:[#allocation6 + $0x178] sm:$0xff]
    %656 = vmatpush.msra.mxu0 %v653
    %657 = vmatpush.msra.mxu0 %v650
    %658 = vmatpush.msra.mxu0 %v647
    %659 = vmatpush.msra.mxu0 %v644
    %660 = vmatpush.msra.mxu0 %v641
    %661 = vmatpush.msra.mxu0 %v638
    %662 = vmatpush.msra.mxu0 %v635
    %663 = vmatpush.msra.mxu0 %v632
    %664 = vmatpush.msra.mxu0 %v629
    %665 = vmatpush.msra.mxu0 %v626
    %666 = vmatpush.msra.mxu0 %v623
    %667 = vmatpush.msra.mxu0 %v620
    %668 = vmatpush.msra.mxu0 %v617
    %669 = vmatpush.msra.mxu0 %v614
    %670 = vmatpush.msra.mxu0 %v611
    %671 = vmatpush.msra.mxu0 %v608
    %672 = vmatmul.f32.gmra.mxu0 %v500
    %v673 = vpop.f32.mrf.mxu0
    %v674 = vadd.f32 %v201, %v673
    %675 = vdwg.mxu0
    %676 = vmatpush.msra.mxu0 %v654
    %677 = vmatpush.msra.mxu0 %v651
    %678 = vmatpush.msra.mxu0 %v648
    %679 = vmatpush.msra.mxu0 %v645
    %680 = vmatpush.msra.mxu0 %v642
    %681 = vmatpush.msra.mxu0 %v639
    %682 = vmatpush.msra.mxu0 %v636
    %683 = vmatpush.msra.mxu0 %v633
    %684 = vmatpush.msra.mxu0 %v630
    %685 = vmatpush.msra.mxu0 %v627
    %686 = vmatpush.msra.mxu0 %v624
    %687 = vmatpush.msra.mxu0 %v621
    %688 = vmatpush.msra.mxu0 %v618
    %689 = vmatpush.msra.mxu0 %v615
    %690 = vmatpush.msra.mxu0 %v612
    %691 = vmatpush.msra.mxu0 %v609
    %692 = vmatmul.f32.gmra.mxu0 %v500
    %v693 = vpop.f32.mrf.mxu0
    %v694 = vadd.f32 %v202, %v693
    %695 = vdwg.mxu0
    %696 = vmatpush.msra.mxu0 %v655
    %697 = vmatpush.msra.mxu0 %v652
    %698 = vmatpush.msra.mxu0 %v649
    %699 = vmatpush.msra.mxu0 %v646
    %700 = vmatpush.msra.mxu0 %v643
    %701 = vmatpush.msra.mxu0 %v640
    %702 = vmatpush.msra.mxu0 %v637
    %703 = vmatpush.msra.mxu0 %v634
    %704 = vmatpush.msra.mxu0 %v631
    %705 = vmatpush.msra.mxu0 %v628
    %706 = vmatpush.msra.mxu0 %v625
    %707 = vmatpush.msra.mxu0 %v622
    %708 = vmatpush.msra.mxu0 %v619
    %709 = vmatpush.msra.mxu0 %v616
    %710 = vmatpush.msra.mxu0 %v613
    %711 = vmatpush.msra.mxu0 %v610
    %712 = vmatmul.f32.gmra.mxu0 %v500
    %v713 = vpop.f32.mrf.mxu0
    %v714 = vadd.f32 %v203, %v713
    %715 = vdwg.mxu0
    %716 = vmatpush.msra.mxu0 %v188
    %717 = vmatpush.msra.mxu0 %v185
    %718 = vmatpush.msra.mxu0 %v182
    %719 = vmatpush.msra.mxu0 %v179
    %720 = vmatpush.msra.mxu0 %v176
    %721 = vmatpush.msra.mxu0 %v173
    %722 = vmatpush.msra.mxu0 %v170
    %723 = vmatpush.msra.mxu0 %v167
    %724 = vmatpush.msra.mxu0 %v164
    %725 = vmatpush.msra.mxu0 %v161
    %726 = vmatpush.msra.mxu0 %v158
    %727 = vmatpush.msra.mxu0 %v155
    %728 = vmatpush.msra.mxu0 %v152
    %729 = vmatpush.msra.mxu0 %v149
    %730 = vmatpush.msra.mxu0 %v146
    %731 = vmatpush.msra.mxu0 %v143
    %732 = vmatmul.f32.gmra.mxu0 0.0
    %v733 = vpop.f32.mrf.mxu0
    %v734 = vadd.f32 0.0, %v733
    %735 = vdwg.mxu0
    %736 = vmatpush.msra.mxu0 %v189
    %737 = vmatpush.msra.mxu0 %v186
    %738 = vmatpush.msra.mxu0 %v183
    %739 = vmatpush.msra.mxu0 %v180
    %740 = vmatpush.msra.mxu0 %v177
    %741 = vmatpush.msra.mxu0 %v174
    %742 = vmatpush.msra.mxu0 %v171
    %743 = vmatpush.msra.mxu0 %v168
    %744 = vmatpush.msra.mxu0 %v165
    %745 = vmatpush.msra.mxu0 %v162
    %746 = vmatpush.msra.mxu0 %v159
    %747 = vmatpush.msra.mxu0 %v156
    %748 = vmatpush.msra.mxu0 %v153
    %749 = vmatpush.msra.mxu0 %v150
    %750 = vmatpush.msra.mxu0 %v147
    %751 = vmatpush.msra.mxu0 %v144
    %752 = vmatmul.f32.gmra.mxu0 0.0
    %v753 = vpop.f32.mrf.mxu0
    %v754 = vadd.f32 0.0, %v753
    %755 = vdwg.mxu0
    %756 = vmatpush.msra.mxu0 %v190
    %757 = vmatpush.msra.mxu0 %v187
    %758 = vmatpush.msra.mxu0 %v184
    %759 = vmatpush.msra.mxu0 %v181
    %760 = vmatpush.msra.mxu0 %v178
    %761 = vmatpush.msra.mxu0 %v175
    %762 = vmatpush.msra.mxu0 %v172
    %763 = vmatpush.msra.mxu0 %v169
    %764 = vmatpush.msra.mxu0 %v166
    %765 = vmatpush.msra.mxu0 %v163
    %766 = vmatpush.msra.mxu0 %v160
    %767 = vmatpush.msra.mxu0 %v157
    %768 = vmatpush.msra.mxu0 %v154
    %769 = vmatpush.msra.mxu0 %v151
    %770 = vmatpush.msra.mxu0 %v148
    %771 = vmatpush.msra.mxu0 %v145
    %772 = vmatmul.f32.gmra.mxu0 0.0
    %v773 = vpop.f32.mrf.mxu0
    %v774 = vadd.f32 0.0, %v773
    %775 = vdwg.mxu0
    %v776 = vadd.f32 %v674, %v734
    %v777 = vxor.u32 %v776, 2147483648
    %v778 = vmul.f32 %v777, 1.442695
    %v779 = vpow.pop %v778
    %v780 = vadd.f32 %v779, 1.0
    %v781 = vrcp.pop %v780
    %v782 = vmul.f32 %v780, %v781
    %v783 = vsub.f32 1.0, %v782
    %v784 = vmul.f32 %v781, %v783
    %v785 = vadd.f32 %v781, %v784
    %vm786 = vweird.f32 %v780
    %vm787 = vweird.f32 %v781
    %vm788 = vmor %vm786, %vm787
    %v789 = vsel %vm788, %v781, %v785
    %v790 = vand.u32 2147483647, %v780
    %vm791 = vcmp.eq.f32.partialorder %v790, 8.507059e+37
    %v792 = vand.u32 %v780, 2147483648
    %v793 = vor.u32 1.1754944e-38, %v792
    %v794 = vsel %vm791, %v793, %v789
    %v795 = vmul.f32 1.0, %v794
    %v796 = vadd.f32 %v694, %v754
    %v797 = vxor.u32 %v796, 2147483648
    %v798 = vmul.f32 %v797, 1.442695
    %v799 = vpow.pop %v798
    %v800 = vadd.f32 %v799, 1.0
    %v801 = vrcp.pop %v800
    %v802 = vmul.f32 %v800, %v801
    %v803 = vsub.f32 1.0, %v802
    %v804 = vmul.f32 %v801, %v803
    %v805 = vadd.f32 %v801, %v804
    %vm806 = vweird.f32 %v800
    %vm807 = vweird.f32 %v801
    %vm808 = vmor %vm806, %vm807
    %v809 = vsel %vm808, %v801, %v805
    %v810 = vand.u32 2147483647, %v800
    %vm811 = vcmp.eq.f32.partialorder %v810, 8.507059e+37
    %v812 = vand.u32 %v800, 2147483648
    %v813 = vor.u32 1.1754944e-38, %v812
    %v814 = vsel %vm811, %v813, %v809
    %v815 = vmul.f32 1.0, %v814
    %v816 = vadd.f32 %v774, %v197
    %v817 = vmul.f32 %v795, %v816
    %v818 = vadd.f32 %v714, %v817
    %v819 = vtanh.pop %v818
    %v820 = vsub.f32 0.0, %v819
    %v821 = vmul.f32 %v815, %v820
    %v822 = vadd.f32 %v819, %v821
    %823 = vst [vmem:[%s9] sm:$0xff] %v822
    %824 = vmatpush.msra.mxu0 %v140
    %825 = vmatpush.msra.mxu0 %v137
    %826 = vmatpush.msra.mxu0 %v134
    %827 = vmatpush.msra.mxu0 %v131
    %828 = vmatpush.msra.mxu0 %v128
    %829 = vmatpush.msra.mxu0 %v125
    %830 = vmatpush.msra.mxu0 %v122
    %831 = vmatpush.msra.mxu0 %v119
    %832 = vmatpush.msra.mxu0 %v116
    %833 = vmatpush.msra.mxu0 %v113
    %834 = vmatpush.msra.mxu0 %v110
    %835 = vmatpush.msra.mxu0 %v107
    %836 = vmatpush.msra.mxu0 %v104
    %837 = vmatpush.msra.mxu0 %v101
    %838 = vmatpush.msra.mxu0 %v98
    %839 = vmatpush.msra.mxu0 %v95
    %840 = vmatmul.f32.gmra.mxu0 %v607
    %v841 = vpop.f32.mrf.mxu0
    %v842 = vadd.f32 0.0, %v841
    %843 = vdwg.mxu0
    %844 = vmatpush.msra.mxu0 %v141
    %845 = vmatpush.msra.mxu0 %v138
    %846 = vmatpush.msra.mxu0 %v135
    %847 = vmatpush.msra.mxu0 %v132
    %848 = vmatpush.msra.mxu0 %v129
    %849 = vmatpush.msra.mxu0 %v126
    %850 = vmatpush.msra.mxu0 %v123
    %851 = vmatpush.msra.mxu0 %v120
    %852 = vmatpush.msra.mxu0 %v117
    %853 = vmatpush.msra.mxu0 %v114
    %854 = vmatpush.msra.mxu0 %v111
    %855 = vmatpush.msra.mxu0 %v108
    %856 = vmatpush.msra.mxu0 %v105
    %857 = vmatpush.msra.mxu0 %v102
    %858 = vmatpush.msra.mxu0 %v99
    %859 = vmatpush.msra.mxu0 %v96
    %860 = vmatmul.f32.gmra.mxu0 %v607
    %v861 = vpop.f32.mrf.mxu0
    %v862 = vadd.f32 0.0, %v861
    %863 = vdwg.mxu0
    %864 = vmatpush.msra.mxu0 %v142
    %865 = vmatpush.msra.mxu0 %v139
    %866 = vmatpush.msra.mxu0 %v136
    %867 = vmatpush.msra.mxu0 %v133
    %868 = vmatpush.msra.mxu0 %v130
    %869 = vmatpush.msra.mxu0 %v127
    %870 = vmatpush.msra.mxu0 %v124
    %871 = vmatpush.msra.mxu0 %v121
    %872 = vmatpush.msra.mxu0 %v118
    %873 = vmatpush.msra.mxu0 %v115
    %874 = vmatpush.msra.mxu0 %v112
    %875 = vmatpush.msra.mxu0 %v109
    %876 = vmatpush.msra.mxu0 %v106
    %877 = vmatpush.msra.mxu0 %v103
    %878 = vmatpush.msra.mxu0 %v100
    %879 = vmatpush.msra.mxu0 %v97
    %880 = vmatmul.f32.gmra.mxu0 %v607
    %v881 = vpop.f32.mrf.mxu0
    %v882 = vadd.f32 0.0, %v881
    %883 = vdwg.mxu0
    %v884 = vadd.f32 %v295, %v842
    %v885 = vxor.u32 %v884, 2147483648
    %v886 = vmul.f32 %v885, 1.442695
    %v887 = vpow.pop %v886
    %v888 = vadd.f32 %v887, 1.0
    %v889 = vrcp.pop %v888
    %v890 = vmul.f32 %v888, %v889
    %v891 = vsub.f32 1.0, %v890
    %v892 = vmul.f32 %v889, %v891
    %v893 = vadd.f32 %v889, %v892
    %vm894 = vweird.f32 %v888
    %vm895 = vweird.f32 %v889
    %vm896 = vmor %vm894, %vm895
    %v897 = vsel %vm896, %v889, %v893
    %v898 = vand.u32 2147483647, %v888
    %vm899 = vcmp.eq.f32.partialorder %v898, 8.507059e+37
    %v900 = vand.u32 %v888, 2147483648
    %v901 = vor.u32 1.1754944e-38, %v900
    %v902 = vsel %vm899, %v901, %v897
    %v903 = vmul.f32 1.0, %v902
    %v904 = vadd.f32 %v336, %v862
    %v905 = vxor.u32 %v904, 2147483648
    %v906 = vmul.f32 %v905, 1.442695
    %v907 = vpow.pop %v906
    %v908 = vadd.f32 %v907, 1.0
    %v909 = vrcp.pop %v908
    %v910 = vmul.f32 %v908, %v909
    %v911 = vsub.f32 1.0, %v910
    %v912 = vmul.f32 %v909, %v911
    %v913 = vadd.f32 %v909, %v912
    %vm914 = vweird.f32 %v908
    %vm915 = vweird.f32 %v909
    %vm916 = vmor %vm914, %vm915
    %v917 = vsel %vm916, %v909, %v913
    %v918 = vand.u32 2147483647, %v908
    %vm919 = vcmp.eq.f32.partialorder %v918, 8.507059e+37
    %v920 = vand.u32 %v908, 2147483648
    %v921 = vor.u32 1.1754944e-38, %v920
    %v922 = vsel %vm919, %v921, %v917
    %v923 = vmul.f32 1.0, %v922
    %v924 = vadd.f32 %v882, %v193
    %v925 = vmul.f32 %v903, %v924
    %v926 = vadd.f32 %v377, %v925
    %v927 = vtanh.pop %v926
    %v928 = vsub.f32 %v607, %v927
    %v929 = vmul.f32 %v923, %v928
    %v930 = vadd.f32 %v927, %v929
    %v931 = vld [vmem:[#allocation6] sm:$0xff]
    %v932 = vld [vmem:[#allocation6 + $0x8] sm:$0xff]
    %v933 = vld [vmem:[#allocation6 + $0x10] sm:$0xff]
    %v934 = vld [vmem:[#allocation6 + $0x18] sm:$0xff]
    %v935 = vld [vmem:[#allocation6 + $0x20] sm:$0xff]
    %v936 = vld [vmem:[#allocation6 + $0x28] sm:$0xff]
    %v937 = vld [vmem:[#allocation6 + $0x30] sm:$0xff]
    %v938 = vld [vmem:[#allocation6 + $0x38] sm:$0xff]
    %v939 = vld [vmem:[#allocation6 + $0x40] sm:$0xff]
    %v940 = vld [vmem:[#allocation6 + $0x48] sm:$0xff]
    %v941 = vld [vmem:[#allocation6 + $0x50] sm:$0xff]
    %v942 = vld [vmem:[#allocation6 + $0x58] sm:$0xff]
    %v943 = vld [vmem:[#allocation6 + $0x60] sm:$0xff]
    %v944 = vld [vmem:[#allocation6 + $0x68] sm:$0xff]
    %v945 = vld [vmem:[#allocation6 + $0x70] sm:$0xff]
    %v946 = vld [vmem:[#allocation6 + $0x78] sm:$0xff]
    %v947 = vld [vmem:[#allocation6 + $0x80] sm:$0xff]
    %v948 = vld [vmem:[#allocation6 + $0x88] sm:$0xff]
    %v949 = vld [vmem:[#allocation6 + $0x90] sm:$0xff]
    %v950 = vld [vmem:[#allocation6 + $0x98] sm:$0xff]
    %v951 = vld [vmem:[#allocation6 + $0xa0] sm:$0xff]
    %v952 = vld [vmem:[#allocation6 + $0xa8] sm:$0xff]
    %v953 = vld [vmem:[#allocation6 + $0xb0] sm:$0xff]
    %v954 = vld [vmem:[#allocation6 + $0xb8] sm:$0xff]
    %v955 = vld [vmem:[#allocation6 + $0xc0] sm:$0xff]
    %v956 = vld [vmem:[#allocation6 + $0xc8] sm:$0xff]
    %v957 = vld [vmem:[#allocation6 + $0xd0] sm:$0xff]
    %v958 = vld [vmem:[#allocation6 + $0xd8] sm:$0xff]
    %v959 = vld [vmem:[#allocation6 + $0xe0] sm:$0xff]
    %v960 = vld [vmem:[#allocation6 + $0xe8] sm:$0xff]
    %v961 = vld [vmem:[#allocation6 + $0xf0] sm:$0xff]
    %v962 = vld [vmem:[#allocation6 + $0xf8] sm:$0xff]
    %v963 = vld [vmem:[#allocation6 + $0x100] sm:$0xff]
    %v964 = vld [vmem:[#allocation6 + $0x108] sm:$0xff]
    %v965 = vld [vmem:[#allocation6 + $0x110] sm:$0xff]
    %v966 = vld [vmem:[#allocation6 + $0x118] sm:$0xff]
    %v967 = vld [vmem:[#allocation6 + $0x120] sm:$0xff]
    %v968 = vld [vmem:[#allocation6 + $0x128] sm:$0xff]
    %v969 = vld [vmem:[#allocation6 + $0x130] sm:$0xff]
    %v970 = vld [vmem:[#allocation6 + $0x138] sm:$0xff]
    %v971 = vld [vmem:[#allocation6 + $0x140] sm:$0xff]
    %v972 = vld [vmem:[#allocation6 + $0x148] sm:$0xff]
    %v973 = vld [vmem:[#allocation6 + $0x150] sm:$0xff]
    %v974 = vld [vmem:[#allocation6 + $0x158] sm:$0xff]
    %v975 = vld [vmem:[#allocation6 + $0x160] sm:$0xff]
    %v976 = vld [vmem:[#allocation6 + $0x168] sm:$0xff]
    %v977 = vld [vmem:[#allocation6 + $0x170] sm:$0xff]
    %v978 = vld [vmem:[#allocation6 + $0x178] sm:$0xff]
    %979 = vmatpush.msra.mxu0 %v976
    %980 = vmatpush.msra.mxu0 %v973
    %981 = vmatpush.msra.mxu0 %v970
    %982 = vmatpush.msra.mxu0 %v967
    %983 = vmatpush.msra.mxu0 %v964
    %984 = vmatpush.msra.mxu0 %v961
    %985 = vmatpush.msra.mxu0 %v958
    %986 = vmatpush.msra.mxu0 %v955
    %987 = vmatpush.msra.mxu0 %v952
    %988 = vmatpush.msra.mxu0 %v949
    %989 = vmatpush.msra.mxu0 %v946
    %990 = vmatpush.msra.mxu0 %v943
    %991 = vmatpush.msra.mxu0 %v940
    %992 = vmatpush.msra.mxu0 %v937
    %993 = vmatpush.msra.mxu0 %v934
    %994 = vmatpush.msra.mxu0 %v931
    %995 = vmatmul.f32.gmra.mxu0 %v607
    %v996 = vpop.f32.mrf.mxu0
    %v997 = vadd.f32 %v201, %v996
    %998 = vdwg.mxu0
    %999 = vmatpush.msra.mxu0 %v977
    %1000 = vmatpush.msra.mxu0 %v974
    %1001 = vmatpush.msra.mxu0 %v971
    %1002 = vmatpush.msra.mxu0 %v968
    %1003 = vmatpush.msra.mxu0 %v965
    %1004 = vmatpush.msra.mxu0 %v962
    %1005 = vmatpush.msra.mxu0 %v959
    %1006 = vmatpush.msra.mxu0 %v956
    %1007 = vmatpush.msra.mxu0 %v953
    %1008 = vmatpush.msra.mxu0 %v950
    %1009 = vmatpush.msra.mxu0 %v947
    %1010 = vmatpush.msra.mxu0 %v944
    %1011 = vmatpush.msra.mxu0 %v941
    %1012 = vmatpush.msra.mxu0 %v938
    %1013 = vmatpush.msra.mxu0 %v935
    %1014 = vmatpush.msra.mxu0 %v932
    %1015 = vmatmul.f32.gmra.mxu0 %v607
    %v1016 = vpop.f32.mrf.mxu0
    %v1017 = vadd.f32 %v202, %v1016
    %1018 = vdwg.mxu0
    %1019 = vmatpush.msra.mxu0 %v978
    %1020 = vmatpush.msra.mxu0 %v975
    %1021 = vmatpush.msra.mxu0 %v972
    %1022 = vmatpush.msra.mxu0 %v969
    %1023 = vmatpush.msra.mxu0 %v966
    %1024 = vmatpush.msra.mxu0 %v963
    %1025 = vmatpush.msra.mxu0 %v960
    %1026 = vmatpush.msra.mxu0 %v957
    %1027 = vmatpush.msra.mxu0 %v954
    %1028 = vmatpush.msra.mxu0 %v951
    %1029 = vmatpush.msra.mxu0 %v948
    %1030 = vmatpush.msra.mxu0 %v945
    %1031 = vmatpush.msra.mxu0 %v942
    %1032 = vmatpush.msra.mxu0 %v939
    %1033 = vmatpush.msra.mxu0 %v936
    %1034 = vmatpush.msra.mxu0 %v933
    %1035 = vmatmul.f32.gmra.mxu0 %v607
    %v1036 = vpop.f32.mrf.mxu0
    %v1037 = vadd.f32 %v203, %v1036
    %1038 = vdwg.mxu0
    %1039 = vmatpush.msra.mxu0 %v188
    %1040 = vmatpush.msra.mxu0 %v185
    %1041 = vmatpush.msra.mxu0 %v182
    %1042 = vmatpush.msra.mxu0 %v179
    %1043 = vmatpush.msra.mxu0 %v176
    %1044 = vmatpush.msra.mxu0 %v173
    %1045 = vmatpush.msra.mxu0 %v170
    %1046 = vmatpush.msra.mxu0 %v167
    %1047 = vmatpush.msra.mxu0 %v164
    %1048 = vmatpush.msra.mxu0 %v161
    %1049 = vmatpush.msra.mxu0 %v158
    %1050 = vmatpush.msra.mxu0 %v155
    %1051 = vmatpush.msra.mxu0 %v152
    %1052 = vmatpush.msra.mxu0 %v149
    %1053 = vmatpush.msra.mxu0 %v146
    %1054 = vmatpush.msra.mxu0 %v143
    %1055 = vmatmul.f32.gmra.mxu0 %v822
    %v1056 = vpop.f32.mrf.mxu0
    %v1057 = vadd.f32 0.0, %v1056
    %1058 = vdwg.mxu0
    %1059 = vmatpush.msra.mxu0 %v189
    %1060 = vmatpush.msra.mxu0 %v186
    %1061 = vmatpush.msra.mxu0 %v183
    %1062 = vmatpush.msra.mxu0 %v180
    %1063 = vmatpush.msra.mxu0 %v177
    %1064 = vmatpush.msra.mxu0 %v174
    %1065 = vmatpush.msra.mxu0 %v171
    %1066 = vmatpush.msra.mxu0 %v168
    %1067 = vmatpush.msra.mxu0 %v165
    %1068 = vmatpush.msra.mxu0 %v162
    %1069 = vmatpush.msra.mxu0 %v159
    %1070 = vmatpush.msra.mxu0 %v156
    %1071 = vmatpush.msra.mxu0 %v153
    %1072 = vmatpush.msra.mxu0 %v150
    %1073 = vmatpush.msra.mxu0 %v147
    %1074 = vmatpush.msra.mxu0 %v144
    %1075 = vmatmul.f32.gmra.mxu0 %v822
    %v1076 = vpop.f32.mrf.mxu0
    %v1077 = vadd.f32 0.0, %v1076
    %1078 = vdwg.mxu0
    %1079 = vmatpush.msra.mxu0 %v190
    %1080 = vmatpush.msra.mxu0 %v187
    %1081 = vmatpush.msra.mxu0 %v184
    %1082 = vmatpush.msra.mxu0 %v181
    %1083 = vmatpush.msra.mxu0 %v178
    %1084 = vmatpush.msra.mxu0 %v175
    %1085 = vmatpush.msra.mxu0 %v172
    %1086 = vmatpush.msra.mxu0 %v169
    %1087 = vmatpush.msra.mxu0 %v166
    %1088 = vmatpush.msra.mxu0 %v163
    %1089 = vmatpush.msra.mxu0 %v160
    %1090 = vmatpush.msra.mxu0 %v157
    %1091 = vmatpush.msra.mxu0 %v154
    %1092 = vmatpush.msra.mxu0 %v151
    %1093 = vmatpush.msra.mxu0 %v148
    %1094 = vmatpush.msra.mxu0 %v145
    %1095 = vmatmul.f32.gmra.mxu0 %v822
    %v1096 = vpop.f32.mrf.mxu0
    %v1097 = vadd.f32 0.0, %v1096
    %1098 = vdwg.mxu0
    %v1099 = vadd.f32 %v997, %v1057
    %v1100 = vxor.u32 %v1099, 2147483648
    %v1101 = vmul.f32 %v1100, 1.442695
    %v1102 = vpow.pop %v1101
    %v1103 = vadd.f32 %v1102, 1.0
    %v1104 = vrcp.pop %v1103
    %v1105 = vmul.f32 %v1103, %v1104
    %v1106 = vsub.f32 1.0, %v1105
    %v1107 = vmul.f32 %v1104, %v1106
    %v1108 = vadd.f32 %v1104, %v1107
    %vm1109 = vweird.f32 %v1103
    %vm1110 = vweird.f32 %v1104
    %vm1111 = vmor %vm1109, %vm1110
    %v1112 = vsel %vm1111, %v1104, %v1108
    %v1113 = vand.u32 2147483647, %v1103
    %vm1114 = vcmp.eq.f32.partialorder %v1113, 8.507059e+37
    %v1115 = vand.u32 %v1103, 2147483648
    %v1116 = vor.u32 1.1754944e-38, %v1115
    %v1117 = vsel %vm1114, %v1116, %v1112
    %v1118 = vmul.f32 1.0, %v1117
    %v1119 = vadd.f32 %v1017, %v1077
    %v1120 = vxor.u32 %v1119, 2147483648
    %v1121 = vmul.f32 %v1120, 1.442695
    %v1122 = vpow.pop %v1121
    %v1123 = vadd.f32 %v1122, 1.0
    %v1124 = vrcp.pop %v1123
    %v1125 = vmul.f32 %v1123, %v1124
    %v1126 = vsub.f32 1.0, %v1125
    %v1127 = vmul.f32 %v1124, %v1126
    %v1128 = vadd.f32 %v1124, %v1127
    %vm1129 = vweird.f32 %v1123
    %vm1130 = vweird.f32 %v1124
    %vm1131 = vmor %vm1129, %vm1130
    %v1132 = vsel %vm1131, %v1124, %v1128
    %v1133 = vand.u32 2147483647, %v1123
    %vm1134 = vcmp.eq.f32.partialorder %v1133, 8.507059e+37
    %v1135 = vand.u32 %v1123, 2147483648
    %v1136 = vor.u32 1.1754944e-38, %v1135
    %v1137 = vsel %vm1134, %v1136, %v1132
    %v1138 = vmul.f32 1.0, %v1137
    %v1139 = vadd.f32 %v1097, %v197
    %v1140 = vmul.f32 %v1118, %v1139
    %v1141 = vadd.f32 %v1037, %v1140
    %v1142 = vtanh.pop %v1141
    %v1143 = vsub.f32 %v822, %v1142
    %v1144 = vmul.f32 %v1138, %v1143
    %v1145 = vadd.f32 %v1142, %v1144
    %1146 = vst [vmem:[%s9 + $0x8] sm:$0xff] %v1145
    %1147 = vmatpush.msra.mxu0 %v140
    %1148 = vmatpush.msra.mxu0 %v137
    %1149 = vmatpush.msra.mxu0 %v134
    %1150 = vmatpush.msra.mxu0 %v131
    %1151 = vmatpush.msra.mxu0 %v128
    %1152 = vmatpush.msra.mxu0 %v125
    %1153 = vmatpush.msra.mxu0 %v122
    %1154 = vmatpush.msra.mxu0 %v119
    %1155 = vmatpush.msra.mxu0 %v116
    %1156 = vmatpush.msra.mxu0 %v113
    %1157 = vmatpush.msra.mxu0 %v110
    %1158 = vmatpush.msra.mxu0 %v107
    %1159 = vmatpush.msra.mxu0 %v104
    %1160 = vmatpush.msra.mxu0 %v101
    %1161 = vmatpush.msra.mxu0 %v98
    %1162 = vmatpush.msra.mxu0 %v95
    %1163 = vmatmul.f32.gmra.mxu0 %v930
    %v1164 = vpop.f32.mrf.mxu0
    %v1165 = vadd.f32 0.0, %v1164
    %1166 = vdwg.mxu0
    %1167 = vmatpush.msra.mxu0 %v141
    %1168 = vmatpush.msra.mxu0 %v138
    %1169 = vmatpush.msra.mxu0 %v135
    %1170 = vmatpush.msra.mxu0 %v132
    %1171 = vmatpush.msra.mxu0 %v129
    %1172 = vmatpush.msra.mxu0 %v126
    %1173 = vmatpush.msra.mxu0 %v123
    %1174 = vmatpush.msra.mxu0 %v120
    %1175 = vmatpush.msra.mxu0 %v117
    %1176 = vmatpush.msra.mxu0 %v114
    %1177 = vmatpush.msra.mxu0 %v111
    %1178 = vmatpush.msra.mxu0 %v108
    %1179 = vmatpush.msra.mxu0 %v105
    %1180 = vmatpush.msra.mxu0 %v102
    %1181 = vmatpush.msra.mxu0 %v99
    %1182 = vmatpush.msra.mxu0 %v96
    %1183 = vmatmul.f32.gmra.mxu0 %v930
    %v1184 = vpop.f32.mrf.mxu0
    %v1185 = vadd.f32 0.0, %v1184
    %1186 = vdwg.mxu0
    %1187 = vmatpush.msra.mxu0 %v142
    %1188 = vmatpush.msra.mxu0 %v139
    %1189 = vmatpush.msra.mxu0 %v136
    %1190 = vmatpush.msra.mxu0 %v133
    %1191 = vmatpush.msra.mxu0 %v130
    %1192 = vmatpush.msra.mxu0 %v127
    %1193 = vmatpush.msra.mxu0 %v124
    %1194 = vmatpush.msra.mxu0 %v121
    %1195 = vmatpush.msra.mxu0 %v118
    %1196 = vmatpush.msra.mxu0 %v115
    %1197 = vmatpush.msra.mxu0 %v112
    %1198 = vmatpush.msra.mxu0 %v109
    %1199 = vmatpush.msra.mxu0 %v106
    %1200 = vmatpush.msra.mxu0 %v103
    %1201 = vmatpush.msra.mxu0 %v100
    %1202 = vmatpush.msra.mxu0 %v97
    %1203 = vmatmul.f32.gmra.mxu0 %v930
    %v1204 = vpop.f32.mrf.mxu0
    %v1205 = vadd.f32 0.0, %v1204
    %1206 = vdwg.mxu0
    %v1207 = vadd.f32 %v298, %v1165
    %v1208 = vxor.u32 %v1207, 2147483648
    %v1209 = vmul.f32 %v1208, 1.442695
    %v1210 = vpow.pop %v1209
    %v1211 = vadd.f32 %v1210, 1.0
    %v1212 = vrcp.pop %v1211
    %v1213 = vmul.f32 %v1211, %v1212
    %v1214 = vsub.f32 1.0, %v1213
    %v1215 = vmul.f32 %v1212, %v1214
    %v1216 = vadd.f32 %v1212, %v1215
    %vm1217 = vweird.f32 %v1211
    %vm1218 = vweird.f32 %v1212
    %vm1219 = vmor %vm1217, %vm1218
    %v1220 = vsel %vm1219, %v1212, %v1216
    %v1221 = vand.u32 2147483647, %v1211
    %vm1222 = vcmp.eq.f32.partialorder %v1221, 8.507059e+37
    %v1223 = vand.u32 %v1211, 2147483648
    %v1224 = vor.u32 1.1754944e-38, %v1223
    %v1225 = vsel %vm1222, %v1224, %v1220
    %v1226 = vmul.f32 1.0, %v1225
    %v1227 = vadd.f32 %v339, %v1185
    %v1228 = vxor.u32 %v1227, 2147483648
    %v1229 = vmul.f32 %v1228, 1.442695
    %v1230 = vpow.pop %v1229
    %v1231 = vadd.f32 %v1230, 1.0
    %v1232 = vrcp.pop %v1231
    %v1233 = vmul.f32 %v1231, %v1232
    %v1234 = vsub.f32 1.0, %v1233
    %v1235 = vmul.f32 %v1232, %v1234
    %v1236 = vadd.f32 %v1232, %v1235
    %vm1237 = vweird.f32 %v1231
    %vm1238 = vweird.f32 %v1232
    %vm1239 = vmor %vm1237, %vm1238
    %v1240 = vsel %vm1239, %v1232, %v1236
    %v1241 = vand.u32 2147483647, %v1231
    %vm1242 = vcmp.eq.f32.partialorder %v1241, 8.507059e+37
    %v1243 = vand.u32 %v1231, 2147483648
    %v1244 = vor.u32 1.1754944e-38, %v1243
    %v1245 = vsel %vm1242, %v1244, %v1240
    %v1246 = vmul.f32 1.0, %v1245
    %v1247 = vadd.f32 %v1205, %v193
    %v1248 = vmul.f32 %v1226, %v1247
    %v1249 = vadd.f32 %v380, %v1248
    %v1250 = vtanh.pop %v1249
    %v1251 = vsub.f32 %v930, %v1250
    %v1252 = vmul.f32 %v1246, %v1251
    %v1253 = vadd.f32 %v1250, %v1252
    %v1254 = vld [vmem:[#allocation6] sm:$0xff]
    %v1255 = vld [vmem:[#allocation6 + $0x8] sm:$0xff]
    %v1256 = vld [vmem:[#allocation6 + $0x10] sm:$0xff]
    %v1257 = vld [vmem:[#allocation6 + $0x18] sm:$0xff]
    %v1258 = vld [vmem:[#allocation6 + $0x20] sm:$0xff]
    %v1259 = vld [vmem:[#allocation6 + $0x28] sm:$0xff]
    %v1260 = vld [vmem:[#allocation6 + $0x30] sm:$0xff]
    %v1261 = vld [vmem:[#allocation6 + $0x38] sm:$0xff]
    %v1262 = vld [vmem:[#allocation6 + $0x40] sm:$0xff]
    %v1263 = vld [vmem:[#allocation6 + $0x48] sm:$0xff]
    %v1264 = vld [vmem:[#allocation6 + $0x50] sm:$0xff]
    %v1265 = vld [vmem:[#allocation6 + $0x58] sm:$0xff]
    %v1266 = vld [vmem:[#allocation6 + $0x60] sm:$0xff]
    %v1267 = vld [vmem:[#allocation6 + $0x68] sm:$0xff]
    %v1268 = vld [vmem:[#allocation6 + $0x70] sm:$0xff]
    %v1269 = vld [vmem:[#allocation6 + $0x78] sm:$0xff]
    %v1270 = vld [vmem:[#allocation6 + $0x80] sm:$0xff]
    %v1271 = vld [vmem:[#allocation6 + $0x88] sm:$0xff]
    %v1272 = vld [vmem:[#allocation6 + $0x90] sm:$0xff]
    %v1273 = vld [vmem:[#allocation6 + $0x98] sm:$0xff]
    %v1274 = vld [vmem:[#allocation6 + $0xa0] sm:$0xff]
    %v1275 = vld [vmem:[#allocation6 + $0xa8] sm:$0xff]
    %v1276 = vld [vmem:[#allocation6 + $0xb0] sm:$0xff]
    %v1277 = vld [vmem:[#allocation6 + $0xb8] sm:$0xff]
    %v1278 = vld [vmem:[#allocation6 + $0xc0] sm:$0xff]
    %v1279 = vld [vmem:[#allocation6 + $0xc8] sm:$0xff]
    %v1280 = vld [vmem:[#allocation6 + $0xd0] sm:$0xff]
    %v1281 = vld [vmem:[#allocation6 + $0xd8] sm:$0xff]
    %v1282 = vld [vmem:[#allocation6 + $0xe0] sm:$0xff]
    %v1283 = vld [vmem:[#allocation6 + $0xe8] sm:$0xff]
    %v1284 = vld [vmem:[#allocation6 + $0xf0] sm:$0xff]
    %v1285 = vld [vmem:[#allocation6 + $0xf8] sm:$0xff]
    %v1286 = vld [vmem:[#allocation6 + $0x100] sm:$0xff]
    %v1287 = vld [vmem:[#allocation6 + $0x108] sm:$0xff]
    %v1288 = vld [vmem:[#allocation6 + $0x110] sm:$0xff]
    %v1289 = vld [vmem:[#allocation6 + $0x118] sm:$0xff]
    %v1290 = vld [vmem:[#allocation6 + $0x120] sm:$0xff]
    %v1291 = vld [vmem:[#allocation6 + $0x128] sm:$0xff]
    %v1292 = vld [vmem:[#allocation6 + $0x130] sm:$0xff]
    %v1293 = vld [vmem:[#allocation6 + $0x138] sm:$0xff]
    %v1294 = vld [vmem:[#allocation6 + $0x140] sm:$0xff]
    %v1295 = vld [vmem:[#allocation6 + $0x148] sm:$0xff]
    %v1296 = vld [vmem:[#allocation6 + $0x150] sm:$0xff]
    %v1297 = vld [vmem:[#allocation6 + $0x158] sm:$0xff]
    %v1298 = vld [vmem:[#allocation6 + $0x160] sm:$0xff]
    %v1299 = vld [vmem:[#allocation6 + $0x168] sm:$0xff]
    %v1300 = vld [vmem:[#allocation6 + $0x170] sm:$0xff]
    %v1301 = vld [vmem:[#allocation6 + $0x178] sm:$0xff]
    %1302 = vmatpush.msra.mxu0 %v1299
    %1303 = vmatpush.msra.mxu0 %v1296
    %1304 = vmatpush.msra.mxu0 %v1293
    %1305 = vmatpush.msra.mxu0 %v1290
    %1306 = vmatpush.msra.mxu0 %v1287
    %1307 = vmatpush.msra.mxu0 %v1284
    %1308 = vmatpush.msra.mxu0 %v1281
    %1309 = vmatpush.msra.mxu0 %v1278
    %1310 = vmatpush.msra.mxu0 %v1275
    %1311 = vmatpush.msra.mxu0 %v1272
    %1312 = vmatpush.msra.mxu0 %v1269
    %1313 = vmatpush.msra.mxu0 %v1266
    %1314 = vmatpush.msra.mxu0 %v1263
    %1315 = vmatpush.msra.mxu0 %v1260
    %1316 = vmatpush.msra.mxu0 %v1257
    %1317 = vmatpush.msra.mxu0 %v1254
    %1318 = vmatmul.f32.gmra.mxu0 %v930
    %v1319 = vpop.f32.mrf.mxu0
    %v1320 = vadd.f32 %v201, %v1319
    %1321 = vdwg.mxu0
    %1322 = vmatpush.msra.mxu0 %v1300
    %1323 = vmatpush.msra.mxu0 %v1297
    %1324 = vmatpush.msra.mxu0 %v1294
    %1325 = vmatpush.msra.mxu0 %v1291
    %1326 = vmatpush.msra.mxu0 %v1288
    %1327 = vmatpush.msra.mxu0 %v1285
    %1328 = vmatpush.msra.mxu0 %v1282
    %1329 = vmatpush.msra.mxu0 %v1279
    %1330 = vmatpush.msra.mxu0 %v1276
    %1331 = vmatpush.msra.mxu0 %v1273
    %1332 = vmatpush.msra.mxu0 %v1270
    %1333 = vmatpush.msra.mxu0 %v1267
    %1334 = vmatpush.msra.mxu0 %v1264
    %1335 = vmatpush.msra.mxu0 %v1261
    %1336 = vmatpush.msra.mxu0 %v1258
    %1337 = vmatpush.msra.mxu0 %v1255
    %1338 = vmatmul.f32.gmra.mxu0 %v930
    %v1339 = vpop.f32.mrf.mxu0
    %v1340 = vadd.f32 %v202, %v1339
    %1341 = vdwg.mxu0
    %1342 = vmatpush.msra.mxu0 %v1301
    %1343 = vmatpush.msra.mxu0 %v1298
    %1344 = vmatpush.msra.mxu0 %v1295
    %1345 = vmatpush.msra.mxu0 %v1292
    %1346 = vmatpush.msra.mxu0 %v1289
    %1347 = vmatpush.msra.mxu0 %v1286
    %1348 = vmatpush.msra.mxu0 %v1283
    %1349 = vmatpush.msra.mxu0 %v1280
    %1350 = vmatpush.msra.mxu0 %v1277
    %1351 = vmatpush.msra.mxu0 %v1274
    %1352 = vmatpush.msra.mxu0 %v1271
    %1353 = vmatpush.msra.mxu0 %v1268
    %1354 = vmatpush.msra.mxu0 %v1265
    %1355 = vmatpush.msra.mxu0 %v1262
    %1356 = vmatpush.msra.mxu0 %v1259
    %1357 = vmatpush.msra.mxu0 %v1256
    %1358 = vmatmul.f32.gmra.mxu0 %v930
    %v1359 = vpop.f32.mrf.mxu0
    %v1360 = vadd.f32 %v203, %v1359
    %1361 = vdwg.mxu0
    %1362 = vmatpush.msra.mxu0 %v188
    %1363 = vmatpush.msra.mxu0 %v185
    %1364 = vmatpush.msra.mxu0 %v182
    %1365 = vmatpush.msra.mxu0 %v179
    %1366 = vmatpush.msra.mxu0 %v176
    %1367 = vmatpush.msra.mxu0 %v173
    %1368 = vmatpush.msra.mxu0 %v170
    %1369 = vmatpush.msra.mxu0 %v167
    %1370 = vmatpush.msra.mxu0 %v164
    %1371 = vmatpush.msra.mxu0 %v161
    %1372 = vmatpush.msra.mxu0 %v158
    %1373 = vmatpush.msra.mxu0 %v155
    %1374 = vmatpush.msra.mxu0 %v152
    %1375 = vmatpush.msra.mxu0 %v149
    %1376 = vmatpush.msra.mxu0 %v146
    %1377 = vmatpush.msra.mxu0 %v143
    %1378 = vmatmul.f32.gmra.mxu0 %v1145
    %v1379 = vpop.f32.mrf.mxu0
    %v1380 = vadd.f32 0.0, %v1379
    %1381 = vdwg.mxu0
    %1382 = vmatpush.msra.mxu0 %v189
    %1383 = vmatpush.msra.mxu0 %v186
    %1384 = vmatpush.msra.mxu0 %v183
    %1385 = vmatpush.msra.mxu0 %v180
    %1386 = vmatpush.msra.mxu0 %v177
    %1387 = vmatpush.msra.mxu0 %v174
    %1388 = vmatpush.msra.mxu0 %v171
    %1389 = vmatpush.msra.mxu0 %v168
    %1390 = vmatpush.msra.mxu0 %v165
    %1391 = vmatpush.msra.mxu0 %v162
    %1392 = vmatpush.msra.mxu0 %v159
    %1393 = vmatpush.msra.mxu0 %v156
    %1394 = vmatpush.msra.mxu0 %v153
    %1395 = vmatpush.msra.mxu0 %v150
    %1396 = vmatpush.msra.mxu0 %v147
    %1397 = vmatpush.msra.mxu0 %v144
    %1398 = vmatmul.f32.gmra.mxu0 %v1145
    %v1399 = vpop.f32.mrf.mxu0
    %v1400 = vadd.f32 0.0, %v1399
    %1401 = vdwg.mxu0
    %1402 = vmatpush.msra.mxu0 %v190
    %1403 = vmatpush.msra.mxu0 %v187
    %1404 = vmatpush.msra.mxu0 %v184
    %1405 = vmatpush.msra.mxu0 %v181
    %1406 = vmatpush.msra.mxu0 %v178
    %1407 = vmatpush.msra.mxu0 %v175
    %1408 = vmatpush.msra.mxu0 %v172
    %1409 = vmatpush.msra.mxu0 %v169
    %1410 = vmatpush.msra.mxu0 %v166
    %1411 = vmatpush.msra.mxu0 %v163
    %1412 = vmatpush.msra.mxu0 %v160
    %1413 = vmatpush.msra.mxu0 %v157
    %1414 = vmatpush.msra.mxu0 %v154
    %1415 = vmatpush.msra.mxu0 %v151
    %1416 = vmatpush.msra.mxu0 %v148
    %1417 = vmatpush.msra.mxu0 %v145
    %1418 = vmatmul.f32.gmra.mxu0 %v1145
    %v1419 = vpop.f32.mrf.mxu0
    %v1420 = vadd.f32 0.0, %v1419
    %1421 = vdwg.mxu0
    %v1422 = vadd.f32 %v1320, %v1380
    %v1423 = vxor.u32 %v1422, 2147483648
    %v1424 = vmul.f32 %v1423, 1.442695
    %v1425 = vpow.pop %v1424
    %v1426 = vadd.f32 %v1425, 1.0
    %v1427 = vrcp.pop %v1426
    %v1428 = vmul.f32 %v1426, %v1427
    %v1429 = vsub.f32 1.0, %v1428
    %v1430 = vmul.f32 %v1427, %v1429
    %v1431 = vadd.f32 %v1427, %v1430
    %vm1432 = vweird.f32 %v1426
    %vm1433 = vweird.f32 %v1427
    %vm1434 = vmor %vm1432, %vm1433
    %v1435 = vsel %vm1434, %v1427, %v1431
    %v1436 = vand.u32 2147483647, %v1426
    %vm1437 = vcmp.eq.f32.partialorder %v1436, 8.507059e+37
    %v1438 = vand.u32 %v1426, 2147483648
    %v1439 = vor.u32 1.1754944e-38, %v1438
    %v1440 = vsel %vm1437, %v1439, %v1435
    %v1441 = vmul.f32 1.0, %v1440
    %v1442 = vadd.f32 %v1340, %v1400
    %v1443 = vxor.u32 %v1442, 2147483648
    %v1444 = vmul.f32 %v1443, 1.442695
    %v1445 = vpow.pop %v1444
    %v1446 = vadd.f32 %v1445, 1.0
    %v1447 = vrcp.pop %v1446
    %v1448 = vmul.f32 %v1446, %v1447
    %v1449 = vsub.f32 1.0, %v1448
    %v1450 = vmul.f32 %v1447, %v1449
    %v1451 = vadd.f32 %v1447, %v1450
    %vm1452 = vweird.f32 %v1446
    %vm1453 = vweird.f32 %v1447
    %vm1454 = vmor %vm1452, %vm1453
    %v1455 = vsel %vm1454, %v1447, %v1451
    %v1456 = vand.u32 2147483647, %v1446
    %vm1457 = vcmp.eq.f32.partialorder %v1456, 8.507059e+37
    %v1458 = vand.u32 %v1446, 2147483648
    %v1459 = vor.u32 1.1754944e-38, %v1458
    %v1460 = vsel %vm1457, %v1459, %v1455
    %v1461 = vmul.f32 1.0, %v1460
    %v1462 = vadd.f32 %v1420, %v197
    %v1463 = vmul.f32 %v1441, %v1462
    %v1464 = vadd.f32 %v1360, %v1463
    %v1465 = vtanh.pop %v1464
    %v1466 = vsub.f32 %v1145, %v1465
    %v1467 = vmul.f32 %v1461, %v1466
    %v1468 = vadd.f32 %v1465, %v1467
    %1469 = vst [vmem:[%s9 + $0x10] sm:$0xff] %v1468
    %1470 = vmatpush.msra.mxu0 %v140
    %1471 = vmatpush.msra.mxu0 %v137
    %1472 = vmatpush.msra.mxu0 %v134
    %1473 = vmatpush.msra.mxu0 %v131
    %1474 = vmatpush.msra.mxu0 %v128
    %1475 = vmatpush.msra.mxu0 %v125
    %1476 = vmatpush.msra.mxu0 %v122
    %1477 = vmatpush.msra.mxu0 %v119
    %1478 = vmatpush.msra.mxu0 %v116
    %1479 = vmatpush.msra.mxu0 %v113
    %1480 = vmatpush.msra.mxu0 %v110
    %1481 = vmatpush.msra.mxu0 %v107
    %1482 = vmatpush.msra.mxu0 %v104
    %1483 = vmatpush.msra.mxu0 %v101
    %1484 = vmatpush.msra.mxu0 %v98
    %1485 = vmatpush.msra.mxu0 %v95
    %1486 = vmatmul.f32.gmra.mxu0 %v1253
    %v1487 = vpop.f32.mrf.mxu0
    %v1488 = vadd.f32 0.0, %v1487
    %1489 = vdwg.mxu0
    %1490 = vmatpush.msra.mxu0 %v141
    %1491 = vmatpush.msra.mxu0 %v138
    %1492 = vmatpush.msra.mxu0 %v135
    %1493 = vmatpush.msra.mxu0 %v132
    %1494 = vmatpush.msra.mxu0 %v129
    %1495 = vmatpush.msra.mxu0 %v126
    %1496 = vmatpush.msra.mxu0 %v123
    %1497 = vmatpush.msra.mxu0 %v120
    %1498 = vmatpush.msra.mxu0 %v117
    %1499 = vmatpush.msra.mxu0 %v114
    %1500 = vmatpush.msra.mxu0 %v111
    %1501 = vmatpush.msra.mxu0 %v108
    %1502 = vmatpush.msra.mxu0 %v105
    %1503 = vmatpush.msra.mxu0 %v102
    %1504 = vmatpush.msra.mxu0 %v99
    %1505 = vmatpush.msra.mxu0 %v96
    %1506 = vmatmul.f32.gmra.mxu0 %v1253
    %v1507 = vpop.f32.mrf.mxu0
    %v1508 = vadd.f32 0.0, %v1507
    %1509 = vdwg.mxu0
    %1510 = vmatpush.msra.mxu0 %v142
    %1511 = vmatpush.msra.mxu0 %v139
    %1512 = vmatpush.msra.mxu0 %v136
    %1513 = vmatpush.msra.mxu0 %v133
    %1514 = vmatpush.msra.mxu0 %v130
    %1515 = vmatpush.msra.mxu0 %v127
    %1516 = vmatpush.msra.mxu0 %v124
    %1517 = vmatpush.msra.mxu0 %v121
    %1518 = vmatpush.msra.mxu0 %v118
    %1519 = vmatpush.msra.mxu0 %v115
    %1520 = vmatpush.msra.mxu0 %v112
    %1521 = vmatpush.msra.mxu0 %v109
    %1522 = vmatpush.msra.mxu0 %v106
    %1523 = vmatpush.msra.mxu0 %v103
    %1524 = vmatpush.msra.mxu0 %v100
    %1525 = vmatpush.msra.mxu0 %v97
    %1526 = vmatmul.f32.gmra.mxu0 %v1253
    %v1527 = vpop.f32.mrf.mxu0
    %v1528 = vadd.f32 0.0, %v1527
    %1529 = vdwg.mxu0
    %v1530 = vadd.f32 %v301, %v1488
    %v1531 = vxor.u32 %v1530, 2147483648
    %v1532 = vmul.f32 %v1531, 1.442695
    %v1533 = vpow.pop %v1532
    %v1534 = vadd.f32 %v1533, 1.0
    %v1535 = vrcp.pop %v1534
    %v1536 = vmul.f32 %v1534, %v1535
    %v1537 = vsub.f32 1.0, %v1536
    %v1538 = vmul.f32 %v1535, %v1537
    %v1539 = vadd.f32 %v1535, %v1538
    %vm1540 = vweird.f32 %v1534
    %vm1541 = vweird.f32 %v1535
    %vm1542 = vmor %vm1540, %vm1541
    %v1543 = vsel %vm1542, %v1535, %v1539
    %v1544 = vand.u32 2147483647, %v1534
    %vm1545 = vcmp.eq.f32.partialorder %v1544, 8.507059e+37
    %v1546 = vand.u32 %v1534, 2147483648
    %v1547 = vor.u32 1.1754944e-38, %v1546
    %v1548 = vsel %vm1545, %v1547, %v1543
    %v1549 = vmul.f32 1.0, %v1548
    %v1550 = vadd.f32 %v342, %v1508
    %v1551 = vxor.u32 %v1550, 2147483648
    %v1552 = vmul.f32 %v1551, 1.442695
    %v1553 = vpow.pop %v1552
    %v1554 = vadd.f32 %v1553, 1.0
    %v1555 = vrcp.pop %v1554
    %v1556 = vmul.f32 %v1554, %v1555
    %v1557 = vsub.f32 1.0, %v1556
    %v1558 = vmul.f32 %v1555, %v1557
    %v1559 = vadd.f32 %v1555, %v1558
    %vm1560 = vweird.f32 %v1554
    %vm1561 = vweird.f32 %v1555
    %vm1562 = vmor %vm1560, %vm1561
    %v1563 = vsel %vm1562, %v1555, %v1559
    %v1564 = vand.u32 2147483647, %v1554
    %vm1565 = vcmp.eq.f32.partialorder %v1564, 8.507059e+37
    %v1566 = vand.u32 %v1554, 2147483648
    %v1567 = vor.u32 1.1754944e-38, %v1566
    %v1568 = vsel %vm1565, %v1567, %v1563
    %v1569 = vmul.f32 1.0, %v1568
    %v1570 = vadd.f32 %v1528, %v193
    %v1571 = vmul.f32 %v1549, %v1570
    %v1572 = vadd.f32 %v383, %v1571
    %v1573 = vtanh.pop %v1572
    %v1574 = vsub.f32 %v1253, %v1573
    %v1575 = vmul.f32 %v1569, %v1574
    %v1576 = vadd.f32 %v1573, %v1575
    %v1577 = vld [vmem:[#allocation6] sm:$0xff]
    %v1578 = vld [vmem:[#allocation6 + $0x8] sm:$0xff]
    %v1579 = vld [vmem:[#allocation6 + $0x10] sm:$0xff]
    %v1580 = vld [vmem:[#allocation6 + $0x18] sm:$0xff]
    %v1581 = vld [vmem:[#allocation6 + $0x20] sm:$0xff]
    %v1582 = vld [vmem:[#allocation6 + $0x28] sm:$0xff]
    %v1583 = vld [vmem:[#allocation6 + $0x30] sm:$0xff]
    %v1584 = vld [vmem:[#allocation6 + $0x38] sm:$0xff]
    %v1585 = vld [vmem:[#allocation6 + $0x40] sm:$0xff]
    %v1586 = vld [vmem:[#allocation6 + $0x48] sm:$0xff]
    %v1587 = vld [vmem:[#allocation6 + $0x50] sm:$0xff]
    %v1588 = vld [vmem:[#allocation6 + $0x58] sm:$0xff]
    %v1589 = vld [vmem:[#allocation6 + $0x60] sm:$0xff]
    %v1590 = vld [vmem:[#allocation6 + $0x68] sm:$0xff]
    %v1591 = vld [vmem:[#allocation6 + $0x70] sm:$0xff]
    %v1592 = vld [vmem:[#allocation6 + $0x78] sm:$0xff]
    %v1593 = vld [vmem:[#allocation6 + $0x80] sm:$0xff]
    %v1594 = vld [vmem:[#allocation6 + $0x88] sm:$0xff]
    %v1595 = vld [vmem:[#allocation6 + $0x90] sm:$0xff]
    %v1596 = vld [vmem:[#allocation6 + $0x98] sm:$0xff]
    %v1597 = vld [vmem:[#allocation6 + $0xa0] sm:$0xff]
    %v1598 = vld [vmem:[#allocation6 + $0xa8] sm:$0xff]
    %v1599 = vld [vmem:[#allocation6 + $0xb0] sm:$0xff]
    %v1600 = vld [vmem:[#allocation6 + $0xb8] sm:$0xff]
    %v1601 = vld [vmem:[#allocation6 + $0xc0] sm:$0xff]
    %v1602 = vld [vmem:[#allocation6 + $0xc8] sm:$0xff]
    %v1603 = vld [vmem:[#allocation6 + $0xd0] sm:$0xff]
    %v1604 = vld [vmem:[#allocation6 + $0xd8] sm:$0xff]
    %v1605 = vld [vmem:[#allocation6 + $0xe0] sm:$0xff]
    %v1606 = vld [vmem:[#allocation6 + $0xe8] sm:$0xff]
    %v1607 = vld [vmem:[#allocation6 + $0xf0] sm:$0xff]
    %v1608 = vld [vmem:[#allocation6 + $0xf8] sm:$0xff]
    %v1609 = vld [vmem:[#allocation6 + $0x100] sm:$0xff]
    %v1610 = vld [vmem:[#allocation6 + $0x108] sm:$0xff]
    %v1611 = vld [vmem:[#allocation6 + $0x110] sm:$0xff]
    %v1612 = vld [vmem:[#allocation6 + $0x118] sm:$0xff]
    %v1613 = vld [vmem:[#allocation6 + $0x120] sm:$0xff]
    %v1614 = vld [vmem:[#allocation6 + $0x128] sm:$0xff]
    %v1615 = vld [vmem:[#allocation6 + $0x130] sm:$0xff]
    %v1616 = vld [vmem:[#allocation6 + $0x138] sm:$0xff]
    %v1617 = vld [vmem:[#allocation6 + $0x140] sm:$0xff]
    %v1618 = vld [vmem:[#allocation6 + $0x148] sm:$0xff]
    %v1619 = vld [vmem:[#allocation6 + $0x150] sm:$0xff]
    %v1620 = vld [vmem:[#allocation6 + $0x158] sm:$0xff]
    %v1621 = vld [vmem:[#allocation6 + $0x160] sm:$0xff]
    %v1622 = vld [vmem:[#allocation6 + $0x168] sm:$0xff]
    %v1623 = vld [vmem:[#allocation6 + $0x170] sm:$0xff]
    %v1624 = vld [vmem:[#allocation6 + $0x178] sm:$0xff]
    %1625 = vmatpush.msra.mxu0 %v1622
    %1626 = vmatpush.msra.mxu0 %v1619
    %1627 = vmatpush.msra.mxu0 %v1616
    %1628 = vmatpush.msra.mxu0 %v1613
    %1629 = vmatpush.msra.mxu0 %v1610
    %1630 = vmatpush.msra.mxu0 %v1607
    %1631 = vmatpush.msra.mxu0 %v1604
    %1632 = vmatpush.msra.mxu0 %v1601
    %1633 = vmatpush.msra.mxu0 %v1598
    %1634 = vmatpush.msra.mxu0 %v1595
    %1635 = vmatpush.msra.mxu0 %v1592
    %1636 = vmatpush.msra.mxu0 %v1589
    %1637 = vmatpush.msra.mxu0 %v1586
    %1638 = vmatpush.msra.mxu0 %v1583
    %1639 = vmatpush.msra.mxu0 %v1580
    %1640 = vmatpush.msra.mxu0 %v1577
    %1641 = vmatmul.f32.gmra.mxu0 %v1253
    %v1642 = vpop.f32.mrf.mxu0
    %v1643 = vadd.f32 %v201, %v1642
    %1644 = vdwg.mxu0
    %1645 = vmatpush.msra.mxu0 %v1623
    %1646 = vmatpush.msra.mxu0 %v1620
    %1647 = vmatpush.msra.mxu0 %v1617
    %1648 = vmatpush.msra.mxu0 %v1614
    %1649 = vmatpush.msra.mxu0 %v1611
    %1650 = vmatpush.msra.mxu0 %v1608
    %1651 = vmatpush.msra.mxu0 %v1605
    %1652 = vmatpush.msra.mxu0 %v1602
    %1653 = vmatpush.msra.mxu0 %v1599
    %1654 = vmatpush.msra.mxu0 %v1596
    %1655 = vmatpush.msra.mxu0 %v1593
    %1656 = vmatpush.msra.mxu0 %v1590
    %1657 = vmatpush.msra.mxu0 %v1587
    %1658 = vmatpush.msra.mxu0 %v1584
    %1659 = vmatpush.msra.mxu0 %v1581
    %1660 = vmatpush.msra.mxu0 %v1578
    %1661 = vmatmul.f32.gmra.mxu0 %v1253
    %v1662 = vpop.f32.mrf.mxu0
    %v1663 = vadd.f32 %v202, %v1662
    %1664 = vdwg.mxu0
    %1665 = vmatpush.msra.mxu0 %v1624
    %1666 = vmatpush.msra.mxu0 %v1621
    %1667 = vmatpush.msra.mxu0 %v1618
    %1668 = vmatpush.msra.mxu0 %v1615
    %1669 = vmatpush.msra.mxu0 %v1612
    %1670 = vmatpush.msra.mxu0 %v1609
    %1671 = vmatpush.msra.mxu0 %v1606
    %1672 = vmatpush.msra.mxu0 %v1603
    %1673 = vmatpush.msra.mxu0 %v1600
    %1674 = vmatpush.msra.mxu0 %v1597
    %1675 = vmatpush.msra.mxu0 %v1594
    %1676 = vmatpush.msra.mxu0 %v1591
    %1677 = vmatpush.msra.mxu0 %v1588
    %1678 = vmatpush.msra.mxu0 %v1585
    %1679 = vmatpush.msra.mxu0 %v1582
    %1680 = vmatpush.msra.mxu0 %v1579
    %1681 = vmatmul.f32.gmra.mxu0 %v1253
    %v1682 = vpop.f32.mrf.mxu0
    %v1683 = vadd.f32 %v203, %v1682
    %1684 = vdwg.mxu0
    %1685 = vmatpush.msra.mxu0 %v188
    %1686 = vmatpush.msra.mxu0 %v185
    %1687 = vmatpush.msra.mxu0 %v182
    %1688 = vmatpush.msra.mxu0 %v179
    %1689 = vmatpush.msra.mxu0 %v176
    %1690 = vmatpush.msra.mxu0 %v173
    %1691 = vmatpush.msra.mxu0 %v170
    %1692 = vmatpush.msra.mxu0 %v167
    %1693 = vmatpush.msra.mxu0 %v164
    %1694 = vmatpush.msra.mxu0 %v161
    %1695 = vmatpush.msra.mxu0 %v158
    %1696 = vmatpush.msra.mxu0 %v155
    %1697 = vmatpush.msra.mxu0 %v152
    %1698 = vmatpush.msra.mxu0 %v149
    %1699 = vmatpush.msra.mxu0 %v146
    %1700 = vmatpush.msra.mxu0 %v143
    %1701 = vmatmul.f32.gmra.mxu0 %v1468
    %v1702 = vpop.f32.mrf.mxu0
    %v1703 = vadd.f32 0.0, %v1702
    %1704 = vdwg.mxu0
    %1705 = vmatpush.msra.mxu0 %v189
    %1706 = vmatpush.msra.mxu0 %v186
    %1707 = vmatpush.msra.mxu0 %v183
    %1708 = vmatpush.msra.mxu0 %v180
    %1709 = vmatpush.msra.mxu0 %v177
    %1710 = vmatpush.msra.mxu0 %v174
    %1711 = vmatpush.msra.mxu0 %v171
    %1712 = vmatpush.msra.mxu0 %v168
    %1713 = vmatpush.msra.mxu0 %v165
    %1714 = vmatpush.msra.mxu0 %v162
    %1715 = vmatpush.msra.mxu0 %v159
    %1716 = vmatpush.msra.mxu0 %v156
    %1717 = vmatpush.msra.mxu0 %v153
    %1718 = vmatpush.msra.mxu0 %v150
    %1719 = vmatpush.msra.mxu0 %v147
    %1720 = vmatpush.msra.mxu0 %v144
    %1721 = vmatmul.f32.gmra.mxu0 %v1468
    %v1722 = vpop.f32.mrf.mxu0
    %v1723 = vadd.f32 0.0, %v1722
    %1724 = vdwg.mxu0
    %1725 = vmatpush.msra.mxu0 %v190
    %1726 = vmatpush.msra.mxu0 %v187
    %1727 = vmatpush.msra.mxu0 %v184
    %1728 = vmatpush.msra.mxu0 %v181
    %1729 = vmatpush.msra.mxu0 %v178
    %1730 = vmatpush.msra.mxu0 %v175
    %1731 = vmatpush.msra.mxu0 %v172
    %1732 = vmatpush.msra.mxu0 %v169
    %1733 = vmatpush.msra.mxu0 %v166
    %1734 = vmatpush.msra.mxu0 %v163
    %1735 = vmatpush.msra.mxu0 %v160
    %1736 = vmatpush.msra.mxu0 %v157
    %1737 = vmatpush.msra.mxu0 %v154
    %1738 = vmatpush.msra.mxu0 %v151
    %1739 = vmatpush.msra.mxu0 %v148
    %1740 = vmatpush.msra.mxu0 %v145
    %1741 = vmatmul.f32.gmra.mxu0 %v1468
    %v1742 = vpop.f32.mrf.mxu0
    %v1743 = vadd.f32 0.0, %v1742
    %1744 = vdwg.mxu0
    %v1745 = vadd.f32 %v1643, %v1703
    %v1746 = vxor.u32 %v1745, 2147483648
    %v1747 = vmul.f32 %v1746, 1.442695
    %v1748 = vpow.pop %v1747
    %v1749 = vadd.f32 %v1748, 1.0
    %v1750 = vrcp.pop %v1749
    %v1751 = vmul.f32 %v1749, %v1750
    %v1752 = vsub.f32 1.0, %v1751
    %v1753 = vmul.f32 %v1750, %v1752
    %v1754 = vadd.f32 %v1750, %v1753
    %vm1755 = vweird.f32 %v1749
    %vm1756 = vweird.f32 %v1750
    %vm1757 = vmor %vm1755, %vm1756
    %v1758 = vsel %vm1757, %v1750, %v1754
    %v1759 = vand.u32 2147483647, %v1749
    %vm1760 = vcmp.eq.f32.partialorder %v1759, 8.507059e+37
    %v1761 = vand.u32 %v1749, 2147483648
    %v1762 = vor.u32 1.1754944e-38, %v1761
    %v1763 = vsel %vm1760, %v1762, %v1758
    %v1764 = vmul.f32 1.0, %v1763
    %v1765 = vadd.f32 %v1663, %v1723
    %v1766 = vxor.u32 %v1765, 2147483648
    %v1767 = vmul.f32 %v1766, 1.442695
    %v1768 = vpow.pop %v1767
    %v1769 = vadd.f32 %v1768, 1.0
    %v1770 = vrcp.pop %v1769
    %v1771 = vmul.f32 %v1769, %v1770
    %v1772 = vsub.f32 1.0, %v1771
    %v1773 = vmul.f32 %v1770, %v1772
    %v1774 = vadd.f32 %v1770, %v1773
    %vm1775 = vweird.f32 %v1769
    %vm1776 = vweird.f32 %v1770
    %vm1777 = vmor %vm1775, %vm1776
    %v1778 = vsel %vm1777, %v1770, %v1774
    %v1779 = vand.u32 2147483647, %v1769
    %vm1780 = vcmp.eq.f32.partialorder %v1779, 8.507059e+37
    %v1781 = vand.u32 %v1769, 2147483648
    %v1782 = vor.u32 1.1754944e-38, %v1781
    %v1783 = vsel %vm1780, %v1782, %v1778
    %v1784 = vmul.f32 1.0, %v1783
    %v1785 = vadd.f32 %v1743, %v197
    %v1786 = vmul.f32 %v1764, %v1785
    %v1787 = vadd.f32 %v1683, %v1786
    %v1788 = vtanh.pop %v1787
    %v1789 = vsub.f32 %v1468, %v1788
    %v1790 = vmul.f32 %v1784, %v1789
    %v1791 = vadd.f32 %v1788, %v1790
    %1792 = vst [vmem:[%s9 + $0x18] sm:$0xff] %v1791
    %1793 = vmatpush.msra.mxu0 %v140
    %1794 = vmatpush.msra.mxu0 %v137
    %1795 = vmatpush.msra.mxu0 %v134
    %1796 = vmatpush.msra.mxu0 %v131
    %1797 = vmatpush.msra.mxu0 %v128
    %1798 = vmatpush.msra.mxu0 %v125
    %1799 = vmatpush.msra.mxu0 %v122
    %1800 = vmatpush.msra.mxu0 %v119
    %1801 = vmatpush.msra.mxu0 %v116
    %1802 = vmatpush.msra.mxu0 %v113
    %1803 = vmatpush.msra.mxu0 %v110
    %1804 = vmatpush.msra.mxu0 %v107
    %1805 = vmatpush.msra.mxu0 %v104
    %1806 = vmatpush.msra.mxu0 %v101
    %1807 = vmatpush.msra.mxu0 %v98
    %1808 = vmatpush.msra.mxu0 %v95
    %1809 = vmatmul.f32.gmra.mxu0 %v1576
    %v1810 = vpop.f32.mrf.mxu0
    %v1811 = vadd.f32 0.0, %v1810
    %1812 = vdwg.mxu0
    %1813 = vmatpush.msra.mxu0 %v141
    %1814 = vmatpush.msra.mxu0 %v138
    %1815 = vmatpush.msra.mxu0 %v135
    %1816 = vmatpush.msra.mxu0 %v132
    %1817 = vmatpush.msra.mxu0 %v129
    %1818 = vmatpush.msra.mxu0 %v126
    %1819 = vmatpush.msra.mxu0 %v123
    %1820 = vmatpush.msra.mxu0 %v120
    %1821 = vmatpush.msra.mxu0 %v117
    %1822 = vmatpush.msra.mxu0 %v114
    %1823 = vmatpush.msra.mxu0 %v111
    %1824 = vmatpush.msra.mxu0 %v108
    %1825 = vmatpush.msra.mxu0 %v105
    %1826 = vmatpush.msra.mxu0 %v102
    %1827 = vmatpush.msra.mxu0 %v99
    %1828 = vmatpush.msra.mxu0 %v96
    %1829 = vmatmul.f32.gmra.mxu0 %v1576
    %v1830 = vpop.f32.mrf.mxu0
    %v1831 = vadd.f32 0.0, %v1830
    %1832 = vdwg.mxu0
    %1833 = vmatpush.msra.mxu0 %v142
    %1834 = vmatpush.msra.mxu0 %v139
    %1835 = vmatpush.msra.mxu0 %v136
    %1836 = vmatpush.msra.mxu0 %v133
    %1837 = vmatpush.msra.mxu0 %v130
    %1838 = vmatpush.msra.mxu0 %v127
    %1839 = vmatpush.msra.mxu0 %v124
    %1840 = vmatpush.msra.mxu0 %v121
    %1841 = vmatpush.msra.mxu0 %v118
    %1842 = vmatpush.msra.mxu0 %v115
    %1843 = vmatpush.msra.mxu0 %v112
    %1844 = vmatpush.msra.mxu0 %v109
    %1845 = vmatpush.msra.mxu0 %v106
    %1846 = vmatpush.msra.mxu0 %v103
    %1847 = vmatpush.msra.mxu0 %v100
    %1848 = vmatpush.msra.mxu0 %v97
    %1849 = vmatmul.f32.gmra.mxu0 %v1576
    %v1850 = vpop.f32.mrf.mxu0
    %v1851 = vadd.f32 0.0, %v1850
    %1852 = vdwg.mxu0
    %v1853 = vadd.f32 %v304, %v1811
    %v1854 = vxor.u32 %v1853, 2147483648
    %v1855 = vmul.f32 %v1854, 1.442695
    %v1856 = vpow.pop %v1855
    %v1857 = vadd.f32 %v1856, 1.0
    %v1858 = vrcp.pop %v1857
    %v1859 = vmul.f32 %v1857, %v1858
    %v1860 = vsub.f32 1.0, %v1859
    %v1861 = vmul.f32 %v1858, %v1860
    %v1862 = vadd.f32 %v1858, %v1861
    %vm1863 = vweird.f32 %v1857
    %vm1864 = vweird.f32 %v1858
    %vm1865 = vmor %vm1863, %vm1864
    %v1866 = vsel %vm1865, %v1858, %v1862
    %v1867 = vand.u32 2147483647, %v1857
    %vm1868 = vcmp.eq.f32.partialorder %v1867, 8.507059e+37
    %v1869 = vand.u32 %v1857, 2147483648
    %v1870 = vor.u32 1.1754944e-38, %v1869
    %v1871 = vsel %vm1868, %v1870, %v1866
    %v1872 = vmul.f32 1.0, %v1871
    %v1873 = vadd.f32 %v345, %v1831
    %v1874 = vxor.u32 %v1873, 2147483648
    %v1875 = vmul.f32 %v1874, 1.442695
    %v1876 = vpow.pop %v1875
    %v1877 = vadd.f32 %v1876, 1.0
    %v1878 = vrcp.pop %v1877
    %v1879 = vmul.f32 %v1877, %v1878
    %v1880 = vsub.f32 1.0, %v1879
    %v1881 = vmul.f32 %v1878, %v1880
    %v1882 = vadd.f32 %v1878, %v1881
    %vm1883 = vweird.f32 %v1877
    %vm1884 = vweird.f32 %v1878
    %vm1885 = vmor %vm1883, %vm1884
    %v1886 = vsel %vm1885, %v1878, %v1882
    %v1887 = vand.u32 2147483647, %v1877
    %vm1888 = vcmp.eq.f32.partialorder %v1887, 8.507059e+37
    %v1889 = vand.u32 %v1877, 2147483648
    %v1890 = vor.u32 1.1754944e-38, %v1889
    %v1891 = vsel %vm1888, %v1890, %v1886
    %v1892 = vmul.f32 1.0, %v1891
    %v1893 = vadd.f32 %v1851, %v193
    %v1894 = vmul.f32 %v1872, %v1893
    %v1895 = vadd.f32 %v386, %v1894
    %v1896 = vtanh.pop %v1895
    %v1897 = vsub.f32 %v1576, %v1896
    %v1898 = vmul.f32 %v1892, %v1897
    %v1899 = vadd.f32 %v1896, %v1898
    %v1900 = vld [vmem:[#allocation6] sm:$0xff]
    %v1901 = vld [vmem:[#allocation6 + $0x8] sm:$0xff]
    %v1902 = vld [vmem:[#allocation6 + $0x10] sm:$0xff]
    %v1903 = vld [vmem:[#allocation6 + $0x18] sm:$0xff]
    %v1904 = vld [vmem:[#allocation6 + $0x20] sm:$0xff]
    %v1905 = vld [vmem:[#allocation6 + $0x28] sm:$0xff]
    %v1906 = vld [vmem:[#allocation6 + $0x30] sm:$0xff]
    %v1907 = vld [vmem:[#allocation6 + $0x38] sm:$0xff]
    %v1908 = vld [vmem:[#allocation6 + $0x40] sm:$0xff]
    %v1909 = vld [vmem:[#allocation6 + $0x48] sm:$0xff]
    %v1910 = vld [vmem:[#allocation6 + $0x50] sm:$0xff]
    %v1911 = vld [vmem:[#allocation6 + $0x58] sm:$0xff]
    %v1912 = vld [vmem:[#allocation6 + $0x60] sm:$0xff]
    %v1913 = vld [vmem:[#allocation6 + $0x68] sm:$0xff]
    %v1914 = vld [vmem:[#allocation6 + $0x70] sm:$0xff]
    %v1915 = vld [vmem:[#allocation6 + $0x78] sm:$0xff]
    %v1916 = vld [vmem:[#allocation6 + $0x80] sm:$0xff]
    %v1917 = vld [vmem:[#allocation6 + $0x88] sm:$0xff]
    %v1918 = vld [vmem:[#allocation6 + $0x90] sm:$0xff]
    %v1919 = vld [vmem:[#allocation6 + $0x98] sm:$0xff]
    %v1920 = vld [vmem:[#allocation6 + $0xa0] sm:$0xff]
    %v1921 = vld [vmem:[#allocation6 + $0xa8] sm:$0xff]
    %v1922 = vld [vmem:[#allocation6 + $0xb0] sm:$0xff]
    %v1923 = vld [vmem:[#allocation6 + $0xb8] sm:$0xff]
    %v1924 = vld [vmem:[#allocation6 + $0xc0] sm:$0xff]
    %v1925 = vld [vmem:[#allocation6 + $0xc8] sm:$0xff]
    %v1926 = vld [vmem:[#allocation6 + $0xd0] sm:$0xff]
    %v1927 = vld [vmem:[#allocation6 + $0xd8] sm:$0xff]
    %v1928 = vld [vmem:[#allocation6 + $0xe0] sm:$0xff]
    %v1929 = vld [vmem:[#allocation6 + $0xe8] sm:$0xff]
    %v1930 = vld [vmem:[#allocation6 + $0xf0] sm:$0xff]
    %v1931 = vld [vmem:[#allocation6 + $0xf8] sm:$0xff]
    %v1932 = vld [vmem:[#allocation6 + $0x100] sm:$0xff]
    %v1933 = vld [vmem:[#allocation6 + $0x108] sm:$0xff]
    %v1934 = vld [vmem:[#allocation6 + $0x110] sm:$0xff]
    %v1935 = vld [vmem:[#allocation6 + $0x118] sm:$0xff]
    %v1936 = vld [vmem:[#allocation6 + $0x120] sm:$0xff]
    %v1937 = vld [vmem:[#allocation6 + $0x128] sm:$0xff]
    %v1938 = vld [vmem:[#allocation6 + $0x130] sm:$0xff]
    %v1939 = vld [vmem:[#allocation6 + $0x138] sm:$0xff]
    %v1940 = vld [vmem:[#allocation6 + $0x140] sm:$0xff]
    %v1941 = vld [vmem:[#allocation6 + $0x148] sm:$0xff]
    %v1942 = vld [vmem:[#allocation6 + $0x150] sm:$0xff]
    %v1943 = vld [vmem:[#allocation6 + $0x158] sm:$0xff]
    %v1944 = vld [vmem:[#allocation6 + $0x160] sm:$0xff]
    %v1945 = vld [vmem:[#allocation6 + $0x168] sm:$0xff]
    %v1946 = vld [vmem:[#allocation6 + $0x170] sm:$0xff]
    %v1947 = vld [vmem:[#allocation6 + $0x178] sm:$0xff]
    %1948 = vmatpush.msra.mxu0 %v1945
    %1949 = vmatpush.msra.mxu0 %v1942
    %1950 = vmatpush.msra.mxu0 %v1939
    %1951 = vmatpush.msra.mxu0 %v1936
    %1952 = vmatpush.msra.mxu0 %v1933
    %1953 = vmatpush.msra.mxu0 %v1930
    %1954 = vmatpush.msra.mxu0 %v1927
    %1955 = vmatpush.msra.mxu0 %v1924
    %1956 = vmatpush.msra.mxu0 %v1921
    %1957 = vmatpush.msra.mxu0 %v1918
    %1958 = vmatpush.msra.mxu0 %v1915
    %1959 = vmatpush.msra.mxu0 %v1912
    %1960 = vmatpush.msra.mxu0 %v1909
    %1961 = vmatpush.msra.mxu0 %v1906
    %1962 = vmatpush.msra.mxu0 %v1903
    %1963 = vmatpush.msra.mxu0 %v1900
    %1964 = vmatmul.f32.gmra.mxu0 %v1576
    %v1965 = vpop.f32.mrf.mxu0
    %v1966 = vadd.f32 %v201, %v1965
    %1967 = vdwg.mxu0
    %1968 = vmatpush.msra.mxu0 %v1946
    %1969 = vmatpush.msra.mxu0 %v1943
    %1970 = vmatpush.msra.mxu0 %v1940
    %1971 = vmatpush.msra.mxu0 %v1937
    %1972 = vmatpush.msra.mxu0 %v1934
    %1973 = vmatpush.msra.mxu0 %v1931
    %1974 = vmatpush.msra.mxu0 %v1928
    %1975 = vmatpush.msra.mxu0 %v1925
    %1976 = vmatpush.msra.mxu0 %v1922
    %1977 = vmatpush.msra.mxu0 %v1919
    %1978 = vmatpush.msra.mxu0 %v1916
    %1979 = vmatpush.msra.mxu0 %v1913
    %1980 = vmatpush.msra.mxu0 %v1910
    %1981 = vmatpush.msra.mxu0 %v1907
    %1982 = vmatpush.msra.mxu0 %v1904
    %1983 = vmatpush.msra.mxu0 %v1901
    %1984 = vmatmul.f32.gmra.mxu0 %v1576
    %v1985 = vpop.f32.mrf.mxu0
    %v1986 = vadd.f32 %v202, %v1985
    %1987 = vdwg.mxu0
    %1988 = vmatpush.msra.mxu0 %v1947
    %1989 = vmatpush.msra.mxu0 %v1944
    %1990 = vmatpush.msra.mxu0 %v1941
    %1991 = vmatpush.msra.mxu0 %v1938
    %1992 = vmatpush.msra.mxu0 %v1935
    %1993 = vmatpush.msra.mxu0 %v1932
    %1994 = vmatpush.msra.mxu0 %v1929
    %1995 = vmatpush.msra.mxu0 %v1926
    %1996 = vmatpush.msra.mxu0 %v1923
    %1997 = vmatpush.msra.mxu0 %v1920
    %1998 = vmatpush.msra.mxu0 %v1917
    %1999 = vmatpush.msra.mxu0 %v1914
    %2000 = vmatpush.msra.mxu0 %v1911
    %2001 = vmatpush.msra.mxu0 %v1908
    %2002 = vmatpush.msra.mxu0 %v1905
    %2003 = vmatpush.msra.mxu0 %v1902
    %2004 = vmatmul.f32.gmra.mxu0 %v1576
    %v2005 = vpop.f32.mrf.mxu0
    %v2006 = vadd.f32 %v203, %v2005
    %2007 = vdwg.mxu0
    %2008 = vmatpush.msra.mxu0 %v188
    %2009 = vmatpush.msra.mxu0 %v185
    %2010 = vmatpush.msra.mxu0 %v182
    %2011 = vmatpush.msra.mxu0 %v179
    %2012 = vmatpush.msra.mxu0 %v176
    %2013 = vmatpush.msra.mxu0 %v173
    %2014 = vmatpush.msra.mxu0 %v170
    %2015 = vmatpush.msra.mxu0 %v167
    %2016 = vmatpush.msra.mxu0 %v164
    %2017 = vmatpush.msra.mxu0 %v161
    %2018 = vmatpush.msra.mxu0 %v158
    %2019 = vmatpush.msra.mxu0 %v155
    %2020 = vmatpush.msra.mxu0 %v152
    %2021 = vmatpush.msra.mxu0 %v149
    %2022 = vmatpush.msra.mxu0 %v146
    %2023 = vmatpush.msra.mxu0 %v143
    %2024 = vmatmul.f32.gmra.mxu0 %v1791
    %v2025 = vpop.f32.mrf.mxu0
    %v2026 = vadd.f32 0.0, %v2025
    %2027 = vdwg.mxu0
    %2028 = vmatpush.msra.mxu0 %v189
    %2029 = vmatpush.msra.mxu0 %v186
    %2030 = vmatpush.msra.mxu0 %v183
    %2031 = vmatpush.msra.mxu0 %v180
    %2032 = vmatpush.msra.mxu0 %v177
    %2033 = vmatpush.msra.mxu0 %v174
    %2034 = vmatpush.msra.mxu0 %v171
    %2035 = vmatpush.msra.mxu0 %v168
    %2036 = vmatpush.msra.mxu0 %v165
    %2037 = vmatpush.msra.mxu0 %v162
    %2038 = vmatpush.msra.mxu0 %v159
    %2039 = vmatpush.msra.mxu0 %v156
    %2040 = vmatpush.msra.mxu0 %v153
    %2041 = vmatpush.msra.mxu0 %v150
    %2042 = vmatpush.msra.mxu0 %v147
    %2043 = vmatpush.msra.mxu0 %v144
    %2044 = vmatmul.f32.gmra.mxu0 %v1791
    %v2045 = vpop.f32.mrf.mxu0
    %v2046 = vadd.f32 0.0, %v2045
    %2047 = vdwg.mxu0
    %2048 = vmatpush.msra.mxu0 %v190
    %2049 = vmatpush.msra.mxu0 %v187
    %2050 = vmatpush.msra.mxu0 %v184
    %2051 = vmatpush.msra.mxu0 %v181
    %2052 = vmatpush.msra.mxu0 %v178
    %2053 = vmatpush.msra.mxu0 %v175
    %2054 = vmatpush.msra.mxu0 %v172
    %2055 = vmatpush.msra.mxu0 %v169
    %2056 = vmatpush.msra.mxu0 %v166
    %2057 = vmatpush.msra.mxu0 %v163
    %2058 = vmatpush.msra.mxu0 %v160
    %2059 = vmatpush.msra.mxu0 %v157
    %2060 = vmatpush.msra.mxu0 %v154
    %2061 = vmatpush.msra.mxu0 %v151
    %2062 = vmatpush.msra.mxu0 %v148
    %2063 = vmatpush.msra.mxu0 %v145
    %2064 = vmatmul.f32.gmra.mxu0 %v1791
    %v2065 = vpop.f32.mrf.mxu0
    %v2066 = vadd.f32 0.0, %v2065
    %2067 = vdwg.mxu0
    %v2068 = vadd.f32 %v1966, %v2026
    %v2069 = vxor.u32 %v2068, 2147483648
    %v2070 = vmul.f32 %v2069, 1.442695
    %v2071 = vpow.pop %v2070
    %v2072 = vadd.f32 %v2071, 1.0
    %v2073 = vrcp.pop %v2072
    %v2074 = vmul.f32 %v2072, %v2073
    %v2075 = vsub.f32 1.0, %v2074
    %v2076 = vmul.f32 %v2073, %v2075
    %v2077 = vadd.f32 %v2073, %v2076
    %vm2078 = vweird.f32 %v2072
    %vm2079 = vweird.f32 %v2073
    %vm2080 = vmor %vm2078, %vm2079
    %v2081 = vsel %vm2080, %v2073, %v2077
    %v2082 = vand.u32 2147483647, %v2072
    %vm2083 = vcmp.eq.f32.partialorder %v2082, 8.507059e+37
    %v2084 = vand.u32 %v2072, 2147483648
    %v2085 = vor.u32 1.1754944e-38, %v2084
    %v2086 = vsel %vm2083, %v2085, %v2081
    %v2087 = vmul.f32 1.0, %v2086
    %v2088 = vadd.f32 %v1986, %v2046
    %v2089 = vxor.u32 %v2088, 2147483648
    %v2090 = vmul.f32 %v2089, 1.442695
    %v2091 = vpow.pop %v2090
    %v2092 = vadd.f32 %v2091, 1.0
    %v2093 = vrcp.pop %v2092
    %v2094 = vmul.f32 %v2092, %v2093
    %v2095 = vsub.f32 1.0, %v2094
    %v2096 = vmul.f32 %v2093, %v2095
    %v2097 = vadd.f32 %v2093, %v2096
    %vm2098 = vweird.f32 %v2092
    %vm2099 = vweird.f32 %v2093
    %vm2100 = vmor %vm2098, %vm2099
    %v2101 = vsel %vm2100, %v2093, %v2097
    %v2102 = vand.u32 2147483647, %v2092
    %vm2103 = vcmp.eq.f32.partialorder %v2102, 8.507059e+37
    %v2104 = vand.u32 %v2092, 2147483648
    %v2105 = vor.u32 1.1754944e-38, %v2104
    %v2106 = vsel %vm2103, %v2105, %v2101
    %v2107 = vmul.f32 1.0, %v2106
    %v2108 = vadd.f32 %v2066, %v197
    %v2109 = vmul.f32 %v2087, %v2108
    %v2110 = vadd.f32 %v2006, %v2109
    %v2111 = vtanh.pop %v2110
    %v2112 = vsub.f32 %v1791, %v2111
    %v2113 = vmul.f32 %v2107, %v2112
    %v2114 = vadd.f32 %v2111, %v2113
    %2115 = vst [vmem:[%s9 + $0x20] sm:$0xff] %v2114
    %2116 = vmatpush.msra.mxu0 %v140
    %2117 = vmatpush.msra.mxu0 %v137
    %2118 = vmatpush.msra.mxu0 %v134
    %2119 = vmatpush.msra.mxu0 %v131
    %2120 = vmatpush.msra.mxu0 %v128
    %2121 = vmatpush.msra.mxu0 %v125
    %2122 = vmatpush.msra.mxu0 %v122
    %2123 = vmatpush.msra.mxu0 %v119
    %2124 = vmatpush.msra.mxu0 %v116
    %2125 = vmatpush.msra.mxu0 %v113
    %2126 = vmatpush.msra.mxu0 %v110
    %2127 = vmatpush.msra.mxu0 %v107
    %2128 = vmatpush.msra.mxu0 %v104
    %2129 = vmatpush.msra.mxu0 %v101
    %2130 = vmatpush.msra.mxu0 %v98
    %2131 = vmatpush.msra.mxu0 %v95
    %2132 = vmatmul.f32.gmra.mxu0 %v1899
    %v2133 = vpop.f32.mrf.mxu0
    %v2134 = vadd.f32 0.0, %v2133
    %2135 = vdwg.mxu0
    %2136 = vmatpush.msra.mxu0 %v141
    %2137 = vmatpush.msra.mxu0 %v138
    %2138 = vmatpush.msra.mxu0 %v135
    %2139 = vmatpush.msra.mxu0 %v132
    %2140 = vmatpush.msra.mxu0 %v129
    %2141 = vmatpush.msra.mxu0 %v126
    %2142 = vmatpush.msra.mxu0 %v123
    %2143 = vmatpush.msra.mxu0 %v120
    %2144 = vmatpush.msra.mxu0 %v117
    %2145 = vmatpush.msra.mxu0 %v114
    %2146 = vmatpush.msra.mxu0 %v111
    %2147 = vmatpush.msra.mxu0 %v108
    %2148 = vmatpush.msra.mxu0 %v105
    %2149 = vmatpush.msra.mxu0 %v102
    %2150 = vmatpush.msra.mxu0 %v99
    %2151 = vmatpush.msra.mxu0 %v96
    %2152 = vmatmul.f32.gmra.mxu0 %v1899
    %v2153 = vpop.f32.mrf.mxu0
    %v2154 = vadd.f32 0.0, %v2153
    %2155 = vdwg.mxu0
    %2156 = vmatpush.msra.mxu0 %v142
    %2157 = vmatpush.msra.mxu0 %v139
    %2158 = vmatpush.msra.mxu0 %v136
    %2159 = vmatpush.msra.mxu0 %v133
    %2160 = vmatpush.msra.mxu0 %v130
    %2161 = vmatpush.msra.mxu0 %v127
    %2162 = vmatpush.msra.mxu0 %v124
    %2163 = vmatpush.msra.mxu0 %v121
    %2164 = vmatpush.msra.mxu0 %v118
    %2165 = vmatpush.msra.mxu0 %v115
    %2166 = vmatpush.msra.mxu0 %v112
    %2167 = vmatpush.msra.mxu0 %v109
    %2168 = vmatpush.msra.mxu0 %v106
    %2169 = vmatpush.msra.mxu0 %v103
    %2170 = vmatpush.msra.mxu0 %v100
    %2171 = vmatpush.msra.mxu0 %v97
    %2172 = vmatmul.f32.gmra.mxu0 %v1899
    %v2173 = vpop.f32.mrf.mxu0
    %v2174 = vadd.f32 0.0, %v2173
    %2175 = vdwg.mxu0
    %v2176 = vadd.f32 %v307, %v2134
    %v2177 = vxor.u32 %v2176, 2147483648
    %v2178 = vmul.f32 %v2177, 1.442695
    %v2179 = vpow.pop %v2178
    %v2180 = vadd.f32 %v2179, 1.0
    %v2181 = vrcp.pop %v2180
    %v2182 = vmul.f32 %v2180, %v2181
    %v2183 = vsub.f32 1.0, %v2182
    %v2184 = vmul.f32 %v2181, %v2183
    %v2185 = vadd.f32 %v2181, %v2184
    %vm2186 = vweird.f32 %v2180
    %vm2187 = vweird.f32 %v2181
    %vm2188 = vmor %vm2186, %vm2187
    %v2189 = vsel %vm2188, %v2181, %v2185
    %v2190 = vand.u32 2147483647, %v2180
    %vm2191 = vcmp.eq.f32.partialorder %v2190, 8.507059e+37
    %v2192 = vand.u32 %v2180, 2147483648
    %v2193 = vor.u32 1.1754944e-38, %v2192
    %v2194 = vsel %vm2191, %v2193, %v2189
    %v2195 = vmul.f32 1.0, %v2194
    %v2196 = vadd.f32 %v348, %v2154
    %v2197 = vxor.u32 %v2196, 2147483648
    %v2198 = vmul.f32 %v2197, 1.442695
    %v2199 = vpow.pop %v2198
    %v2200 = vadd.f32 %v2199, 1.0
    %v2201 = vrcp.pop %v2200
    %v2202 = vmul.f32 %v2200, %v2201
    %v2203 = vsub.f32 1.0, %v2202
    %v2204 = vmul.f32 %v2201, %v2203
    %v2205 = vadd.f32 %v2201, %v2204
    %vm2206 = vweird.f32 %v2200
    %vm2207 = vweird.f32 %v2201
    %vm2208 = vmor %vm2206, %vm2207
    %v2209 = vsel %vm2208, %v2201, %v2205
    %v2210 = vand.u32 2147483647, %v2200
    %vm2211 = vcmp.eq.f32.partialorder %v2210, 8.507059e+37
    %v2212 = vand.u32 %v2200, 2147483648
    %v2213 = vor.u32 1.1754944e-38, %v2212
    %v2214 = vsel %vm2211, %v2213, %v2209
    %v2215 = vmul.f32 1.0, %v2214
    %v2216 = vadd.f32 %v2174, %v193
    %v2217 = vmul.f32 %v2195, %v2216
    %v2218 = vadd.f32 %v389, %v2217
    %v2219 = vtanh.pop %v2218
    %v2220 = vsub.f32 %v1899, %v2219
    %v2221 = vmul.f32 %v2215, %v2220
    %v2222 = vadd.f32 %v2219, %v2221
    %v2223 = vld [vmem:[#allocation6] sm:$0xff]
    %v2224 = vld [vmem:[#allocation6 + $0x8] sm:$0xff]
    %v2225 = vld [vmem:[#allocation6 + $0x10] sm:$0xff]
    %v2226 = vld [vmem:[#allocation6 + $0x18] sm:$0xff]
    %v2227 = vld [vmem:[#allocation6 + $0x20] sm:$0xff]
    %v2228 = vld [vmem:[#allocation6 + $0x28] sm:$0xff]
    %v2229 = vld [vmem:[#allocation6 + $0x30] sm:$0xff]
    %v2230 = vld [vmem:[#allocation6 + $0x38] sm:$0xff]
    %v2231 = vld [vmem:[#allocation6 + $0x40] sm:$0xff]
    %v2232 = vld [vmem:[#allocation6 + $0x48] sm:$0xff]
    %v2233 = vld [vmem:[#allocation6 + $0x50] sm:$0xff]
    %v2234 = vld [vmem:[#allocation6 + $0x58] sm:$0xff]
    %v2235 = vld [vmem:[#allocation6 + $0x60] sm:$0xff]
    %v2236 = vld [vmem:[#allocation6 + $0x68] sm:$0xff]
    %v2237 = vld [vmem:[#allocation6 + $0x70] sm:$0xff]
    %v2238 = vld [vmem:[#allocation6 + $0x78] sm:$0xff]
    %v2239 = vld [vmem:[#allocation6 + $0x80] sm:$0xff]
    %v2240 = vld [vmem:[#allocation6 + $0x88] sm:$0xff]
    %v2241 = vld [vmem:[#allocation6 + $0x90] sm:$0xff]
    %v2242 = vld [vmem:[#allocation6 + $0x98] sm:$0xff]
    %v2243 = vld [vmem:[#allocation6 + $0xa0] sm:$0xff]
    %v2244 = vld [vmem:[#allocation6 + $0xa8] sm:$0xff]
    %v2245 = vld [vmem:[#allocation6 + $0xb0] sm:$0xff]
    %v2246 = vld [vmem:[#allocation6 + $0xb8] sm:$0xff]
    %v2247 = vld [vmem:[#allocation6 + $0xc0] sm:$0xff]
    %v2248 = vld [vmem:[#allocation6 + $0xc8] sm:$0xff]
    %v2249 = vld [vmem:[#allocation6 + $0xd0] sm:$0xff]
    %v2250 = vld [vmem:[#allocation6 + $0xd8] sm:$0xff]
    %v2251 = vld [vmem:[#allocation6 + $0xe0] sm:$0xff]
    %v2252 = vld [vmem:[#allocation6 + $0xe8] sm:$0xff]
    %v2253 = vld [vmem:[#allocation6 + $0xf0] sm:$0xff]
    %v2254 = vld [vmem:[#allocation6 + $0xf8] sm:$0xff]
    %v2255 = vld [vmem:[#allocation6 + $0x100] sm:$0xff]
    %v2256 = vld [vmem:[#allocation6 + $0x108] sm:$0xff]
    %v2257 = vld [vmem:[#allocation6 + $0x110] sm:$0xff]
    %v2258 = vld [vmem:[#allocation6 + $0x118] sm:$0xff]
    %v2259 = vld [vmem:[#allocation6 + $0x120] sm:$0xff]
    %v2260 = vld [vmem:[#allocation6 + $0x128] sm:$0xff]
    %v2261 = vld [vmem:[#allocation6 + $0x130] sm:$0xff]
    %v2262 = vld [vmem:[#allocation6 + $0x138] sm:$0xff]
    %v2263 = vld [vmem:[#allocation6 + $0x140] sm:$0xff]
    %v2264 = vld [vmem:[#allocation6 + $0x148] sm:$0xff]
    %v2265 = vld [vmem:[#allocation6 + $0x150] sm:$0xff]
    %v2266 = vld [vmem:[#allocation6 + $0x158] sm:$0xff]
    %v2267 = vld [vmem:[#allocation6 + $0x160] sm:$0xff]
    %v2268 = vld [vmem:[#allocation6 + $0x168] sm:$0xff]
    %v2269 = vld [vmem:[#allocation6 + $0x170] sm:$0xff]
    %v2270 = vld [vmem:[#allocation6 + $0x178] sm:$0xff]
    %2271 = vmatpush.msra.mxu0 %v2268
    %2272 = vmatpush.msra.mxu0 %v2265
    %2273 = vmatpush.msra.mxu0 %v2262
    %2274 = vmatpush.msra.mxu0 %v2259
    %2275 = vmatpush.msra.mxu0 %v2256
    %2276 = vmatpush.msra.mxu0 %v2253
    %2277 = vmatpush.msra.mxu0 %v2250
    %2278 = vmatpush.msra.mxu0 %v2247
    %2279 = vmatpush.msra.mxu0 %v2244
    %2280 = vmatpush.msra.mxu0 %v2241
    %2281 = vmatpush.msra.mxu0 %v2238
    %2282 = vmatpush.msra.mxu0 %v2235
    %2283 = vmatpush.msra.mxu0 %v2232
    %2284 = vmatpush.msra.mxu0 %v2229
    %2285 = vmatpush.msra.mxu0 %v2226
    %2286 = vmatpush.msra.mxu0 %v2223
    %2287 = vmatmul.f32.gmra.mxu0 %v1899
    %v2288 = vpop.f32.mrf.mxu0
    %v2289 = vadd.f32 %v201, %v2288
    %2290 = vdwg.mxu0
    %2291 = vmatpush.msra.mxu0 %v2269
    %2292 = vmatpush.msra.mxu0 %v2266
    %2293 = vmatpush.msra.mxu0 %v2263
    %2294 = vmatpush.msra.mxu0 %v2260
    %2295 = vmatpush.msra.mxu0 %v2257
    %2296 = vmatpush.msra.mxu0 %v2254
    %2297 = vmatpush.msra.mxu0 %v2251
    %2298 = vmatpush.msra.mxu0 %v2248
    %2299 = vmatpush.msra.mxu0 %v2245
    %2300 = vmatpush.msra.mxu0 %v2242
    %2301 = vmatpush.msra.mxu0 %v2239
    %2302 = vmatpush.msra.mxu0 %v2236
    %2303 = vmatpush.msra.mxu0 %v2233
    %2304 = vmatpush.msra.mxu0 %v2230
    %2305 = vmatpush.msra.mxu0 %v2227
    %2306 = vmatpush.msra.mxu0 %v2224
    %2307 = vmatmul.f32.gmra.mxu0 %v1899
    %v2308 = vpop.f32.mrf.mxu0
    %v2309 = vadd.f32 %v202, %v2308
    %2310 = vdwg.mxu0
    %2311 = vmatpush.msra.mxu0 %v2270
    %2312 = vmatpush.msra.mxu0 %v2267
    %2313 = vmatpush.msra.mxu0 %v2264
    %2314 = vmatpush.msra.mxu0 %v2261
    %2315 = vmatpush.msra.mxu0 %v2258
    %2316 = vmatpush.msra.mxu0 %v2255
    %2317 = vmatpush.msra.mxu0 %v2252
    %2318 = vmatpush.msra.mxu0 %v2249
    %2319 = vmatpush.msra.mxu0 %v2246
    %2320 = vmatpush.msra.mxu0 %v2243
    %2321 = vmatpush.msra.mxu0 %v2240
    %2322 = vmatpush.msra.mxu0 %v2237
    %2323 = vmatpush.msra.mxu0 %v2234
    %2324 = vmatpush.msra.mxu0 %v2231
    %2325 = vmatpush.msra.mxu0 %v2228
    %2326 = vmatpush.msra.mxu0 %v2225
    %2327 = vmatmul.f32.gmra.mxu0 %v1899
    %v2328 = vpop.f32.mrf.mxu0
    %v2329 = vadd.f32 %v203, %v2328
    %2330 = vdwg.mxu0
    %2331 = vmatpush.msra.mxu0 %v188
    %2332 = vmatpush.msra.mxu0 %v185
    %2333 = vmatpush.msra.mxu0 %v182
    %2334 = vmatpush.msra.mxu0 %v179
    %2335 = vmatpush.msra.mxu0 %v176
    %2336 = vmatpush.msra.mxu0 %v173
    %2337 = vmatpush.msra.mxu0 %v170
    %2338 = vmatpush.msra.mxu0 %v167
    %2339 = vmatpush.msra.mxu0 %v164
    %2340 = vmatpush.msra.mxu0 %v161
    %2341 = vmatpush.msra.mxu0 %v158
    %2342 = vmatpush.msra.mxu0 %v155
    %2343 = vmatpush.msra.mxu0 %v152
    %2344 = vmatpush.msra.mxu0 %v149
    %2345 = vmatpush.msra.mxu0 %v146
    %2346 = vmatpush.msra.mxu0 %v143
    %2347 = vmatmul.f32.gmra.mxu0 %v2114
    %v2348 = vpop.f32.mrf.mxu0
    %v2349 = vadd.f32 0.0, %v2348
    %2350 = vdwg.mxu0
    %2351 = vmatpush.msra.mxu0 %v189
    %2352 = vmatpush.msra.mxu0 %v186
    %2353 = vmatpush.msra.mxu0 %v183
    %2354 = vmatpush.msra.mxu0 %v180
    %2355 = vmatpush.msra.mxu0 %v177
    %2356 = vmatpush.msra.mxu0 %v174
    %2357 = vmatpush.msra.mxu0 %v171
    %2358 = vmatpush.msra.mxu0 %v168
    %2359 = vmatpush.msra.mxu0 %v165
    %2360 = vmatpush.msra.mxu0 %v162
    %2361 = vmatpush.msra.mxu0 %v159
    %2362 = vmatpush.msra.mxu0 %v156
    %2363 = vmatpush.msra.mxu0 %v153
    %2364 = vmatpush.msra.mxu0 %v150
    %2365 = vmatpush.msra.mxu0 %v147
    %2366 = vmatpush.msra.mxu0 %v144
    %2367 = vmatmul.f32.gmra.mxu0 %v2114
    %v2368 = vpop.f32.mrf.mxu0
    %v2369 = vadd.f32 0.0, %v2368
    %2370 = vdwg.mxu0
    %2371 = vmatpush.msra.mxu0 %v190
    %2372 = vmatpush.msra.mxu0 %v187
    %2373 = vmatpush.msra.mxu0 %v184
    %2374 = vmatpush.msra.mxu0 %v181
    %2375 = vmatpush.msra.mxu0 %v178
    %2376 = vmatpush.msra.mxu0 %v175
    %2377 = vmatpush.msra.mxu0 %v172
    %2378 = vmatpush.msra.mxu0 %v169
    %2379 = vmatpush.msra.mxu0 %v166
    %2380 = vmatpush.msra.mxu0 %v163
    %2381 = vmatpush.msra.mxu0 %v160
    %2382 = vmatpush.msra.mxu0 %v157
    %2383 = vmatpush.msra.mxu0 %v154
    %2384 = vmatpush.msra.mxu0 %v151
    %2385 = vmatpush.msra.mxu0 %v148
    %2386 = vmatpush.msra.mxu0 %v145
    %2387 = vmatmul.f32.gmra.mxu0 %v2114
    %v2388 = vpop.f32.mrf.mxu0
    %v2389 = vadd.f32 0.0, %v2388
    %2390 = vdwg.mxu0
    %v2391 = vadd.f32 %v2289, %v2349
    %v2392 = vxor.u32 %v2391, 2147483648
    %v2393 = vmul.f32 %v2392, 1.442695
    %v2394 = vpow.pop %v2393
    %v2395 = vadd.f32 %v2394, 1.0
    %v2396 = vrcp.pop %v2395
    %v2397 = vmul.f32 %v2395, %v2396
    %v2398 = vsub.f32 1.0, %v2397
    %v2399 = vmul.f32 %v2396, %v2398
    %v2400 = vadd.f32 %v2396, %v2399
    %vm2401 = vweird.f32 %v2395
    %vm2402 = vweird.f32 %v2396
    %vm2403 = vmor %vm2401, %vm2402
    %v2404 = vsel %vm2403, %v2396, %v2400
    %v2405 = vand.u32 2147483647, %v2395
    %vm2406 = vcmp.eq.f32.partialorder %v2405, 8.507059e+37
    %v2407 = vand.u32 %v2395, 2147483648
    %v2408 = vor.u32 1.1754944e-38, %v2407
    %v2409 = vsel %vm2406, %v2408, %v2404
    %v2410 = vmul.f32 1.0, %v2409
    %v2411 = vadd.f32 %v2309, %v2369
    %v2412 = vxor.u32 %v2411, 2147483648
    %v2413 = vmul.f32 %v2412, 1.442695
    %v2414 = vpow.pop %v2413
    %v2415 = vadd.f32 %v2414, 1.0
    %v2416 = vrcp.pop %v2415
    %v2417 = vmul.f32 %v2415, %v2416
    %v2418 = vsub.f32 1.0, %v2417
    %v2419 = vmul.f32 %v2416, %v2418
    %v2420 = vadd.f32 %v2416, %v2419
    %vm2421 = vweird.f32 %v2415
    %vm2422 = vweird.f32 %v2416
    %vm2423 = vmor %vm2421, %vm2422
    %v2424 = vsel %vm2423, %v2416, %v2420
    %v2425 = vand.u32 2147483647, %v2415
    %vm2426 = vcmp.eq.f32.partialorder %v2425, 8.507059e+37
    %v2427 = vand.u32 %v2415, 2147483648
    %v2428 = vor.u32 1.1754944e-38, %v2427
    %v2429 = vsel %vm2426, %v2428, %v2424
    %v2430 = vmul.f32 1.0, %v2429
    %v2431 = vadd.f32 %v2389, %v197
    %v2432 = vmul.f32 %v2410, %v2431
    %v2433 = vadd.f32 %v2329, %v2432
    %v2434 = vtanh.pop %v2433
    %v2435 = vsub.f32 %v2114, %v2434
    %v2436 = vmul.f32 %v2430, %v2435
    %v2437 = vadd.f32 %v2434, %v2436
    %2438 = vst [vmem:[%s9 + $0x28] sm:$0xff] %v2437
    %2439 = vmatpush.msra.mxu0 %v140
    %2440 = vmatpush.msra.mxu0 %v137
    %2441 = vmatpush.msra.mxu0 %v134
    %2442 = vmatpush.msra.mxu0 %v131
    %2443 = vmatpush.msra.mxu0 %v128
    %2444 = vmatpush.msra.mxu0 %v125
    %2445 = vmatpush.msra.mxu0 %v122
    %2446 = vmatpush.msra.mxu0 %v119
    %2447 = vmatpush.msra.mxu0 %v116
    %2448 = vmatpush.msra.mxu0 %v113
    %2449 = vmatpush.msra.mxu0 %v110
    %2450 = vmatpush.msra.mxu0 %v107
    %2451 = vmatpush.msra.mxu0 %v104
    %2452 = vmatpush.msra.mxu0 %v101
    %2453 = vmatpush.msra.mxu0 %v98
    %2454 = vmatpush.msra.mxu0 %v95
    %2455 = vmatmul.f32.gmra.mxu0 %v2222
    %v2456 = vpop.f32.mrf.mxu0
    %v2457 = vadd.f32 0.0, %v2456
    %2458 = vdwg.mxu0
    %2459 = vmatpush.msra.mxu0 %v141
    %2460 = vmatpush.msra.mxu0 %v138
    %2461 = vmatpush.msra.mxu0 %v135
    %2462 = vmatpush.msra.mxu0 %v132
    %2463 = vmatpush.msra.mxu0 %v129
    %2464 = vmatpush.msra.mxu0 %v126
    %2465 = vmatpush.msra.mxu0 %v123
    %2466 = vmatpush.msra.mxu0 %v120
    %2467 = vmatpush.msra.mxu0 %v117
    %2468 = vmatpush.msra.mxu0 %v114
    %2469 = vmatpush.msra.mxu0 %v111
    %2470 = vmatpush.msra.mxu0 %v108
    %2471 = vmatpush.msra.mxu0 %v105
    %2472 = vmatpush.msra.mxu0 %v102
    %2473 = vmatpush.msra.mxu0 %v99
    %2474 = vmatpush.msra.mxu0 %v96
    %2475 = vmatmul.f32.gmra.mxu0 %v2222
    %v2476 = vpop.f32.mrf.mxu0
    %v2477 = vadd.f32 0.0, %v2476
    %2478 = vdwg.mxu0
    %2479 = vmatpush.msra.mxu0 %v142
    %2480 = vmatpush.msra.mxu0 %v139
    %2481 = vmatpush.msra.mxu0 %v136
    %2482 = vmatpush.msra.mxu0 %v133
    %2483 = vmatpush.msra.mxu0 %v130
    %2484 = vmatpush.msra.mxu0 %v127
    %2485 = vmatpush.msra.mxu0 %v124
    %2486 = vmatpush.msra.mxu0 %v121
    %2487 = vmatpush.msra.mxu0 %v118
    %2488 = vmatpush.msra.mxu0 %v115
    %2489 = vmatpush.msra.mxu0 %v112
    %2490 = vmatpush.msra.mxu0 %v109
    %2491 = vmatpush.msra.mxu0 %v106
    %2492 = vmatpush.msra.mxu0 %v103
    %2493 = vmatpush.msra.mxu0 %v100
    %2494 = vmatpush.msra.mxu0 %v97
    %2495 = vmatmul.f32.gmra.mxu0 %v2222
    %v2496 = vpop.f32.mrf.mxu0
    %v2497 = vadd.f32 0.0, %v2496
    %2498 = vdwg.mxu0
    %v2499 = vadd.f32 %v310, %v2457
    %v2500 = vxor.u32 %v2499, 2147483648
    %v2501 = vmul.f32 %v2500, 1.442695
    %v2502 = vpow.pop %v2501
    %v2503 = vadd.f32 %v2502, 1.0
    %v2504 = vrcp.pop %v2503
    %v2505 = vmul.f32 %v2503, %v2504
    %v2506 = vsub.f32 1.0, %v2505
    %v2507 = vmul.f32 %v2504, %v2506
    %v2508 = vadd.f32 %v2504, %v2507
    %vm2509 = vweird.f32 %v2503
    %vm2510 = vweird.f32 %v2504
    %vm2511 = vmor %vm2509, %vm2510
    %v2512 = vsel %vm2511, %v2504, %v2508
    %v2513 = vand.u32 2147483647, %v2503
    %vm2514 = vcmp.eq.f32.partialorder %v2513, 8.507059e+37
    %v2515 = vand.u32 %v2503, 2147483648
    %v2516 = vor.u32 1.1754944e-38, %v2515
    %v2517 = vsel %vm2514, %v2516, %v2512
    %v2518 = vmul.f32 1.0, %v2517
    %v2519 = vadd.f32 %v351, %v2477
    %v2520 = vxor.u32 %v2519, 2147483648
    %v2521 = vmul.f32 %v2520, 1.442695
    %v2522 = vpow.pop %v2521
    %v2523 = vadd.f32 %v2522, 1.0
    %v2524 = vrcp.pop %v2523
    %v2525 = vmul.f32 %v2523, %v2524
    %v2526 = vsub.f32 1.0, %v2525
    %v2527 = vmul.f32 %v2524, %v2526
    %v2528 = vadd.f32 %v2524, %v2527
    %vm2529 = vweird.f32 %v2523
    %vm2530 = vweird.f32 %v2524
    %vm2531 = vmor %vm2529, %vm2530
    %v2532 = vsel %vm2531, %v2524, %v2528
    %v2533 = vand.u32 2147483647, %v2523
    %vm2534 = vcmp.eq.f32.partialorder %v2533, 8.507059e+37
    %v2535 = vand.u32 %v2523, 2147483648
    %v2536 = vor.u32 1.1754944e-38, %v2535
    %v2537 = vsel %vm2534, %v2536, %v2532
    %v2538 = vmul.f32 1.0, %v2537
    %v2539 = vadd.f32 %v2497, %v193
    %v2540 = vmul.f32 %v2518, %v2539
    %v2541 = vadd.f32 %v392, %v2540
    %v2542 = vtanh.pop %v2541
    %v2543 = vsub.f32 %v2222, %v2542
    %v2544 = vmul.f32 %v2538, %v2543
    %v2545 = vadd.f32 %v2542, %v2544
    %v2546 = vld [vmem:[#allocation6] sm:$0xff]
    %v2547 = vld [vmem:[#allocation6 + $0x8] sm:$0xff]
    %v2548 = vld [vmem:[#allocation6 + $0x10] sm:$0xff]
    %v2549 = vld [vmem:[#allocation6 + $0x18] sm:$0xff]
    %v2550 = vld [vmem:[#allocation6 + $0x20] sm:$0xff]
    %v2551 = vld [vmem:[#allocation6 + $0x28] sm:$0xff]
    %v2552 = vld [vmem:[#allocation6 + $0x30] sm:$0xff]
    %v2553 = vld [vmem:[#allocation6 + $0x38] sm:$0xff]
    %v2554 = vld [vmem:[#allocation6 + $0x40] sm:$0xff]
    %v2555 = vld [vmem:[#allocation6 + $0x48] sm:$0xff]
    %v2556 = vld [vmem:[#allocation6 + $0x50] sm:$0xff]
    %v2557 = vld [vmem:[#allocation6 + $0x58] sm:$0xff]
    %v2558 = vld [vmem:[#allocation6 + $0x60] sm:$0xff]
    %v2559 = vld [vmem:[#allocation6 + $0x68] sm:$0xff]
    %v2560 = vld [vmem:[#allocation6 + $0x70] sm:$0xff]
    %v2561 = vld [vmem:[#allocation6 + $0x78] sm:$0xff]
    %v2562 = vld [vmem:[#allocation6 + $0x80] sm:$0xff]
    %v2563 = vld [vmem:[#allocation6 + $0x88] sm:$0xff]
    %v2564 = vld [vmem:[#allocation6 + $0x90] sm:$0xff]
    %v2565 = vld [vmem:[#allocation6 + $0x98] sm:$0xff]
    %v2566 = vld [vmem:[#allocation6 + $0xa0] sm:$0xff]
    %v2567 = vld [vmem:[#allocation6 + $0xa8] sm:$0xff]
    %v2568 = vld [vmem:[#allocation6 + $0xb0] sm:$0xff]
    %v2569 = vld [vmem:[#allocation6 + $0xb8] sm:$0xff]
    %v2570 = vld [vmem:[#allocation6 + $0xc0] sm:$0xff]
    %v2571 = vld [vmem:[#allocation6 + $0xc8] sm:$0xff]
    %v2572 = vld [vmem:[#allocation6 + $0xd0] sm:$0xff]
    %v2573 = vld [vmem:[#allocation6 + $0xd8] sm:$0xff]
    %v2574 = vld [vmem:[#allocation6 + $0xe0] sm:$0xff]
    %v2575 = vld [vmem:[#allocation6 + $0xe8] sm:$0xff]
    %v2576 = vld [vmem:[#allocation6 + $0xf0] sm:$0xff]
    %v2577 = vld [vmem:[#allocation6 + $0xf8] sm:$0xff]
    %v2578 = vld [vmem:[#allocation6 + $0x100] sm:$0xff]
    %v2579 = vld [vmem:[#allocation6 + $0x108] sm:$0xff]
    %v2580 = vld [vmem:[#allocation6 + $0x110] sm:$0xff]
    %v2581 = vld [vmem:[#allocation6 + $0x118] sm:$0xff]
    %v2582 = vld [vmem:[#allocation6 + $0x120] sm:$0xff]
    %v2583 = vld [vmem:[#allocation6 + $0x128] sm:$0xff]
    %v2584 = vld [vmem:[#allocation6 + $0x130] sm:$0xff]
    %v2585 = vld [vmem:[#allocation6 + $0x138] sm:$0xff]
    %v2586 = vld [vmem:[#allocation6 + $0x140] sm:$0xff]
    %v2587 = vld [vmem:[#allocation6 + $0x148] sm:$0xff]
    %v2588 = vld [vmem:[#allocation6 + $0x150] sm:$0xff]
    %v2589 = vld [vmem:[#allocation6 + $0x158] sm:$0xff]
    %v2590 = vld [vmem:[#allocation6 + $0x160] sm:$0xff]
    %v2591 = vld [vmem:[#allocation6 + $0x168] sm:$0xff]
    %v2592 = vld [vmem:[#allocation6 + $0x170] sm:$0xff]
    %v2593 = vld [vmem:[#allocation6 + $0x178] sm:$0xff]
    %2594 = vmatpush.msra.mxu0 %v2591
    %2595 = vmatpush.msra.mxu0 %v2588
    %2596 = vmatpush.msra.mxu0 %v2585
    %2597 = vmatpush.msra.mxu0 %v2582
    %2598 = vmatpush.msra.mxu0 %v2579
    %2599 = vmatpush.msra.mxu0 %v2576
    %2600 = vmatpush.msra.mxu0 %v2573
    %2601 = vmatpush.msra.mxu0 %v2570
    %2602 = vmatpush.msra.mxu0 %v2567
    %2603 = vmatpush.msra.mxu0 %v2564
    %2604 = vmatpush.msra.mxu0 %v2561
    %2605 = vmatpush.msra.mxu0 %v2558
    %2606 = vmatpush.msra.mxu0 %v2555
    %2607 = vmatpush.msra.mxu0 %v2552
    %2608 = vmatpush.msra.mxu0 %v2549
    %2609 = vmatpush.msra.mxu0 %v2546
    %2610 = vmatmul.f32.gmra.mxu0 %v2222
    %v2611 = vpop.f32.mrf.mxu0
    %v2612 = vadd.f32 %v201, %v2611
    %2613 = vdwg.mxu0
    %2614 = vmatpush.msra.mxu0 %v2592
    %2615 = vmatpush.msra.mxu0 %v2589
    %2616 = vmatpush.msra.mxu0 %v2586
    %2617 = vmatpush.msra.mxu0 %v2583
    %2618 = vmatpush.msra.mxu0 %v2580
    %2619 = vmatpush.msra.mxu0 %v2577
    %2620 = vmatpush.msra.mxu0 %v2574
    %2621 = vmatpush.msra.mxu0 %v2571
    %2622 = vmatpush.msra.mxu0 %v2568
    %2623 = vmatpush.msra.mxu0 %v2565
    %2624 = vmatpush.msra.mxu0 %v2562
    %2625 = vmatpush.msra.mxu0 %v2559
    %2626 = vmatpush.msra.mxu0 %v2556
    %2627 = vmatpush.msra.mxu0 %v2553
    %2628 = vmatpush.msra.mxu0 %v2550
    %2629 = vmatpush.msra.mxu0 %v2547
    %2630 = vmatmul.f32.gmra.mxu0 %v2222
    %v2631 = vpop.f32.mrf.mxu0
    %v2632 = vadd.f32 %v202, %v2631
    %2633 = vdwg.mxu0
    %2634 = vmatpush.msra.mxu0 %v2593
    %2635 = vmatpush.msra.mxu0 %v2590
    %2636 = vmatpush.msra.mxu0 %v2587
    %2637 = vmatpush.msra.mxu0 %v2584
    %2638 = vmatpush.msra.mxu0 %v2581
    %2639 = vmatpush.msra.mxu0 %v2578
    %2640 = vmatpush.msra.mxu0 %v2575
    %2641 = vmatpush.msra.mxu0 %v2572
    %2642 = vmatpush.msra.mxu0 %v2569
    %2643 = vmatpush.msra.mxu0 %v2566
    %2644 = vmatpush.msra.mxu0 %v2563
    %2645 = vmatpush.msra.mxu0 %v2560
    %2646 = vmatpush.msra.mxu0 %v2557
    %2647 = vmatpush.msra.mxu0 %v2554
    %2648 = vmatpush.msra.mxu0 %v2551
    %2649 = vmatpush.msra.mxu0 %v2548
    %2650 = vmatmul.f32.gmra.mxu0 %v2222
    %v2651 = vpop.f32.mrf.mxu0
    %v2652 = vadd.f32 %v203, %v2651
    %2653 = vdwg.mxu0
    %2654 = vmatpush.msra.mxu0 %v188
    %2655 = vmatpush.msra.mxu0 %v185
    %2656 = vmatpush.msra.mxu0 %v182
    %2657 = vmatpush.msra.mxu0 %v179
    %2658 = vmatpush.msra.mxu0 %v176
    %2659 = vmatpush.msra.mxu0 %v173
    %2660 = vmatpush.msra.mxu0 %v170
    %2661 = vmatpush.msra.mxu0 %v167
    %2662 = vmatpush.msra.mxu0 %v164
    %2663 = vmatpush.msra.mxu0 %v161
    %2664 = vmatpush.msra.mxu0 %v158
    %2665 = vmatpush.msra.mxu0 %v155
    %2666 = vmatpush.msra.mxu0 %v152
    %2667 = vmatpush.msra.mxu0 %v149
    %2668 = vmatpush.msra.mxu0 %v146
    %2669 = vmatpush.msra.mxu0 %v143
    %2670 = vmatmul.f32.gmra.mxu0 %v2437
    %v2671 = vpop.f32.mrf.mxu0
    %v2672 = vadd.f32 0.0, %v2671
    %2673 = vdwg.mxu0
    %2674 = vmatpush.msra.mxu0 %v189
    %2675 = vmatpush.msra.mxu0 %v186
    %2676 = vmatpush.msra.mxu0 %v183
    %2677 = vmatpush.msra.mxu0 %v180
    %2678 = vmatpush.msra.mxu0 %v177
    %2679 = vmatpush.msra.mxu0 %v174
    %2680 = vmatpush.msra.mxu0 %v171
    %2681 = vmatpush.msra.mxu0 %v168
    %2682 = vmatpush.msra.mxu0 %v165
    %2683 = vmatpush.msra.mxu0 %v162
    %2684 = vmatpush.msra.mxu0 %v159
    %2685 = vmatpush.msra.mxu0 %v156
    %2686 = vmatpush.msra.mxu0 %v153
    %2687 = vmatpush.msra.mxu0 %v150
    %2688 = vmatpush.msra.mxu0 %v147
    %2689 = vmatpush.msra.mxu0 %v144
    %2690 = vmatmul.f32.gmra.mxu0 %v2437
    %v2691 = vpop.f32.mrf.mxu0
    %v2692 = vadd.f32 0.0, %v2691
    %2693 = vdwg.mxu0
    %2694 = vmatpush.msra.mxu0 %v190
    %2695 = vmatpush.msra.mxu0 %v187
    %2696 = vmatpush.msra.mxu0 %v184
    %2697 = vmatpush.msra.mxu0 %v181
    %2698 = vmatpush.msra.mxu0 %v178
    %2699 = vmatpush.msra.mxu0 %v175
    %2700 = vmatpush.msra.mxu0 %v172
    %2701 = vmatpush.msra.mxu0 %v169
    %2702 = vmatpush.msra.mxu0 %v166
    %2703 = vmatpush.msra.mxu0 %v163
    %2704 = vmatpush.msra.mxu0 %v160
    %2705 = vmatpush.msra.mxu0 %v157
    %2706 = vmatpush.msra.mxu0 %v154
    %2707 = vmatpush.msra.mxu0 %v151
    %2708 = vmatpush.msra.mxu0 %v148
    %2709 = vmatpush.msra.mxu0 %v145
    %2710 = vmatmul.f32.gmra.mxu0 %v2437
    %v2711 = vpop.f32.mrf.mxu0
    %v2712 = vadd.f32 0.0, %v2711
    %2713 = vdwg.mxu0
    %v2714 = vadd.f32 %v2612, %v2672
    %v2715 = vxor.u32 %v2714, 2147483648
    %v2716 = vmul.f32 %v2715, 1.442695
    %v2717 = vpow.pop %v2716
    %v2718 = vadd.f32 %v2717, 1.0
    %v2719 = vrcp.pop %v2718
    %v2720 = vmul.f32 %v2718, %v2719
    %v2721 = vsub.f32 1.0, %v2720
    %v2722 = vmul.f32 %v2719, %v2721
    %v2723 = vadd.f32 %v2719, %v2722
    %vm2724 = vweird.f32 %v2718
    %vm2725 = vweird.f32 %v2719
    %vm2726 = vmor %vm2724, %vm2725
    %v2727 = vsel %vm2726, %v2719, %v2723
    %v2728 = vand.u32 2147483647, %v2718
    %vm2729 = vcmp.eq.f32.partialorder %v2728, 8.507059e+37
    %v2730 = vand.u32 %v2718, 2147483648
    %v2731 = vor.u32 1.1754944e-38, %v2730
    %v2732 = vsel %vm2729, %v2731, %v2727
    %v2733 = vmul.f32 1.0, %v2732
    %v2734 = vadd.f32 %v2632, %v2692
    %v2735 = vxor.u32 %v2734, 2147483648
    %v2736 = vmul.f32 %v2735, 1.442695
    %v2737 = vpow.pop %v2736
    %v2738 = vadd.f32 %v2737, 1.0
    %v2739 = vrcp.pop %v2738
    %v2740 = vmul.f32 %v2738, %v2739
    %v2741 = vsub.f32 1.0, %v2740
    %v2742 = vmul.f32 %v2739, %v2741
    %v2743 = vadd.f32 %v2739, %v2742
    %vm2744 = vweird.f32 %v2738
    %vm2745 = vweird.f32 %v2739
    %vm2746 = vmor %vm2744, %vm2745
    %v2747 = vsel %vm2746, %v2739, %v2743
    %v2748 = vand.u32 2147483647, %v2738
    %vm2749 = vcmp.eq.f32.partialorder %v2748, 8.507059e+37
    %v2750 = vand.u32 %v2738, 2147483648
    %v2751 = vor.u32 1.1754944e-38, %v2750
    %v2752 = vsel %vm2749, %v2751, %v2747
    %v2753 = vmul.f32 1.0, %v2752
    %v2754 = vadd.f32 %v2712, %v197
    %v2755 = vmul.f32 %v2733, %v2754
    %v2756 = vadd.f32 %v2652, %v2755
    %v2757 = vtanh.pop %v2756
    %v2758 = vsub.f32 %v2437, %v2757
    %v2759 = vmul.f32 %v2753, %v2758
    %v2760 = vadd.f32 %v2757, %v2759
    %2761 = vst [vmem:[%s9 + $0x30] sm:$0xff] %v2760
    %v2762 = vld [vmem:[#allocation6] sm:$0xff]
    %v2763 = vld [vmem:[#allocation6 + $0x8] sm:$0xff]
    %v2764 = vld [vmem:[#allocation6 + $0x10] sm:$0xff]
    %v2765 = vld [vmem:[#allocation6 + $0x18] sm:$0xff]
    %v2766 = vld [vmem:[#allocation6 + $0x20] sm:$0xff]
    %v2767 = vld [vmem:[#allocation6 + $0x28] sm:$0xff]
    %v2768 = vld [vmem:[#allocation6 + $0x30] sm:$0xff]
    %v2769 = vld [vmem:[#allocation6 + $0x38] sm:$0xff]
    %v2770 = vld [vmem:[#allocation6 + $0x40] sm:$0xff]
    %v2771 = vld [vmem:[#allocation6 + $0x48] sm:$0xff]
    %v2772 = vld [vmem:[#allocation6 + $0x50] sm:$0xff]
    %v2773 = vld [vmem:[#allocation6 + $0x58] sm:$0xff]
    %v2774 = vld [vmem:[#allocation6 + $0x60] sm:$0xff]
    %v2775 = vld [vmem:[#allocation6 + $0x68] sm:$0xff]
    %v2776 = vld [vmem:[#allocation6 + $0x70] sm:$0xff]
    %v2777 = vld [vmem:[#allocation6 + $0x78] sm:$0xff]
    %v2778 = vld [vmem:[#allocation6 + $0x80] sm:$0xff]
    %v2779 = vld [vmem:[#allocation6 + $0x88] sm:$0xff]
    %v2780 = vld [vmem:[#allocation6 + $0x90] sm:$0xff]
    %v2781 = vld [vmem:[#allocation6 + $0x98] sm:$0xff]
    %v2782 = vld [vmem:[#allocation6 + $0xa0] sm:$0xff]
    %v2783 = vld [vmem:[#allocation6 + $0xa8] sm:$0xff]
    %v2784 = vld [vmem:[#allocation6 + $0xb0] sm:$0xff]
    %v2785 = vld [vmem:[#allocation6 + $0xb8] sm:$0xff]
    %v2786 = vld [vmem:[#allocation6 + $0xc0] sm:$0xff]
    %v2787 = vld [vmem:[#allocation6 + $0xc8] sm:$0xff]
    %v2788 = vld [vmem:[#allocation6 + $0xd0] sm:$0xff]
    %v2789 = vld [vmem:[#allocation6 + $0xd8] sm:$0xff]
    %v2790 = vld [vmem:[#allocation6 + $0xe0] sm:$0xff]
    %v2791 = vld [vmem:[#allocation6 + $0xe8] sm:$0xff]
    %v2792 = vld [vmem:[#allocation6 + $0xf0] sm:$0xff]
    %v2793 = vld [vmem:[#allocation6 + $0xf8] sm:$0xff]
    %v2794 = vld [vmem:[#allocation6 + $0x100] sm:$0xff]
    %v2795 = vld [vmem:[#allocation6 + $0x108] sm:$0xff]
    %v2796 = vld [vmem:[#allocation6 + $0x110] sm:$0xff]
    %v2797 = vld [vmem:[#allocation6 + $0x118] sm:$0xff]
    %v2798 = vld [vmem:[#allocation6 + $0x120] sm:$0xff]
    %v2799 = vld [vmem:[#allocation6 + $0x128] sm:$0xff]
    %v2800 = vld [vmem:[#allocation6 + $0x130] sm:$0xff]
    %v2801 = vld [vmem:[#allocation6 + $0x138] sm:$0xff]
    %v2802 = vld [vmem:[#allocation6 + $0x140] sm:$0xff]
    %v2803 = vld [vmem:[#allocation6 + $0x148] sm:$0xff]
    %v2804 = vld [vmem:[#allocation6 + $0x150] sm:$0xff]
    %v2805 = vld [vmem:[#allocation6 + $0x158] sm:$0xff]
    %v2806 = vld [vmem:[#allocation6 + $0x160] sm:$0xff]
    %v2807 = vld [vmem:[#allocation6 + $0x168] sm:$0xff]
    %v2808 = vld [vmem:[#allocation6 + $0x170] sm:$0xff]
    %v2809 = vld [vmem:[#allocation6 + $0x178] sm:$0xff]
    %2810 = vmatpush.msra.mxu0 %v2807
    %2811 = vmatpush.msra.mxu0 %v2804
    %2812 = vmatpush.msra.mxu0 %v2801
    %2813 = vmatpush.msra.mxu0 %v2798
    %2814 = vmatpush.msra.mxu0 %v2795
    %2815 = vmatpush.msra.mxu0 %v2792
    %2816 = vmatpush.msra.mxu0 %v2789
    %2817 = vmatpush.msra.mxu0 %v2786
    %2818 = vmatpush.msra.mxu0 %v2783
    %2819 = vmatpush.msra.mxu0 %v2780
    %2820 = vmatpush.msra.mxu0 %v2777
    %2821 = vmatpush.msra.mxu0 %v2774
    %2822 = vmatpush.msra.mxu0 %v2771
    %2823 = vmatpush.msra.mxu0 %v2768
    %2824 = vmatpush.msra.mxu0 %v2765
    %2825 = vmatpush.msra.mxu0 %v2762
    %2826 = vmatmul.f32.gmra.mxu0 %v2545
    %v2827 = vpop.f32.mrf.mxu0
    %v2828 = vadd.f32 %v201, %v2827
    %2829 = vdwg.mxu0
    %2830 = vmatpush.msra.mxu0 %v2808
    %2831 = vmatpush.msra.mxu0 %v2805
    %2832 = vmatpush.msra.mxu0 %v2802
    %2833 = vmatpush.msra.mxu0 %v2799
    %2834 = vmatpush.msra.mxu0 %v2796
    %2835 = vmatpush.msra.mxu0 %v2793
    %2836 = vmatpush.msra.mxu0 %v2790
    %2837 = vmatpush.msra.mxu0 %v2787
    %2838 = vmatpush.msra.mxu0 %v2784
    %2839 = vmatpush.msra.mxu0 %v2781
    %2840 = vmatpush.msra.mxu0 %v2778
    %2841 = vmatpush.msra.mxu0 %v2775
    %2842 = vmatpush.msra.mxu0 %v2772
    %2843 = vmatpush.msra.mxu0 %v2769
    %2844 = vmatpush.msra.mxu0 %v2766
    %2845 = vmatpush.msra.mxu0 %v2763
    %2846 = vmatmul.f32.gmra.mxu0 %v2545
    %v2847 = vpop.f32.mrf.mxu0
    %v2848 = vadd.f32 %v202, %v2847
    %2849 = vdwg.mxu0
    %2850 = vmatpush.msra.mxu0 %v2809
    %2851 = vmatpush.msra.mxu0 %v2806
    %2852 = vmatpush.msra.mxu0 %v2803
    %2853 = vmatpush.msra.mxu0 %v2800
    %2854 = vmatpush.msra.mxu0 %v2797
    %2855 = vmatpush.msra.mxu0 %v2794
    %2856 = vmatpush.msra.mxu0 %v2791
    %2857 = vmatpush.msra.mxu0 %v2788
    %2858 = vmatpush.msra.mxu0 %v2785
    %2859 = vmatpush.msra.mxu0 %v2782
    %2860 = vmatpush.msra.mxu0 %v2779
    %2861 = vmatpush.msra.mxu0 %v2776
    %2862 = vmatpush.msra.mxu0 %v2773
    %2863 = vmatpush.msra.mxu0 %v2770
    %2864 = vmatpush.msra.mxu0 %v2767
    %2865 = vmatpush.msra.mxu0 %v2764
    %2866 = vmatmul.f32.gmra.mxu0 %v2545
    %v2867 = vpop.f32.mrf.mxu0
    %v2868 = vadd.f32 %v203, %v2867
    %2869 = vdwg.mxu0
    %2870 = vmatpush.msra.mxu0 %v188
    %2871 = vmatpush.msra.mxu0 %v185
    %2872 = vmatpush.msra.mxu0 %v182
    %2873 = vmatpush.msra.mxu0 %v179
    %2874 = vmatpush.msra.mxu0 %v176
    %2875 = vmatpush.msra.mxu0 %v173
    %2876 = vmatpush.msra.mxu0 %v170
    %2877 = vmatpush.msra.mxu0 %v167
    %2878 = vmatpush.msra.mxu0 %v164
    %2879 = vmatpush.msra.mxu0 %v161
    %2880 = vmatpush.msra.mxu0 %v158
    %2881 = vmatpush.msra.mxu0 %v155
    %2882 = vmatpush.msra.mxu0 %v152
    %2883 = vmatpush.msra.mxu0 %v149
    %2884 = vmatpush.msra.mxu0 %v146
    %2885 = vmatpush.msra.mxu0 %v143
    %2886 = vmatmul.f32.gmra.mxu0 %v2760
    %v2887 = vpop.f32.mrf.mxu0
    %v2888 = vadd.f32 0.0, %v2887
    %2889 = vdwg.mxu0
    %2890 = vmatpush.msra.mxu0 %v189
    %2891 = vmatpush.msra.mxu0 %v186
    %2892 = vmatpush.msra.mxu0 %v183
    %2893 = vmatpush.msra.mxu0 %v180
    %2894 = vmatpush.msra.mxu0 %v177
    %2895 = vmatpush.msra.mxu0 %v174
    %2896 = vmatpush.msra.mxu0 %v171
    %2897 = vmatpush.msra.mxu0 %v168
    %2898 = vmatpush.msra.mxu0 %v165
    %2899 = vmatpush.msra.mxu0 %v162
    %2900 = vmatpush.msra.mxu0 %v159
    %2901 = vmatpush.msra.mxu0 %v156
    %2902 = vmatpush.msra.mxu0 %v153
    %2903 = vmatpush.msra.mxu0 %v150
    %2904 = vmatpush.msra.mxu0 %v147
    %2905 = vmatpush.msra.mxu0 %v144
    %2906 = vmatmul.f32.gmra.mxu0 %v2760
    %v2907 = vpop.f32.mrf.mxu0
    %v2908 = vadd.f32 0.0, %v2907
    %2909 = vdwg.mxu0
    %2910 = vmatpush.msra.mxu0 %v190
    %2911 = vmatpush.msra.mxu0 %v187
    %2912 = vmatpush.msra.mxu0 %v184
    %2913 = vmatpush.msra.mxu0 %v181
    %2914 = vmatpush.msra.mxu0 %v178
    %2915 = vmatpush.msra.mxu0 %v175
    %2916 = vmatpush.msra.mxu0 %v172
    %2917 = vmatpush.msra.mxu0 %v169
    %2918 = vmatpush.msra.mxu0 %v166
    %2919 = vmatpush.msra.mxu0 %v163
    %2920 = vmatpush.msra.mxu0 %v160
    %2921 = vmatpush.msra.mxu0 %v157
    %2922 = vmatpush.msra.mxu0 %v154
    %2923 = vmatpush.msra.mxu0 %v151
    %2924 = vmatpush.msra.mxu0 %v148
    %2925 = vmatpush.msra.mxu0 %v145
    %2926 = vmatmul.f32.gmra.mxu0 %v2760
    %v2927 = vpop.f32.mrf.mxu0
    %v2928 = vadd.f32 0.0, %v2927
    %2929 = vdwg.mxu0
    %v2930 = vadd.f32 %v2828, %v2888
    %v2931 = vxor.u32 %v2930, 2147483648
    %v2932 = vmul.f32 %v2931, 1.442695
    %v2933 = vpow.pop %v2932
    %v2934 = vadd.f32 %v2933, 1.0
    %v2935 = vrcp.pop %v2934
    %v2936 = vmul.f32 %v2934, %v2935
    %v2937 = vsub.f32 1.0, %v2936
    %v2938 = vmul.f32 %v2935, %v2937
    %v2939 = vadd.f32 %v2935, %v2938
    %vm2940 = vweird.f32 %v2934
    %vm2941 = vweird.f32 %v2935
    %vm2942 = vmor %vm2940, %vm2941
    %v2943 = vsel %vm2942, %v2935, %v2939
    %v2944 = vand.u32 2147483647, %v2934
    %vm2945 = vcmp.eq.f32.partialorder %v2944, 8.507059e+37
    %v2946 = vand.u32 %v2934, 2147483648
    %v2947 = vor.u32 1.1754944e-38, %v2946
    %v2948 = vsel %vm2945, %v2947, %v2943
    %v2949 = vmul.f32 1.0, %v2948
    %v2950 = vadd.f32 %v2848, %v2908
    %v2951 = vxor.u32 %v2950, 2147483648
    %v2952 = vmul.f32 %v2951, 1.442695
    %v2953 = vpow.pop %v2952
    %v2954 = vadd.f32 %v2953, 1.0
    %v2955 = vrcp.pop %v2954
    %v2956 = vmul.f32 %v2954, %v2955
    %v2957 = vsub.f32 1.0, %v2956
    %v2958 = vmul.f32 %v2955, %v2957
    %v2959 = vadd.f32 %v2955, %v2958
    %vm2960 = vweird.f32 %v2954
    %vm2961 = vweird.f32 %v2955
    %vm2962 = vmor %vm2960, %vm2961
    %v2963 = vsel %vm2962, %v2955, %v2959
    %v2964 = vand.u32 2147483647, %v2954
    %vm2965 = vcmp.eq.f32.partialorder %v2964, 8.507059e+37
    %v2966 = vand.u32 %v2954, 2147483648
    %v2967 = vor.u32 1.1754944e-38, %v2966
    %v2968 = vsel %vm2965, %v2967, %v2963
    %v2969 = vmul.f32 1.0, %v2968
    %v2970 = vadd.f32 %v2928, %v197
    %v2971 = vmul.f32 %v2949, %v2970
    %v2972 = vadd.f32 %v2868, %v2971
    %v2973 = vtanh.pop %v2972
    %v2974 = vsub.f32 %v2760, %v2973
    %v2975 = vmul.f32 %v2969, %v2974
    %v2976 = vadd.f32 %v2973, %v2975
    %2977 = vst [vmem:[%s9 + $0x38] sm:$0xff] %v2976
    // Predicated region
    $region54: #{rnn_decoder_forward.1} parent=1 // pred_check
      _
    $region55: #{rnn_decoder_forward.1} parent=1 // pred_check_branch
      %2979 = sbr.rel (0) target = $region57
    $region56: #{rnn_decoder_forward.1} parent=1 // pred_region
      _
    $region57: #{rnn_decoder_forward.1} parent=1 // pred_fallthru
      _
    // Predicated region
    $region58: #{rnn_decoder_forward.1} parent=1 // pred_check
      _
    $region59: #{rnn_decoder_forward.1} parent=1 // pred_check_branch
      %2981 = sbr.rel (0) target = $region61
    $region60: #{rnn_decoder_forward.1} parent=1 // pred_region
      _
    $region61: #{rnn_decoder_forward.1} parent=1 // pred_fallthru
      _
    %2982 = vsyncpa [#allocation3], 1
    %2983 = vsyncpa [#allocation5], 1
    %2984 = vsyncpa [#allocation8], 1

</llo_original>
